<compile_context>
chip_gen: v6e
topology: v6e:2x2x1
jax: 0.10.0
libtpu: 0.0.40
codegen_flags: <defaults>
</compile_context>

<pallas_src>
import jax
import jax.numpy as jnp
from jax import lax
from jax.experimental import pallas as pl
from jax.experimental.pallas import tpu as pltpu

EPS = 1e-5
VMEM_LIMIT = 32 * 1024 * 1024  # explicit scoped-VMEM budget, safe on v5e/v6e/v7x


def _pick_tile(m):
    """Largest power-of-two row tile that divides m (prefer >= 2 tiles)."""
    for t in (2048, 1024, 512, 256, 128, 64, 32, 16, 8):
        if m % t == 0 and m // t >= 2:
            return t
    for t in (2048, 1024, 512, 256, 128, 64, 32, 16, 8):
        if m % t == 0:
            return t
    return m


# --------------------------------- kernels ---------------------------------

def conv1_stats_kernel(x_ref, w1_ref, h1_ref, st_ref):
    # 1x1x1 conv == channel matmul (bf16 operands, f32 accumulate on MXU).
    h = jnp.dot(x_ref[...], w1_ref[...], preferred_element_type=jnp.float32)
    h1_ref[...] = h.astype(h1_ref.dtype)
    # Per-tile partial BN statistics (sum, sum of squares) over this tile's rows.
    st_ref[...] = jnp.concatenate(
        [jnp.sum(h, axis=0, keepdims=True),
         jnp.sum(h * h, axis=0, keepdims=True)], axis=0)


def scale_shift_relu_kernel(h_ref, sc_ref, sh_ref, o_ref):
    # Folded BN affine + ReLU; runs on a lane-dense (rows, 128) view when possible.
    h = h_ref[...].astype(jnp.float32)
    o_ref[...] = jnp.maximum(h * sc_ref[...] + sh_ref[...], 0.0).astype(o_ref.dtype)


def make_conv2_kernel(H, W, C):
    HW = H * W

    def conv2_stats_kernel(s0_ref, s1_ref, s2_ref, w2_ref, h2_ref, st_ref):
        # s{kd}_ref: (H+2, W+2, C) f32 depth slice (d + kd) of the zero-padded a1.
        # Data movement (slice / concat / reshape) stays in 32-bit layout; the
        # operands are cast to bf16 only right before the MXU dot.
        slabs = (s0_ref[...], s1_ref[...], s2_ref[...])
        pieces = []
        for kd in range(3):
            s = slabs[kd]
            for kh in range(3):
                for kw in range(3):
                    pieces.append(s[kh:kh + H, kw:kw + W, :])
        cols = jnp.concatenate(pieces, axis=-1)              # (H, W, 27*C)
        cols = cols.reshape(HW, 27 * C).astype(jnp.bfloat16)  # single im2col slab
        # One K = 27*C matmul on the MXU instead of 27 tiny K=C dots.
        h2 = jnp.dot(cols, w2_ref[...], preferred_element_type=jnp.float32)
        h2_ref[...] = h2.astype(h2_ref.dtype)
        # Per-tile partial BN2 statistics.
        st_ref[...] = jnp.concatenate(
            [jnp.sum(h2, axis=0, keepdims=True),
             jnp.sum(h2 * h2, axis=0, keepdims=True)], axis=0)

    return conv2_stats_kernel


def bn_relu_conv3_kernel(h2_ref, sc_ref, sh_ref, w3_ref, b3_ref, o_ref):
    # Folded BN2 affine + ReLU, then final 1x1x1 conv (+ bias) on the MXU.
    a = jnp.maximum(h2_ref[...].astype(jnp.float32) * sc_ref[...] + sh_ref[...], 0.0)
    o_ref[...] = (jnp.dot(a.astype(w3_ref.dtype), w3_ref[...],
                          preferred_element_type=jnp.float32) + b3_ref[...])


# --------------------------------- wrapper ---------------------------------

def _finalize_bn(partials, g, be, m):
    """Fold global (sum, sum_sq) partials into per-channel scale/shift."""
    s = partials.reshape(-1, 2, partials.shape[-1]).sum(axis=0)   # (2, C)
    mean = s[0] / m
    var = s[1] / m - mean * mean
    scale = g * lax.rsqrt(var + EPS)
    shift = be - mean * scale
    return scale.astype(jnp.float32), shift.astype(jnp.float32)


def conv_block_pallas(x_ncdhw, params):
    (W1, b1, g1, be1, W2, b2, g2, be2, W3, b3) = params
    N, C, D, H, W = x_ncdhw.shape
    M = N * D * H * W
    HW = H * W

    # Layout glue (zero-FLOP): NCDHW -> channels-last (M, C) slab, bf16 operands.
    x2d = jnp.transpose(x_ncdhw, (0, 2, 3, 4, 1)).reshape(M, C).astype(jnp.bfloat16)

    # PyTorch Conv3d weights are (C_out, C_in, kD, kH, kW).
    w1_k = W1[:, :, 0, 0, 0].T.astype(jnp.bfloat16)                            # (Cin, Cout)
    w3_k = W3[:, :, 0, 0, 0].T.astype(jnp.bfloat16)
    w2_k = jnp.transpose(W2, (2, 3, 4, 1, 0)).reshape(27 * C, C).astype(jnp.bfloat16)
    # NOTE: b1/b2 are intentionally dropped -- they cancel exactly under
    # training-mode BatchNorm mean subtraction.  b3 is kept (no BN after conv3).

    TM = _pick_tile(M)
    n_t = M // TM
    cp1 = pltpu.CompilerParams(dimension_semantics=("parallel",),
                               vmem_limit_bytes=VMEM_LIMIT)
    cp2 = pltpu.CompilerParams(dimension_semantics=("parallel", "parallel"),
                               vmem_limit_bytes=VMEM_LIMIT)

    # ---- stage 1: conv1 (1x1x1) + partial bn1 stats, tiled over M ----
    h1, st1 = pl.pallas_call(
        conv1_stats_kernel,
        out_shape=(jax.ShapeDtypeStruct((M, C), jnp.bfloat16),
                   jax.ShapeDtypeStruct((n_t, 2, C), jnp.float32)),
        grid=(n_t,),
        in_specs=[pl.BlockSpec((TM, C), lambda i: (i, 0)),
                  pl.BlockSpec((C, C), lambda i: (0, 0))],
        out_specs=(pl.BlockSpec((TM, C), lambda i: (i, 0)),
                   pl.BlockSpec((None, 2, C), lambda i: (i, 0, 0))),
        compiler_params=cp1,
    )(x2d, w1_k)

    scale1, shift1 = _finalize_bn(st1, g1, be1, M)

    # ---- stage 2: bn1 apply + ReLU (lane-dense elementwise pass) ----
    if 128 % C == 0 and (M * C) % 128 == 0:
        lanes, reps = 128, 128 // C
        h1v = h1.reshape((M * C) // 128, 128)              # bit-identical dense view
        sc1 = jnp.tile(scale1, reps).reshape(1, lanes)
        sh1 = jnp.tile(shift1, reps).reshape(1, lanes)
    else:                                                   # fallback: (M, C) layout
        lanes = C
        h1v = h1
        sc1 = scale1.reshape(1, C)
        sh1 = shift1.reshape(1, C)
    Mr = h1v.shape[0]
    TMr = _pick_tile(Mr)
    a1 = pl.pallas_call(
        scale_shift_relu_kernel,
        out_shape=jax.ShapeDtypeStruct((Mr, lanes), jnp.float32),
        grid=(Mr // TMr,),
        in_specs=[pl.BlockSpec((TMr, lanes), lambda i: (i, 0)),
                  pl.BlockSpec((1, lanes), lambda i: (0, 0)),
                  pl.BlockSpec((1, lanes), lambda i: (0, 0))],
        out_specs=pl.BlockSpec((TMr, lanes), lambda i: (i, 0)),
        compiler_params=cp1,
    )(h1v, sc1, sh1)

    # Glue: zero-pad in the post-BN/ReLU domain (that is conv2's padded input).
    a1p = jnp.pad(a1.reshape(N, D, H, W, C),
                  ((0, 0), (1, 1), (1, 1), (1, 1), (0, 0)))  # (N, D+2, H+2, W+2, C) f32

    # ---- stage 3: conv2 (3x3x3) as one K=27*C dot per (n, d) tile + bn2 partials ----
    Hp2, Wp2 = H + 2, W + 2
    conv2_kernel = make_conv2_kernel(H, W, C)

    def shifted_spec(kd):
        return pl.BlockSpec((None, None, Hp2, Wp2, C),
                            lambda n, d: (n, d + kd, 0, 0, 0))

    h2, st2 = pl.pallas_call(
        conv2_kernel,
        out_shape=(jax.ShapeDtypeStruct((N, D, HW, C), jnp.bfloat16),
                   jax.ShapeDtypeStruct((N, D, 2, C), jnp.float32)),
        grid=(N, D),
        in_specs=[shifted_spec(0), shifted_spec(1), shifted_spec(2),
                  pl.BlockSpec((27 * C, C), lambda n, d: (0, 0))],
        out_specs=(pl.BlockSpec((None, None, HW, C), lambda n, d: (n, d, 0, 0)),
                   pl.BlockSpec((None, None, 2, C), lambda n, d: (n, d, 0, 0))),
        compiler_params=cp2,
    )(a1p, a1p, a1p, w2_k)

    scale2, shift2 = _finalize_bn(st2, g2, be2, M)

    # ---- stage 4: bn2 apply + ReLU + conv3 (1x1x1) + bias, tiled over M ----
    out2d = pl.pallas_call(
        bn_relu_conv3_kernel,
        out_shape=jax.ShapeDtypeStruct((M, C), jnp.float32),
        grid=(n_t,),
        in_specs=[pl.BlockSpec((TM, C), lambda i: (i, 0)),
                  pl.BlockSpec((1, C), lambda i: (0, 0)),
                  pl.BlockSpec((1, C), lambda i: (0, 0)),
                  pl.BlockSpec((C, C), lambda i: (0, 0)),
                  pl.BlockSpec((1, C), lambda i: (0, 0))],
        out_specs=pl.BlockSpec((TM, C), lambda i: (i, 0)),
        compiler_params=cp1,
    )(h2.reshape(M, C), scale2.reshape(1, C), shift2.reshape(1, C),
      w3_k, b3.reshape(1, C).astype(jnp.float32))

    return jnp.transpose(out2d.reshape(N, D, H, W, C), (0, 4, 1, 2, 3))  # -> NCDHW


# ------------------------------- reference ---------------------------------

def conv_block_ref(x, params):
    """Pure-JAX f32 reference (lax.conv), PyTorch training-mode BN."""
    (W1, b1, g1, be1, W2, b2, g2, be2, W3, b3) = params

    def conv3d(x, w, b, padding):
        y = lax.conv_general_dilated(
            x, w, window_strides=(1, 1, 1), padding=padding,
            dimension_numbers=('NCDHW', 'OIDHW', 'NCDHW'))
        return y + b[None, :, None, None, None]

    def bn(x, g, be):
        mean = jnp.mean(x, axis=(0, 2, 3, 4), keepdims=True)
        var = jnp.mean(jnp.square(x - mean), axis=(0, 2, 3, 4), keepdims=True)
        return ((x - mean) / jnp.sqrt(var + EPS) * g[None, :, None, None, None]
                + be[None, :, None, None, None])

    x = conv3d(x, W1, b1, 'VALID')
    x = jnp.maximum(bn(x, g1, be1), 0.0)
    x = conv3d(x, W2, b2, [(1, 1), (1, 1), (1, 1)])
    x = jnp.maximum(bn(x, g2, be2), 0.0)
    x = conv3d(x, W3, b3, 'VALID')
    return x


if __name__ == "__main__":
    key = jax.random.PRNGKey(0)
    N, C, D, H, W = 2, 8, 4, 8, 8   # small NCDHW input, channels = 8
    ks = jax.random.split(key, 11)

    x = jax.random.normal(ks[0], (N, C, D, H, W), jnp.float32)
    # Conv3d weights: (out, in, kD, kH, kW) as in nn.Conv3d.
    W1 = 0.3 * jax.random.normal(ks[1], (C, C, 1, 1, 1), jnp.float32)
    b1 = 0.1 * jax.random.normal(ks[2], (C,), jnp.float32)
    W2 = 0.1 * jax.random.normal(ks[3], (C, C, 3, 3, 3), jnp.float32)
    b2 = 0.1 * jax.random.normal(ks[4], (C,), jnp.float32)
    W3 = 0.3 * jax.random.normal(ks[5], (C, C, 1, 1, 1), jnp.float32)
    b3 = 0.1 * jax.random.normal(ks[6], (C,), jnp.float32)
    # BatchNorm3d affine params (num_features = C).
    g1 = 1.0 + 0.1 * jax.random.normal(ks[7], (C,), jnp.float32)
    be1 = 0.1 * jax.random.normal(ks[8], (C,), jnp.float32)
    g2 = 1.0 + 0.1 * jax.random.normal(ks[9], (C,), jnp.float32)
    be2 = 0.1 * jax.random.normal(ks[10], (C,), jnp.float32)

    params = (W1, b1, g1, be1, W2, b2, g2, be2, W3, b3)

    out = jax.jit(conv_block_pallas)(x, params)
    out = jax.block_until_ready(out)

    ref = conv_block_ref(x, params)
    assert out.shape == ref.shape == (N, C, D, H, W)
    max_err = float(jnp.max(jnp.abs(out - ref)))
    # bf16 MXU operands (f32 accumulation) -> tolerance slightly looser than f32.
    if not jnp.allclose(out, ref, atol=5e-2, rtol=5e-2):
        raise AssertionError(f"Pallas/reference mismatch, max abs err = {max_err}")
    print("KERNEL_OK")
</pallas_src>

<mosaic_0001>
module attributes {stable_mosaic.version = 11 : i64} {
  func.func @conv1_stats_kernel(%arg0: i32, %arg1: memref<256x8xbf16, #tpu.memory_space<vmem>>, %arg2: memref<8x8xbf16, #tpu.memory_space<vmem>>, %arg3: memref<256x8xbf16, #tpu.memory_space<vmem>>, %arg4: memref<1x2x8xf32, #tpu.memory_space<vmem>>) attributes {dimension_semantics = [#tpu.dimension_semantics<parallel>], iteration_bounds = array<i64: 2>, scalar_prefetch = 0 : i64, scratch_operands = 0 : i64, tpu.core_type = #tpu.core_type<tc>, window_params = [{transform_indices = @transform_0, window_bounds = array<i64: 256, 8>}, {pipeline_mode = #tpu.pipeline_mode<synchronous>, transform_indices = @transform_1, window_bounds = array<i64: 8, 8>}, {transform_indices = @transform_2, window_bounds = array<i64: 256, 8>}, {transform_indices = @transform_3, window_bounds = array<i64: 1, 2, 8>}]} {
    %c0 = arith.constant 0 : index
    %c0_0 = arith.constant 0 : index
    %0 = vector.load %arg1[%c0, %c0_0] : memref<256x8xbf16, #tpu.memory_space<vmem>>, vector<256x8xbf16>
    %c0_1 = arith.constant 0 : index
    %c0_2 = arith.constant 0 : index
    %1 = vector.load %arg2[%c0_1, %c0_2] : memref<8x8xbf16, #tpu.memory_space<vmem>>, vector<8x8xbf16>
    %cst = arith.constant dense<0.000000e+00> : vector<256x8xf32>
    %2 = tpu.matmul %0, %1, %cst {dimension_numbers = #tpu.dot_dimension_numbers<[1], [0], [0], [1], [0, 0, 1, 1], [], []>} : vector<256x8xbf16>, vector<8x8xbf16>, vector<256x8xf32> -> vector<256x8xf32>
    %3 = arith.truncf %2 : vector<256x8xf32> to vector<256x8xbf16>
    %c0_3 = arith.constant 0 : index
    %c0_4 = arith.constant 0 : index
    %4 = vector.load %arg3[%c0_3, %c0_4] : memref<256x8xbf16, #tpu.memory_space<vmem>>, vector<256x8xbf16>
    tpu.vector_store %arg3[%c0_3, %c0_4], %3 {strides = array<i32>} : memref<256x8xbf16, #tpu.memory_space<vmem>>, vector<256x8xbf16>,
    %cst_5 = arith.constant dense<0.000000e+00> : vector<8xf32>
    %5 = vector.multi_reduction <add>, %2, %cst_5 [0] : vector<256x8xf32> to vector<8xf32>
    %6 = vector.shape_cast %5 : vector<8xf32> to vector<1x8xf32>
    %7 = arith.mulf %2, %2 : vector<256x8xf32>
    %cst_6 = arith.constant dense<0.000000e+00> : vector<8xf32>
    %8 = vector.multi_reduction <add>, %7, %cst_6 [0] : vector<256x8xf32> to vector<8xf32>
    %9 = vector.shape_cast %8 : vector<8xf32> to vector<1x8xf32>
    %10 = tpu.concatenate %6, %9 in 0 : vector<1x8xf32>, vector<1x8xf32> -> vector<2x8xf32>
    %c0_7 = arith.constant 0 : index
    %c0_8 = arith.constant 0 : index
    %c0_9 = arith.constant 0 : index
    %11 = vector.load %arg4[%c0_7, %c0_8, %c0_9] : memref<1x2x8xf32, #tpu.memory_space<vmem>>, vector<1x2x8xf32>
    %12 = vector.shape_cast %11 : vector<1x2x8xf32> to vector<2x8xf32>
    %13 = vector.shape_cast %10 : vector<2x8xf32> to vector<1x2x8xf32>
    tpu.vector_store %arg4[%c0_7, %c0_8, %c0_9], %13 {strides = array<i32>} : memref<1x2x8xf32, #tpu.memory_space<vmem>>, vector<1x2x8xf32>,
    return
  }
  func.func @transform_0(%arg0: i32) -> (i32, i32) {
    %c0_i32 = arith.constant 0 : i32
    %c0_i32_0 = arith.constant 0 : i32
    return %arg0, %c0_i32 : i32, i32
  }
  func.func @transform_1(%arg0: i32) -> (i32, i32) {
    %c0_i32 = arith.constant 0 : i32
    %c0_i32_0 = arith.constant 0 : i32
    %c0_i32_1 = arith.constant 0 : i32
    return %c0_i32, %c0_i32_0 : i32, i32
  }
  func.func @transform_2(%arg0: i32) -> (i32, i32) {
    %c0_i32 = arith.constant 0 : i32
    %c0_i32_0 = arith.constant 0 : i32
    return %arg0, %c0_i32 : i32, i32
  }
  func.func @transform_3(%arg0: i32) -> (i32, i32, i32) {
    %c0_i32 = arith.constant 0 : i32
    %c0_i32_0 = arith.constant 0 : i32
    %c0_i32_1 = arith.constant 0 : i32
    return %arg0, %c0_i32, %c0_i32_0 : i32, i32, i32
  }
}

module attributes {stable_mosaic.version = 11 : i64} {
  func.func @scale_shift_relu_kernel(%arg0: i32, %arg1: memref<16x128xbf16, #tpu.memory_space<vmem>>, %arg2: memref<1x128xf32, #tpu.memory_space<vmem>>, %arg3: memref<1x128xf32, #tpu.memory_space<vmem>>, %arg4: memref<16x128xf32, #tpu.memory_space<vmem>>) attributes {dimension_semantics = [#tpu.dimension_semantics<parallel>], iteration_bounds = array<i64: 2>, scalar_prefetch = 0 : i64, scratch_operands = 0 : i64, tpu.core_type = #tpu.core_type<tc>, window_params = [{transform_indices = @transform_0, window_bounds = array<i64: 16, 128>}, {pipeline_mode = #tpu.pipeline_mode<synchronous>, transform_indices = @transform_1, window_bounds = array<i64: 1, 128>}, {pipeline_mode = #tpu.pipeline_mode<synchronous>, transform_indices = @transform_2, window_bounds = array<i64: 1, 128>}, {transform_indices = @transform_3, window_bounds = array<i64: 16, 128>}]} {
    %c0 = arith.constant 0 : index
    %c0_0 = arith.constant 0 : index
    %0 = vector.load %arg1[%c0, %c0_0] : memref<16x128xbf16, #tpu.memory_space<vmem>>, vector<16x128xbf16>
    %1 = arith.extf %0 : vector<16x128xbf16> to vector<16x128xf32>
    %c0_1 = arith.constant 0 : index
    %c0_2 = arith.constant 0 : index
    %2 = vector.load %arg2[%c0_1, %c0_2] : memref<1x128xf32, #tpu.memory_space<vmem>>, vector<1x128xf32>
    %3 = vector.broadcast %2 : vector<1x128xf32> to vector<16x128xf32>
    %4 = arith.mulf %1, %3 : vector<16x128xf32>
    %c0_3 = arith.constant 0 : index
    %c0_4 = arith.constant 0 : index
    %5 = vector.load %arg3[%c0_3, %c0_4] : memref<1x128xf32, #tpu.memory_space<vmem>>, vector<1x128xf32>
    %6 = vector.broadcast %5 : vector<1x128xf32> to vector<16x128xf32>
    %7 = arith.addf %4, %6 : vector<16x128xf32>
    %cst = arith.constant 0.000000e+00 : f32
    %8 = vector.broadcast %cst : f32 to vector<16x128xf32>
    %9 = arith.maximumf %7, %8 : vector<16x128xf32>
    %c0_5 = arith.constant 0 : index
    %c0_6 = arith.constant 0 : index
    %10 = vector.load %arg4[%c0_5, %c0_6] : memref<16x128xf32, #tpu.memory_space<vmem>>, vector<16x128xf32>
    tpu.vector_store %arg4[%c0_5, %c0_6], %9 {strides = array<i32>} : memref<16x128xf32, #tpu.memory_space<vmem>>, vector<16x128xf32>,
    return
  }
  func.func @transform_0(%arg0: i32) -> (i32, i32) {
    %c0_i32 = arith.constant 0 : i32
    %c0_i32_0 = arith.constant 0 : i32
    return %arg0, %c0_i32 : i32, i32
  }
  func.func @transform_1(%arg0: i32) -> (i32, i32) {
    %c0_i32 = arith.constant 0 : i32
    %c0_i32_0 = arith.constant 0 : i32
    %c0_i32_1 = arith.constant 0 : i32
    return %c0_i32, %c0_i32_0 : i32, i32
  }
  func.func @transform_2(%arg0: i32) -> (i32, i32) {
    %c0_i32 = arith.constant 0 : i32
    %c0_i32_0 = arith.constant 0 : i32
    %c0_i32_1 = arith.constant 0 : i32
    return %c0_i32, %c0_i32_0 : i32, i32
  }
  func.func @transform_3(%arg0: i32) -> (i32, i32) {
    %c0_i32 = arith.constant 0 : i32
    %c0_i32_0 = arith.constant 0 : i32
    return %arg0, %c0_i32 : i32, i32
  }
}

module attributes {stable_mosaic.version = 11 : i64} {
  func.func @bn_relu_conv3_kernel(%arg0: i32, %arg1: memref<256x8xbf16, #tpu.memory_space<vmem>>, %arg2: memref<1x8xf32, #tpu.memory_space<vmem>>, %arg3: memref<1x8xf32, #tpu.memory_space<vmem>>, %arg4: memref<8x8xbf16, #tpu.memory_space<vmem>>, %arg5: memref<1x8xf32, #tpu.memory_space<vmem>>, %arg6: memref<256x8xf32, #tpu.memory_space<vmem>>) attributes {dimension_semantics = [#tpu.dimension_semantics<parallel>], iteration_bounds = array<i64: 2>, scalar_prefetch = 0 : i64, scratch_operands = 0 : i64, tpu.core_type = #tpu.core_type<tc>, window_params = [{transform_indices = @transform_0, window_bounds = array<i64: 256, 8>}, {pipeline_mode = #tpu.pipeline_mode<synchronous>, transform_indices = @transform_1, window_bounds = array<i64: 1, 8>}, {pipeline_mode = #tpu.pipeline_mode<synchronous>, transform_indices = @transform_2, window_bounds = array<i64: 1, 8>}, {pipeline_mode = #tpu.pipeline_mode<synchronous>, transform_indices = @transform_3, window_bounds = array<i64: 8, 8>}, {pipeline_mode = #tpu.pipeline_mode<synchronous>, transform_indices = @transform_4, window_bounds = array<i64: 1, 8>}, {transform_indices = @transform_5, window_bounds = array<i64: 256, 8>}]} {
    %c0 = arith.constant 0 : index
    %c0_0 = arith.constant 0 : index
    %0 = vector.load %arg1[%c0, %c0_0] : memref<256x8xbf16, #tpu.memory_space<vmem>>, vector<256x8xbf16>
    %1 = arith.extf %0 : vector<256x8xbf16> to vector<256x8xf32>
    %c0_1 = arith.constant 0 : index
    %c0_2 = arith.constant 0 : index
    %2 = vector.load %arg2[%c0_1, %c0_2] : memref<1x8xf32, #tpu.memory_space<vmem>>, vector<1x8xf32>
    %3 = vector.broadcast %2 : vector<1x8xf32> to vector<256x8xf32>
    %4 = arith.mulf %1, %3 : vector<256x8xf32>
    %c0_3 = arith.constant 0 : index
    %c0_4 = arith.constant 0 : index
    %5 = vector.load %arg3[%c0_3, %c0_4] : memref<1x8xf32, #tpu.memory_space<vmem>>, vector<1x8xf32>
    %6 = vector.broadcast %5 : vector<1x8xf32> to vector<256x8xf32>
    %7 = arith.addf %4, %6 : vector<256x8xf32>
    %cst = arith.constant 0.000000e+00 : f32
    %8 = vector.broadcast %cst : f32 to vector<256x8xf32>
    %9 = arith.maximumf %7, %8 : vector<256x8xf32>
    %10 = arith.truncf %9 : vector<256x8xf32> to vector<256x8xbf16>
    %c0_5 = arith.constant 0 : index
    %c0_6 = arith.constant 0 : index
    %11 = vector.load %arg4[%c0_5, %c0_6] : memref<8x8xbf16, #tpu.memory_space<vmem>>, vector<8x8xbf16>
    %cst_7 = arith.constant dense<0.000000e+00> : vector<256x8xf32>
    %12 = tpu.matmul %10, %11, %cst_7 {dimension_numbers = #tpu.dot_dimension_numbers<[1], [0], [0], [1], [0, 0, 1, 1], [], []>} : vector<256x8xbf16>, vector<8x8xbf16>, vector<256x8xf32> -> vector<256x8xf32>
    %c0_8 = arith.constant 0 : index
    %c0_9 = arith.constant 0 : index
    %13 = vector.load %arg5[%c0_8, %c0_9] : memref<1x8xf32, #tpu.memory_space<vmem>>, vector<1x8xf32>
    %14 = vector.broadcast %13 : vector<1x8xf32> to vector<256x8xf32>
    %15 = arith.addf %12, %14 : vector<256x8xf32>
    %c0_10 = arith.constant 0 : index
    %c0_11 = arith.constant 0 : index
    %16 = vector.load %arg6[%c0_10, %c0_11] : memref<256x8xf32, #tpu.memory_space<vmem>>, vector<256x8xf32>
    tpu.vector_store %arg6[%c0_10, %c0_11], %15 {strides = array<i32>} : memref<256x8xf32, #tpu.memory_space<vmem>>, vector<256x8xf32>,
    return
  }
  func.func @transform_0(%arg0: i32) -> (i32, i32) {
    %c0_i32 = arith.constant 0 : i32
    %c0_i32_0 = arith.constant 0 : i32
    return %arg0, %c0_i32 : i32, i32
  }
  func.func @transform_1(%arg0: i32) -> (i32, i32) {
    %c0_i32 = arith.constant 0 : i32
    %c0_i32_0 = arith.constant 0 : i32
    %c0_i32_1 = arith.constant 0 : i32
    return %c0_i32, %c0_i32_0 : i32, i32
  }
  func.func @transform_2(%arg0: i32) -> (i32, i32) {
    %c0_i32 = arith.constant 0 : i32
    %c0_i32_0 = arith.constant 0 : i32
    %c0_i32_1 = arith.constant 0 : i32
    return %c0_i32, %c0_i32_0 : i32, i32
  }
  func.func @transform_3(%arg0: i32) -> (i32, i32) {
    %c0_i32 = arith.constant 0 : i32
    %c0_i32_0 = arith.constant 0 : i32
    %c0_i32_1 = arith.constant 0 : i32
    return %c0_i32, %c0_i32_0 : i32, i32
  }
  func.func @transform_4(%arg0: i32) -> (i32, i32) {
    %c0_i32 = arith.constant 0 : i32
    %c0_i32_0 = arith.constant 0 : i32
    %c0_i32_1 = arith.constant 0 : i32
    return %c0_i32, %c0_i32_0 : i32, i32
  }
  func.func @transform_5(%arg0: i32) -> (i32, i32) {
    %c0_i32 = arith.constant 0 : i32
    %c0_i32_0 = arith.constant 0 : i32
    return %arg0, %c0_i32 : i32, i32
  }
}

module attributes {stable_mosaic.version = 11 : i64} {
  func.func @conv2_stats_kernel(%arg0: i32, %arg1: i32, %arg2: memref<1x1x10x10x8xf32, #tpu.memory_space<vmem>>, %arg3: memref<1x1x10x10x8xf32, #tpu.memory_space<vmem>>, %arg4: memref<1x1x10x10x8xf32, #tpu.memory_space<vmem>>, %arg5: memref<216x8xbf16, #tpu.memory_space<vmem>>, %arg6: memref<1x1x64x8xbf16, #tpu.memory_space<vmem>>, %arg7: memref<1x1x2x8xf32, #tpu.memory_space<vmem>>) attributes {dimension_semantics = [#tpu.dimension_semantics<parallel>, #tpu.dimension_semantics<parallel>], iteration_bounds = array<i64: 2, 4>, scalar_prefetch = 0 : i64, scratch_operands = 0 : i64, tpu.core_type = #tpu.core_type<tc>, window_params = [{transform_indices = @transform_0, window_bounds = array<i64: 1, 1, 10, 10, 8>}, {transform_indices = @transform_1, window_bounds = array<i64: 1, 1, 10, 10, 8>}, {transform_indices = @transform_2, window_bounds = array<i64: 1, 1, 10, 10, 8>}, {pipeline_mode = #tpu.pipeline_mode<synchronous>, transform_indices = @transform_3, window_bounds = array<i64: 216, 8>}, {transform_indices = @transform_4, window_bounds = array<i64: 1, 1, 64, 8>}, {transform_indices = @transform_5, window_bounds = array<i64: 1, 1, 2, 8>}]} {
    %c0 = arith.constant 0 : index
    %c0_0 = arith.constant 0 : index
    %c0_1 = arith.constant 0 : index
    %c0_2 = arith.constant 0 : index
    %c0_3 = arith.constant 0 : index
    %0 = vector.load %arg2[%c0, %c0_0, %c0_1, %c0_2, %c0_3] : memref<1x1x10x10x8xf32, #tpu.memory_space<vmem>>, vector<1x1x10x10x8xf32>
    %1 = vector.shape_cast %0 : vector<1x1x10x10x8xf32> to vector<10x10x8xf32>
    %c0_4 = arith.constant 0 : index
    %c0_5 = arith.constant 0 : index
    %c0_6 = arith.constant 0 : index
    %c0_7 = arith.constant 0 : index
    %c0_8 = arith.constant 0 : index
    %2 = vector.load %arg3[%c0_4, %c0_5, %c0_6, %c0_7, %c0_8] : memref<1x1x10x10x8xf32, #tpu.memory_space<vmem>>, vector<1x1x10x10x8xf32>
    %3 = vector.shape_cast %2 : vector<1x1x10x10x8xf32> to vector<10x10x8xf32>
    %c0_9 = arith.constant 0 : index
    %c0_10 = arith.constant 0 : index
    %c0_11 = arith.constant 0 : index
    %c0_12 = arith.constant 0 : index
    %c0_13 = arith.constant 0 : index
    %4 = vector.load %arg4[%c0_9, %c0_10, %c0_11, %c0_12, %c0_13] : memref<1x1x10x10x8xf32, #tpu.memory_space<vmem>>, vector<1x1x10x10x8xf32>
    %5 = vector.shape_cast %4 : vector<1x1x10x10x8xf32> to vector<10x10x8xf32>
    %6 = vector.extract_strided_slice %1 {offsets = [0, 0, 0], sizes = [8, 8, 8], strides = [1, 1, 1]} : vector<10x10x8xf32> to vector<8x8x8xf32>
    %7 = vector.extract_strided_slice %1 {offsets = [0, 1, 0], sizes = [8, 8, 8], strides = [1, 1, 1]} : vector<10x10x8xf32> to vector<8x8x8xf32>
    %8 = vector.extract_strided_slice %1 {offsets = [0, 2, 0], sizes = [8, 8, 8], strides = [1, 1, 1]} : vector<10x10x8xf32> to vector<8x8x8xf32>
    %9 = vector.extract_strided_slice %1 {offsets = [1, 0, 0], sizes = [8, 8, 8], strides = [1, 1, 1]} : vector<10x10x8xf32> to vector<8x8x8xf32>
    %10 = vector.extract_strided_slice %1 {offsets = [1, 1, 0], sizes = [8, 8, 8], strides = [1, 1, 1]} : vector<10x10x8xf32> to vector<8x8x8xf32>
    %11 = vector.extract_strided_slice %1 {offsets = [1, 2, 0], sizes = [8, 8, 8], strides = [1, 1, 1]} : vector<10x10x8xf32> to vector<8x8x8xf32>
    %12 = vector.extract_strided_slice %1 {offsets = [2, 0, 0], sizes = [8, 8, 8], strides = [1, 1, 1]} : vector<10x10x8xf32> to vector<8x8x8xf32>
    %13 = vector.extract_strided_slice %1 {offsets = [2, 1, 0], sizes = [8, 8, 8], strides = [1, 1, 1]} : vector<10x10x8xf32> to vector<8x8x8xf32>
    %14 = vector.extract_strided_slice %1 {offsets = [2, 2, 0], sizes = [8, 8, 8], strides = [1, 1, 1]} : vector<10x10x8xf32> to vector<8x8x8xf32>
    %15 = vector.extract_strided_slice %3 {offsets = [0, 0, 0], sizes = [8, 8, 8], strides = [1, 1, 1]} : vector<10x10x8xf32> to vector<8x8x8xf32>
    %16 = vector.extract_strided_slice %3 {offsets = [0, 1, 0], sizes = [8, 8, 8], strides = [1, 1, 1]} : vector<10x10x8xf32> to vector<8x8x8xf32>
    %17 = vector.extract_strided_slice %3 {offsets = [0, 2, 0], sizes = [8, 8, 8], strides = [1, 1, 1]} : vector<10x10x8xf32> to vector<8x8x8xf32>
    %18 = vector.extract_strided_slice %3 {offsets = [1, 0, 0], sizes = [8, 8, 8], strides = [1, 1, 1]} : vector<10x10x8xf32> to vector<8x8x8xf32>
    %19 = vector.extract_strided_slice %3 {offsets = [1, 1, 0], sizes = [8, 8, 8], strides = [1, 1, 1]} : vector<10x10x8xf32> to vector<8x8x8xf32>
    %20 = vector.extract_strided_slice %3 {offsets = [1, 2, 0], sizes = [8, 8, 8], strides = [1, 1, 1]} : vector<10x10x8xf32> to vector<8x8x8xf32>
    %21 = vector.extract_strided_slice %3 {offsets = [2, 0, 0], sizes = [8, 8, 8], strides = [1, 1, 1]} : vector<10x10x8xf32> to vector<8x8x8xf32>
    %22 = vector.extract_strided_slice %3 {offsets = [2, 1, 0], sizes = [8, 8, 8], strides = [1, 1, 1]} : vector<10x10x8xf32> to vector<8x8x8xf32>
    %23 = vector.extract_strided_slice %3 {offsets = [2, 2, 0], sizes = [8, 8, 8], strides = [1, 1, 1]} : vector<10x10x8xf32> to vector<8x8x8xf32>
    %24 = vector.extract_strided_slice %5 {offsets = [0, 0, 0], sizes = [8, 8, 8], strides = [1, 1, 1]} : vector<10x10x8xf32> to vector<8x8x8xf32>
    %25 = vector.extract_strided_slice %5 {offsets = [0, 1, 0], sizes = [8, 8, 8], strides = [1, 1, 1]} : vector<10x10x8xf32> to vector<8x8x8xf32>
    %26 = vector.extract_strided_slice %5 {offsets = [0, 2, 0], sizes = [8, 8, 8], strides = [1, 1, 1]} : vector<10x10x8xf32> to vector<8x8x8xf32>
    %27 = vector.extract_strided_slice %5 {offsets = [1, 0, 0], sizes = [8, 8, 8], strides = [1, 1, 1]} : vector<10x10x8xf32> to vector<8x8x8xf32>
    %28 = vector.extract_strided_slice %5 {offsets = [1, 1, 0], sizes = [8, 8, 8], strides = [1, 1, 1]} : vector<10x10x8xf32> to vector<8x8x8xf32>
    %29 = vector.extract_strided_slice %5 {offsets = [1, 2, 0], sizes = [8, 8, 8], strides = [1, 1, 1]} : vector<10x10x8xf32> to vector<8x8x8xf32>
    %30 = vector.extract_strided_slice %5 {offsets = [2, 0, 0], sizes = [8, 8, 8], strides = [1, 1, 1]} : vector<10x10x8xf32> to vector<8x8x8xf32>
    %31 = vector.extract_strided_slice %5 {offsets = [2, 1, 0], sizes = [8, 8, 8], strides = [1, 1, 1]} : vector<10x10x8xf32> to vector<8x8x8xf32>
    %32 = vector.extract_strided_slice %5 {offsets = [2, 2, 0], sizes = [8, 8, 8], strides = [1, 1, 1]} : vector<10x10x8xf32> to vector<8x8x8xf32>
    %33 = tpu.concatenate %6, %7, %8, %9, %10, %11, %12, %13, %14, %15, %16, %17, %18, %19, %20, %21 in 2 : vector<8x8x8xf32>, vector<8x8x8xf32>, vector<8x8x8xf32>, vector<8x8x8xf32>, vector<8x8x8xf32>, vector<8x8x8xf32>, vector<8x8x8xf32>, vector<8x8x8xf32>, vector<8x8x8xf32>, vector<8x8x8xf32>, vector<8x8x8xf32>, vector<8x8x8xf32>, vector<8x8x8xf32>, vector<8x8x8xf32>, vector<8x8x8xf32>, vector<8x8x8xf32> -> vector<8x8x128xf32>
    %34 = tpu.concatenate %22, %23, %24, %25, %26, %27, %28, %29, %30, %31, %32 in 2 : vector<8x8x8xf32>, vector<8x8x8xf32>, vector<8x8x8xf32>, vector<8x8x8xf32>, vector<8x8x8xf32>, vector<8x8x8xf32>, vector<8x8x8xf32>, vector<8x8x8xf32>, vector<8x8x8xf32>, vector<8x8x8xf32>, vector<8x8x8xf32> -> vector<8x8x88xf32>
    %35 = tpu.concatenate %33, %34 in 2 : vector<8x8x128xf32>, vector<8x8x88xf32> -> vector<8x8x216xf32>
    %36 = vector.shape_cast %35 : vector<8x8x216xf32> to vector<64x216xf32>
    %37 = arith.truncf %36 : vector<64x216xf32> to vector<64x216xbf16>
    %c0_14 = arith.constant 0 : index
    %c0_15 = arith.constant 0 : index
    %38 = vector.load %arg5[%c0_14, %c0_15] : memref<216x8xbf16, #tpu.memory_space<vmem>>, vector<216x8xbf16>
    %cst = arith.constant dense<0.000000e+00> : vector<64x8xf32>
    %39 = tpu.matmul %37, %38, %cst {dimension_numbers = #tpu.dot_dimension_numbers<[1], [0], [0], [1], [0, 0, 1, 1], [], []>} : vector<64x216xbf16>, vector<216x8xbf16>, vector<64x8xf32> -> vector<64x8xf32>
    %40 = arith.truncf %39 : vector<64x8xf32> to vector<64x8xbf16>
    %c0_16 = arith.constant 0 : index
    %c0_17 = arith.constant 0 : index
    %c0_18 = arith.constant 0 : index
    %c0_19 = arith.constant 0 : index
    %41 = vector.load %arg6[%c0_16, %c0_17, %c0_18, %c0_19] : memref<1x1x64x8xbf16, #tpu.memory_space<vmem>>, vector<1x1x64x8xbf16>
    %42 = vector.shape_cast %41 : vector<1x1x64x8xbf16> to vector<64x8xbf16>
    %43 = vector.shape_cast %40 : vector<64x8xbf16> to vector<1x1x64x8xbf16>
    tpu.vector_store %arg6[%c0_16, %c0_17, %c0_18, %c0_19], %43 {strides = array<i32>} : memref<1x1x64x8xbf16, #tpu.memory_space<vmem>>, vector<1x1x64x8xbf16>,
    %cst_20 = arith.constant dense<0.000000e+00> : vector<8xf32>
    %44 = vector.multi_reduction <add>, %39, %cst_20 [0] : vector<64x8xf32> to vector<8xf32>
    %45 = vector.shape_cast %44 : vector<8xf32> to vector<1x8xf32>
    %46 = arith.mulf %39, %39 : vector<64x8xf32>
    %cst_21 = arith.constant dense<0.000000e+00> : vector<8xf32>
    %47 = vector.multi_reduction <add>, %46, %cst_21 [0] : vector<64x8xf32> to vector<8xf32>
    %48 = vector.shape_cast %47 : vector<8xf32> to vector<1x8xf32>
    %49 = tpu.concatenate %45, %48 in 0 : vector<1x8xf32>, vector<1x8xf32> -> vector<2x8xf32>
    %c0_22 = arith.constant 0 : index
    %c0_23 = arith.constant 0 : index
    %c0_24 = arith.constant 0 : index
    %c0_25 = arith.constant 0 : index
    %50 = vector.load %arg7[%c0_22, %c0_23, %c0_24, %c0_25] : memref<1x1x2x8xf32, #tpu.memory_space<vmem>>, vector<1x1x2x8xf32>
    %51 = vector.shape_cast %50 : vector<1x1x2x8xf32> to vector<2x8xf32>
    %52 = vector.shape_cast %49 : vector<2x8xf32> to vector<1x1x2x8xf32>
    tpu.vector_store %arg7[%c0_22, %c0_23, %c0_24, %c0_25], %52 {strides = array<i32>} : memref<1x1x2x8xf32, #tpu.memory_space<vmem>>, vector<1x1x2x8xf32>,
    return
  }
  func.func @transform_0(%arg0: i32, %arg1: i32) -> (i32, i32, i32, i32, i32) {
    %c0_i32 = arith.constant 0 : i32
    %0 = arith.addi %arg1, %c0_i32 : i32
    %c0_i32_0 = arith.constant 0 : i32
    %c0_i32_1 = arith.constant 0 : i32
    %c0_i32_2 = arith.constant 0 : i32
    %c0_i32_3 = arith.constant 0 : i32
    return %arg0, %0, %c0_i32_0, %c0_i32_1, %c0_i32_2 : i32, i32, i32, i32, i32
  }
  func.func @transform_1(%arg0: i32, %arg1: i32) -> (i32, i32, i32, i32, i32) {
    %c1_i32 = arith.constant 1 : i32
    %0 = arith.addi %arg1, %c1_i32 : i32
    %c0_i32 = arith.constant 0 : i32
    %c0_i32_0 = arith.constant 0 : i32
    %c0_i32_1 = arith.constant 0 : i32
    %c0_i32_2 = arith.constant 0 : i32
    return %arg0, %0, %c0_i32, %c0_i32_0, %c0_i32_1 : i32, i32, i32, i32, i32
  }
  func.func @transform_2(%arg0: i32, %arg1: i32) -> (i32, i32, i32, i32, i32) {
    %c2_i32 = arith.constant 2 : i32
    %0 = arith.addi %arg1, %c2_i32 : i32
    %c0_i32 = arith.constant 0 : i32
    %c0_i32_0 = arith.constant 0 : i32
    %c0_i32_1 = arith.constant 0 : i32
    %c0_i32_2 = arith.constant 0 : i32
    return %arg0, %0, %c0_i32, %c0_i32_0, %c0_i32_1 : i32, i32, i32, i32, i32
  }
  func.func @transform_3(%arg0: i32, %arg1: i32) -> (i32, i32) {
    %c0_i32 = arith.constant 0 : i32
    %c0_i32_0 = arith.constant 0 : i32
    %c0_i32_1 = arith.constant 0 : i32
    return %c0_i32, %c0_i32_0 : i32, i32
  }
  func.func @transform_4(%arg0: i32, %arg1: i32) -> (i32, i32, i32, i32) {
    %c0_i32 = arith.constant 0 : i32
    %c0_i32_0 = arith.constant 0 : i32
    %c0_i32_1 = arith.constant 0 : i32
    return %arg0, %arg1, %c0_i32, %c0_i32_0 : i32, i32, i32, i32
  }
  func.func @transform_5(%arg0: i32, %arg1: i32) -> (i32, i32, i32, i32) {
    %c0_i32 = arith.constant 0 : i32
    %c0_i32_0 = arith.constant 0 : i32
    %c0_i32_1 = arith.constant 0 : i32
    return %arg0, %arg1, %c0_i32, %c0_i32_0 : i32, i32, i32, i32
  }
}

</mosaic_0001>

<llo_original>
// kernel: tile.13
$region0: #{tile.13}
  #allocation0 [shape = 's32[1]{0}', space=sflag, size = 0x4, scoped, tag = 'scoped memory for tile.13']
  %s0 = inlined_call_operand.vmem [shape: f32[8], index: 0, kind: input, shape index: {}]
  %s1 = inlined_call_operand.vmem [shape: f32[16,8], index: 1, kind: output, shape index: {}]
  // Predicated region
  $region2: #{tile.13} parent=0 // pred_check
    _
  $region3: #{tile.13} parent=0 // pred_check_branch
    %3 = sbr.rel (0) target = $region5
  $region4: #{tile.13} parent=0 // pred_region
    _
  $region5: #{tile.13} parent=0 // pred_fallthru
    _
  %v4 = vld [vmem:[%s0] ss:$0 sm:$0xff]
  %5 = vst [vmem:[%s1] sm:$0xff] %v4
  %s6 = scalar_lea.vmem %s1, 8
  %7 = vst [vmem:[%s6] sm:$0xff] %v4

// kernel: tile.14
$region0: #{tile.14}
  %s0 = inlined_call_operand.vmem [shape: f32[16,8], index: 0, kind: input, shape index: {}]
  %s1 = inlined_call_operand.vmem [shape: f32[1,128], index: 1, kind: output, shape index: {}]
  $region1: #{tile.14} parent=0
    #allocation0 [shape = 'u8[4096]{0}', space=vmem, size = 0x1000, scoped, tag = 'scoped mem for output reshape']
    %v2 = vld [vmem:[%s0] sm:$0x1]
    %vm3 = vcmask 64512
    %4 = vst.msk [vmem:[#allocation0] sm:$0x1] %vm3, %v2
    %s5 = scalar_lea.vmem %s0, 15
    %v6 = vld [vmem:[%s5] sm:$0x1]
    %7 = vrot.lane.b32.xlu0 %v6, 120
    %v8 = vpop.permute.xlu0 %7
    %vm9 = vcmask 1048512
    %10 = vst.msk [vmem:[#allocation0] sm:$0x1] %vm9, %v8
    %s11 = scalar_lea.vmem %s0, 14
    %v12 = vld [vmem:[%s11] sm:$0x1]
    %13 = vrot.lane.b32.xlu0 %v12, 112
    %v14 = vpop.permute.xlu0 %13
    %vm15 = vcmask 982912
    %16 = vst.msk [vmem:[#allocation0] sm:$0x1] %vm15, %v14
    %s17 = scalar_lea.vmem %s0, 13
    %v18 = vld [vmem:[%s17] sm:$0x1]
    %19 = vrot.lane.b32.xlu0 %v18, 104
    %v20 = vpop.permute.xlu0 %19
    %vm21 = vcmask 917312
    %22 = vst.msk [vmem:[#allocation0] sm:$0x1] %vm21, %v20
    %s23 = scalar_lea.vmem %s0, 12
    %v24 = vld [vmem:[%s23] sm:$0x1]
    %25 = vrot.lane.b32.xlu0 %v24, 96
    %v26 = vpop.permute.xlu0 %25
    %vm27 = vcmask 851712
    %28 = vst.msk [vmem:[#allocation0] sm:$0x1] %vm27, %v26
    %s29 = scalar_lea.vmem %s0, 11
    %v30 = vld [vmem:[%s29] sm:$0x1]
    %31 = vrot.lane.b32.xlu0 %v30, 88
    %v32 = vpop.permute.xlu0 %31
    %vm33 = vcmask 786112
    %34 = vst.msk [vmem:[#allocation0] sm:$0x1] %vm33, %v32
    %s35 = scalar_lea.vmem %s0, 10
    %v36 = vld [vmem:[%s35] sm:$0x1]
    %37 = vrot.lane.b32.xlu0 %v36, 80
    %v38 = vpop.permute.xlu0 %37
    %vm39 = vcmask 720512
    %40 = vst.msk [vmem:[#allocation0] sm:$0x1] %vm39, %v38
    %s41 = scalar_lea.vmem %s0, 9
    %v42 = vld [vmem:[%s41] sm:$0x1]
    %43 = vrot.lane.b32.xlu0 %v42, 72
    %v44 = vpop.permute.xlu0 %43
    %vm45 = vcmask 654912
    %46 = vst.msk [vmem:[#allocation0] sm:$0x1] %vm45, %v44
    %s47 = scalar_lea.vmem %s0, 8
    %v48 = vld [vmem:[%s47] sm:$0x1]
    %49 = vrot.lane.b32.xlu0 %v48, 64
    %v50 = vpop.permute.xlu0 %49
    %vm51 = vcmask 589312
    %52 = vst.msk [vmem:[#allocation0] sm:$0x1] %vm51, %v50
    %s53 = scalar_lea.vmem %s0, 7
    %v54 = vld [vmem:[%s53] sm:$0x1]
    %55 = vrot.lane.b32.xlu0 %v54, 56
    %v56 = vpop.permute.xlu0 %55
    %vm57 = vcmask 523712
    %58 = vst.msk [vmem:[#allocation0] sm:$0x1] %vm57, %v56
    %s59 = scalar_lea.vmem %s0, 6
    %v60 = vld [vmem:[%s59] sm:$0x1]
    %61 = vrot.lane.b32.xlu0 %v60, 48
    %v62 = vpop.permute.xlu0 %61
    %vm63 = vcmask 458112
    %64 = vst.msk [vmem:[#allocation0] sm:$0x1] %vm63, %v62
    %s65 = scalar_lea.vmem %s0, 5
    %v66 = vld [vmem:[%s65] sm:$0x1]
    %67 = vrot.lane.b32.xlu0 %v66, 40
    %v68 = vpop.permute.xlu0 %67
    %vm69 = vcmask 392512
    %70 = vst.msk [vmem:[#allocation0] sm:$0x1] %vm69, %v68
    %s71 = scalar_lea.vmem %s0, 4
    %v72 = vld [vmem:[%s71] sm:$0x1]
    %73 = vrot.lane.b32.xlu0 %v72, 32
    %v74 = vpop.permute.xlu0 %73
    %vm75 = vcmask 326912
    %76 = vst.msk [vmem:[#allocation0] sm:$0x1] %vm75, %v74
    %s77 = scalar_lea.vmem %s0, 3
    %v78 = vld [vmem:[%s77] sm:$0x1]
    %79 = vrot.lane.b32.xlu0 %v78, 24
    %v80 = vpop.permute.xlu0 %79
    %vm81 = vcmask 261312
    %82 = vst.msk [vmem:[#allocation0] sm:$0x1] %vm81, %v80
    %s83 = scalar_lea.vmem %s0, 2
    %v84 = vld [vmem:[%s83] sm:$0x1]
    %85 = vrot.lane.b32.xlu0 %v84, 16
    %v86 = vpop.permute.xlu0 %85
    %vm87 = vcmask 195712
    %88 = vst.msk [vmem:[#allocation0] sm:$0x1] %vm87, %v86
    %s89 = scalar_lea.vmem %s0, 1
    %v90 = vld [vmem:[%s89] sm:$0x1]
    %91 = vrot.lane.b32.xlu0 %v90, 8
    %v92 = vpop.permute.xlu0 %91
    %vm93 = vcmask 130112
    %94 = vst.msk [vmem:[#allocation0] sm:$0x1] %vm93, %v92
    %s96 = sshll.u32 1, 1
    %s97 = ssub.s32 %s96, 1
    %v99 = vld [vmem:[#allocation0] sm:%s97]
    %s100 = sshll.u32 1, 1
    %s101 = ssub.s32 %s100, 1
    %102 = vst [vmem:[%s1] sm:%s101] %v99

// kernel: conv_block_pallas.5
$region0: #{conv_block_pallas.5}
  #allocation0 [shape = 'u32[]', space=smem, size = 0x4, offset = 0x4, fixed_abs, tag = 'smem constant byte address 0x4 - core index']
  #allocation1 [shape = 'u32[144,128]{1,0:T(1,128)}', space=vmem, size = 0x12000, scoped, tag = 'internal scratch']
  %s0 = inlined_call_operand.vmem [shape: bf16[32,128], index: 0, kind: input, shape index: {}]
  %s1 = inlined_call_operand.vmem [shape: f32[1,128], index: 1, kind: input, shape index: {}]
  %s2 = inlined_call_operand.vmem [shape: f32[1,128], index: 2, kind: input, shape index: {}]
  %s3 = inlined_call_operand.vmem [shape: f32[32,128], index: 3, kind: output, shape index: {}]
  %s4 = sld [smem:[#allocation0]]
  $region45: #{conv_block_pallas.5} parent=0
    _
  %s6 = ssub.s32 1, %s4
  %s7 = scalar_select 0, %s6, %s4
  loop: start=0, step=1, limit=4
  $region2: #{conv_block_pallas.5} parent=0 // loop_pre_header
    _
  $region3: #{conv_block_pallas.5} parent=0 // loop_header
    %s9 = sphi 0, %s13
    %p10 = scmp.ge.s32.totalorder %s9, 4
    %s19 = sphi 0, %s21
    %s22 = sphi 0, %s19
    %s23 = sphi 0, %s22
    %s39 = sphi 0, %s23
    %s43 = sphi 0, %s43
    %s45 = sphi 0, %s43
    %s46 = sphi 0, %s45
    %s60 = sphi 0, %s46
    %s64 = sphi 0, %s64
    %s66 = sphi 0, %s64
    %s67 = sphi 0, %s66
    %s81 = sphi 0, %s67
    %s87 = sphi 0, %s89
    %s90 = sphi 0, %s87
    %s91 = sphi 0, %s90
    %s107 = sphi 0, %s91
  $region4: #{conv_block_pallas.5} parent=0 // loop_header_branch
    %12 = sbr.rel (%p10) target = $region8
  $region5: #{conv_block_pallas.5} parent=0 // loop_body
    %s14 = ssub.s32 %s9, 1
    %s15 = ssub.s32 %s9, 2
    %s16 = sadd.s32 %s9, 1
    %s17 = ssub.s32 %s9, %s16
    %p18 = scmp.eq.s32.totalorder %s17, 0
    %s20 = sadd.s32 %s19, 1
    %s21 = scalar_select %p18, %s19, %s20
    %p24 = pneg %p18
    %p25 = scmp.eq.s32.totalorder %s9, 1
    %p26 = por %p24, %p25
    %p27 = scmp.ne.s32.totalorder %s19, %s22
    %p28 = scmp.eq.s32.totalorder %s9, 0
    %p29 = por %p27, %p28
    %p30 = scmp.ne.s32.totalorder %s19, %s22
    %p31 = scmp.eq.s32.totalorder %s14, 1
    %p32 = por %p30, %p31
    %p33 = scmp.ne.s32.totalorder %s22, %s23
    %p34 = scmp.eq.s32.totalorder %s14, 0
    %p35 = por %p33, %p34
    %p36 = scmp.ne.s32.totalorder %s22, %s23
    %p37 = scmp.eq.s32.totalorder %s15, 1
    %p38 = por %p36, %p37
    %p40 = scmp.ne.s32.totalorder %s23, %s39
    %p41 = scmp.eq.s32.totalorder %s15, 0
    %p42 = por %p40, %p41
    %s44 = sadd.s32 %s43, 1
    %p47 = scmp.eq.s32.totalorder %s9, 1
    %p48 = scmp.ne.s32.totalorder %s43, %s45
    %p49 = scmp.eq.s32.totalorder %s9, 0
    %p50 = por %p48, %p49
    %p51 = scmp.ne.s32.totalorder %s43, %s45
    %p52 = scmp.eq.s32.totalorder %s14, 1
    %p53 = por %p51, %p52
    %p54 = scmp.ne.s32.totalorder %s45, %s46
    %p55 = scmp.eq.s32.totalorder %s14, 0
    %p56 = por %p54, %p55
    %p57 = scmp.ne.s32.totalorder %s45, %s46
    %p58 = scmp.eq.s32.totalorder %s15, 1
    %p59 = por %p57, %p58
    %p61 = scmp.ne.s32.totalorder %s46, %s60
    %p62 = scmp.eq.s32.totalorder %s15, 0
    %p63 = por %p61, %p62
    %s65 = sadd.s32 %s64, 1
    %p68 = scmp.eq.s32.totalorder %s9, 1
    %p69 = scmp.ne.s32.totalorder %s64, %s66
    %p70 = scmp.eq.s32.totalorder %s9, 0
    %p71 = por %p69, %p70
    %p72 = scmp.ne.s32.totalorder %s64, %s66
    %p73 = scmp.eq.s32.totalorder %s14, 1
    %p74 = por %p72, %p73
    %p75 = scmp.ne.s32.totalorder %s66, %s67
    %p76 = scmp.eq.s32.totalorder %s14, 0
    %p77 = por %p75, %p76
    %p78 = scmp.ne.s32.totalorder %s66, %s67
    %p79 = scmp.eq.s32.totalorder %s15, 1
    %p80 = por %p78, %p79
    %p82 = scmp.ne.s32.totalorder %s67, %s81
    %p83 = scmp.eq.s32.totalorder %s15, 0
    %p84 = por %p82, %p83
    %s85 = ssub.s32 %s9, %s16
    %p86 = scmp.eq.s32.totalorder %s85, 0
    %s88 = sadd.s32 %s87, 1
    %s89 = scalar_select %p86, %s87, %s88
    %p92 = pneg %p86
    %p93 = scmp.eq.s32.totalorder %s9, 1
    %p94 = por %p92, %p93
    %p95 = scmp.ne.s32.totalorder %s87, %s90
    %p96 = scmp.eq.s32.totalorder %s9, 0
    %p97 = por %p95, %p96
    %p98 = scmp.ne.s32.totalorder %s87, %s90
    %p99 = scmp.eq.s32.totalorder %s14, 1
    %p100 = por %p98, %p99
    %p101 = scmp.ne.s32.totalorder %s90, %s91
    %p102 = scmp.eq.s32.totalorder %s14, 0
    %p103 = por %p101, %p102
    %p104 = scmp.ne.s32.totalorder %s90, %s91
    %p105 = scmp.eq.s32.totalorder %s15, 1
    %p106 = por %p104, %p105
    %p108 = scmp.ne.s32.totalorder %s91, %s107
    %p109 = scmp.eq.s32.totalorder %s15, 0
    %p110 = por %p108, %p109
    %p111 = scmp.le.s32.totalorder 1, %s9
    %p112 = scmp.lt.s32.totalorder %s9, 3
    %p113 = pnand %p111, %p112
    %p114 = pneg %p113
    // Predicated region
    $region9: #{conv_block_pallas.5} parent=5 // pred_check
      _
    $region10: #{conv_block_pallas.5} parent=5 // pred_check_branch
      %116 = sbr.rel (%p113) target = $region12
    $region11: #{conv_block_pallas.5} parent=5 // pred_region
      %s117 = ssub.s32 %s9, 1
      // Predicated region
      $region13: #{conv_block_pallas.5} parent=11 // pred_check
        %p118 = pneg %p56
      $region14: #{conv_block_pallas.5} parent=11 // pred_check_branch
        %120 = sbr.rel (%p118) target = $region16
      $region15: #{conv_block_pallas.5} parent=11 // pred_region
        _
      $region16: #{conv_block_pallas.5} parent=11 // pred_fallthru
        _
      // Predicated region
      $region17: #{conv_block_pallas.5} parent=11 // pred_check
        %p121 = pneg %p77
      $region18: #{conv_block_pallas.5} parent=11 // pred_check_branch
        %123 = sbr.rel (%p121) target = $region20
      $region19: #{conv_block_pallas.5} parent=11 // pred_region
        _
      $region20: #{conv_block_pallas.5} parent=11 // pred_fallthru
        _
    $region12: #{conv_block_pallas.5} parent=5 // pred_fallthru
      _
    %p124 = scmp.lt.s32.totalorder %s9, 2
    // Predicated region
    $region21: #{conv_block_pallas.5} parent=5 // pred_check
      %p125 = pneg %p124
    $region22: #{conv_block_pallas.5} parent=5 // pred_check_branch
      %127 = sbr.rel (%p125) target = $region24
    $region23: #{conv_block_pallas.5} parent=5 // pred_region
      // Predicated region
      $region25: #{conv_block_pallas.5} parent=23 // pred_check
        %p128 = pneg %p29
      $region26: #{conv_block_pallas.5} parent=23 // pred_check_branch
        %130 = sbr.rel (%p128) target = $region28
      $region27: #{conv_block_pallas.5} parent=23 // pred_region
        %s131 = smul.u32 2, %s9
        %p132 = scmp.lt.s32.totalorder %s131, 3
        %s133 = scalar_select %p132, %s131, 3
        %s134 = smul.addr %s133, 4
        %s135 = scalar_lea.vmem %s0, %s134
        %s136 = smul.u32 2, %s9
      $region28: #{conv_block_pallas.5} parent=23 // pred_fallthru
        _
    $region24: #{conv_block_pallas.5} parent=5 // pred_fallthru
      _
    %p137 = scmp.le.s32.totalorder 1, %s9
    %p138 = scmp.lt.s32.totalorder %s9, 3
    %p139 = pnand %p137, %p138
    %p140 = pneg %p139
    // Predicated region
    $region29: #{conv_block_pallas.5} parent=5 // pred_check
      _
    $region30: #{conv_block_pallas.5} parent=5 // pred_check_branch
      %142 = sbr.rel (%p139) target = $region32
    $region31: #{conv_block_pallas.5} parent=5 // pred_region
      %s143 = ssub.s32 %s9, 1
      %s144 = smul.u32 2, %s14
      %p145 = scmp.lt.s32.totalorder %s144, 3
      %s146 = scalar_select %p145, %s144, 3
      %s147 = smul.addr %s146, 4
      %s148 = scalar_lea.vmem %s0, %s147
      %p149 = pneg %p35
      %p150 = pneg %p32
      %p151 = pneg %p56
      %p152 = pneg %p53
      %p153 = pneg %p77
      %p154 = pneg %p74
      %p155 = pneg %p103
      %p156 = pneg %p100
      %s157 = smul.u32 2, %s14
      %p158 = scmp.lt.s32.totalorder %s157, 3
      %s159 = scalar_select %p158, %s157, 3
      %s160 = smul.addr %s159, 8
      %s161 = scalar_lea.vmem %s3, %s160
      %s162 = smul.u32 2, %s14
      %p163 = scmp.lt.s32.totalorder %s162, 3
      %s164 = scalar_select %p163, %s162, 3
      %s165 = smul.addr %s164, 4
      %s166 = scalar_lea.vmem %s0, %s165
      %s167 = smul.u32 2, %s14
      %s168 = smul.u32 2, %s14
      %p169 = scmp.lt.s32.totalorder %s168, 3
      %s170 = scalar_select %p169, %s168, 3
      %s171 = smul.addr %s170, 8
      %s172 = scalar_lea.vmem %s3, %s171
      %s173 = smul.u32 2, %s14
      %v174 = vld [vmem:[%s166] sm:$0xf]
      %v175 = vld [vmem:[%s166 + $0x4] sm:$0xf]
      %v176 = vunpack.c.l.bf16 %v174
      %v177 = vunpack.c.l.bf16 %v175
      %v178 = vld [vmem:[%s1] sm:$0x1]
      %v180 = vlaneseq
      %v181 = vshrl.u32 %v180, 7
      %v182 = vsub.s32 0, %v181
      %v183 = vrot.slane %v178, %v182
      %v185 = vmul.f32 %v176, %v183
      %v186 = vmul.f32 %v177, %v183
      %v187 = vld [vmem:[%s2] sm:$0x1]
      %v189 = vlaneseq
      %v190 = vshrl.u32 %v189, 7
      %v191 = vsub.s32 0, %v190
      %v192 = vrot.slane %v187, %v191
      %v194 = vadd.f32 %v185, %v192
      %v195 = vadd.f32 %v186, %v192
      %v196 = vmax.f32 %v194, 0.0
      %v197 = vmax.f32 %v195, 0.0
      %198 = vst [vmem:[%s172] sm:$0xff] %v196
      %199 = vst [vmem:[%s172 + $0x8] sm:$0xff] %v197
      %s200 = smul.u32 2, %s14
      %p201 = scmp.lt.s32.totalorder %s200, 3
      %s202 = scalar_select %p201, %s200, 3
      %s203 = smul.addr %s202, 8
      %s204 = scalar_lea.vmem %s3, %s203
      // Predicated region
      $region33: #{conv_block_pallas.5} parent=31 // pred_check
        %p205 = pneg %p100
      $region34: #{conv_block_pallas.5} parent=31 // pred_check_branch
        %207 = sbr.rel (%p205) target = $region36
      $region35: #{conv_block_pallas.5} parent=31 // pred_region
        %s208 = smul.u32 2, %s14
      $region36: #{conv_block_pallas.5} parent=31 // pred_fallthru
        _
    $region32: #{conv_block_pallas.5} parent=5 // pred_fallthru
      _
    %p209 = scmp.le.s32.totalorder 2, %s9
    // Predicated region
    $region37: #{conv_block_pallas.5} parent=5 // pred_check
      %p210 = pneg %p209
    $region38: #{conv_block_pallas.5} parent=5 // pred_check_branch
      %212 = sbr.rel (%p210) target = $region40
    $region39: #{conv_block_pallas.5} parent=5 // pred_region
      %s213 = ssub.s32 %s9, 2
      // Predicated region
      $region41: #{conv_block_pallas.5} parent=39 // pred_check
        %p214 = pneg %p106
      $region42: #{conv_block_pallas.5} parent=39 // pred_check_branch
        %216 = sbr.rel (%p214) target = $region44
      $region43: #{conv_block_pallas.5} parent=39 // pred_region
        %s217 = smul.u32 2, %s15
        %p218 = scmp.lt.s32.totalorder %s217, 3
        %s219 = scalar_select %p218, %s217, 3
        %s220 = smul.addr %s219, 8
        %s221 = scalar_lea.vmem %s3, %s220
      $region44: #{conv_block_pallas.5} parent=39 // pred_fallthru
        _
    $region40: #{conv_block_pallas.5} parent=5 // pred_fallthru
      _
  $region6: #{conv_block_pallas.5} parent=0 // loop_footer
    %s13 = sadd.s32 1, %s9
  $region7: #{conv_block_pallas.5} parent=0 // loop_footer_branch
    %8 = sbr.rel target = $region3
  $region8: #{conv_block_pallas.5} parent=0 // loop_exit
    _

// kernel: conv_block_pallas.4
$region0: #{conv_block_pallas.4}
  #allocation0 [shape = 'u32[]', space=smem, size = 0x4, offset = 0x4, fixed_abs, tag = 'smem constant byte address 0x4 - core index']
  #allocation1 [shape = 'u32[144,128]{1,0:T(1,128)}', space=vmem, size = 0x12000, scoped, tag = 'internal scratch']
  %s0 = inlined_call_operand.vmem [shape: bf16[512,8], index: 0, kind: input, shape index: {}]
  %s1 = inlined_call_operand.vmem [shape: bf16[8,8], index: 1, kind: input, shape index: {}]
  %s2 = inlined_call_operand.vmem [shape: bf16[512,8], index: 2, kind: output, shape index: {0}]
  %s3 = inlined_call_operand.vmem [shape: f32[2,2,8], index: 3, kind: output, shape index: {1}]
  %4 = xla_tuple %s2, %s3
  %s5 = sld [smem:[#allocation0]]
  $region49: #{conv_block_pallas.4} parent=0
    _
  %s7 = ssub.s32 1, %s5
  %s8 = scalar_select 0, %s7, %s5
  loop: start=0, step=1, limit=4
  $region2: #{conv_block_pallas.4} parent=0 // loop_pre_header
    _
  $region3: #{conv_block_pallas.4} parent=0 // loop_header
    %s10 = sphi 0, %s14
    %p11 = scmp.ge.s32.totalorder %s10, 4
    %s20 = sphi 0, %s22
    %s23 = sphi 0, %s20
    %s24 = sphi 0, %s23
    %s40 = sphi 0, %s24
    %s44 = sphi 0, %s44
    %s46 = sphi 0, %s44
    %s47 = sphi 0, %s46
    %s61 = sphi 0, %s47
    %s67 = sphi 0, %s69
    %s70 = sphi 0, %s67
    %s71 = sphi 0, %s70
    %s87 = sphi 0, %s71
    %s93 = sphi 0, %s95
    %s96 = sphi 0, %s93
    %s97 = sphi 0, %s96
    %s113 = sphi 0, %s97
  $region4: #{conv_block_pallas.4} parent=0 // loop_header_branch
    %13 = sbr.rel (%p11) target = $region8
  $region5: #{conv_block_pallas.4} parent=0 // loop_body
    %s15 = ssub.s32 %s10, 1
    %s16 = ssub.s32 %s10, 2
    %s17 = sadd.s32 %s10, 1
    %s18 = ssub.s32 %s10, %s17
    %p19 = scmp.eq.s32.totalorder %s18, 0
    %s21 = sadd.s32 %s20, 1
    %s22 = scalar_select %p19, %s20, %s21
    %p25 = pneg %p19
    %p26 = scmp.eq.s32.totalorder %s10, 1
    %p27 = por %p25, %p26
    %p28 = scmp.ne.s32.totalorder %s20, %s23
    %p29 = scmp.eq.s32.totalorder %s10, 0
    %p30 = por %p28, %p29
    %p31 = scmp.ne.s32.totalorder %s20, %s23
    %p32 = scmp.eq.s32.totalorder %s15, 1
    %p33 = por %p31, %p32
    %p34 = scmp.ne.s32.totalorder %s23, %s24
    %p35 = scmp.eq.s32.totalorder %s15, 0
    %p36 = por %p34, %p35
    %p37 = scmp.ne.s32.totalorder %s23, %s24
    %p38 = scmp.eq.s32.totalorder %s16, 1
    %p39 = por %p37, %p38
    %p41 = scmp.ne.s32.totalorder %s24, %s40
    %p42 = scmp.eq.s32.totalorder %s16, 0
    %p43 = por %p41, %p42
    %s45 = sadd.s32 %s44, 1
    %p48 = scmp.eq.s32.totalorder %s10, 1
    %p49 = scmp.ne.s32.totalorder %s44, %s46
    %p50 = scmp.eq.s32.totalorder %s10, 0
    %p51 = por %p49, %p50
    %p52 = scmp.ne.s32.totalorder %s44, %s46
    %p53 = scmp.eq.s32.totalorder %s15, 1
    %p54 = por %p52, %p53
    %p55 = scmp.ne.s32.totalorder %s46, %s47
    %p56 = scmp.eq.s32.totalorder %s15, 0
    %p57 = por %p55, %p56
    %p58 = scmp.ne.s32.totalorder %s46, %s47
    %p59 = scmp.eq.s32.totalorder %s16, 1
    %p60 = por %p58, %p59
    %p62 = scmp.ne.s32.totalorder %s47, %s61
    %p63 = scmp.eq.s32.totalorder %s16, 0
    %p64 = por %p62, %p63
    %s65 = ssub.s32 %s10, %s17
    %p66 = scmp.eq.s32.totalorder %s65, 0
    %s68 = sadd.s32 %s67, 1
    %s69 = scalar_select %p66, %s67, %s68
    %p72 = pneg %p66
    %p73 = scmp.eq.s32.totalorder %s10, 1
    %p74 = por %p72, %p73
    %p75 = scmp.ne.s32.totalorder %s67, %s70
    %p76 = scmp.eq.s32.totalorder %s10, 0
    %p77 = por %p75, %p76
    %p78 = scmp.ne.s32.totalorder %s67, %s70
    %p79 = scmp.eq.s32.totalorder %s15, 1
    %p80 = por %p78, %p79
    %p81 = scmp.ne.s32.totalorder %s70, %s71
    %p82 = scmp.eq.s32.totalorder %s15, 0
    %p83 = por %p81, %p82
    %p84 = scmp.ne.s32.totalorder %s70, %s71
    %p85 = scmp.eq.s32.totalorder %s16, 1
    %p86 = por %p84, %p85
    %p88 = scmp.ne.s32.totalorder %s71, %s87
    %p89 = scmp.eq.s32.totalorder %s16, 0
    %p90 = por %p88, %p89
    %s91 = ssub.s32 %s10, %s17
    %p92 = scmp.eq.s32.totalorder %s91, 0
    %s94 = sadd.s32 %s93, 1
    %s95 = scalar_select %p92, %s93, %s94
    %p98 = pneg %p92
    %p99 = scmp.eq.s32.totalorder %s10, 1
    %p100 = por %p98, %p99
    %p101 = scmp.ne.s32.totalorder %s93, %s96
    %p102 = scmp.eq.s32.totalorder %s10, 0
    %p103 = por %p101, %p102
    %p104 = scmp.ne.s32.totalorder %s93, %s96
    %p105 = scmp.eq.s32.totalorder %s15, 1
    %p106 = por %p104, %p105
    %p107 = scmp.ne.s32.totalorder %s96, %s97
    %p108 = scmp.eq.s32.totalorder %s15, 0
    %p109 = por %p107, %p108
    %p110 = scmp.ne.s32.totalorder %s96, %s97
    %p111 = scmp.eq.s32.totalorder %s16, 1
    %p112 = por %p110, %p111
    %p114 = scmp.ne.s32.totalorder %s97, %s113
    %p115 = scmp.eq.s32.totalorder %s16, 0
    %p116 = por %p114, %p115
    %p117 = scmp.le.s32.totalorder 1, %s10
    %p118 = scmp.lt.s32.totalorder %s10, 3
    %p119 = pnand %p117, %p118
    %p120 = pneg %p119
    // Predicated region
    $region9: #{conv_block_pallas.4} parent=5 // pred_check
      _
    $region10: #{conv_block_pallas.4} parent=5 // pred_check_branch
      %122 = sbr.rel (%p119) target = $region12
    $region11: #{conv_block_pallas.4} parent=5 // pred_region
      %s123 = ssub.s32 %s10, 1
      // Predicated region
      $region13: #{conv_block_pallas.4} parent=11 // pred_check
        %p124 = pneg %p57
      $region14: #{conv_block_pallas.4} parent=11 // pred_check_branch
        %126 = sbr.rel (%p124) target = $region16
      $region15: #{conv_block_pallas.4} parent=11 // pred_region
        _
      $region16: #{conv_block_pallas.4} parent=11 // pred_fallthru
        _
    $region12: #{conv_block_pallas.4} parent=5 // pred_fallthru
      _
    %p127 = scmp.lt.s32.totalorder %s10, 2
    // Predicated region
    $region17: #{conv_block_pallas.4} parent=5 // pred_check
      %p128 = pneg %p127
    $region18: #{conv_block_pallas.4} parent=5 // pred_check_branch
      %130 = sbr.rel (%p128) target = $region20
    $region19: #{conv_block_pallas.4} parent=5 // pred_region
      // Predicated region
      $region21: #{conv_block_pallas.4} parent=19 // pred_check
        %p131 = pneg %p30
      $region22: #{conv_block_pallas.4} parent=19 // pred_check_branch
        %133 = sbr.rel (%p131) target = $region24
      $region23: #{conv_block_pallas.4} parent=19 // pred_region
        %s134 = smul.u32 32, %s10
        %p135 = scmp.lt.s32.totalorder %s134, 63
        %s136 = scalar_select %p135, %s134, 63
        %s137 = smul.addr %s136, 4
        %s138 = scalar_lea.vmem %s0, %s137
        %s139 = smul.u32 32, %s10
      $region24: #{conv_block_pallas.4} parent=19 // pred_fallthru
        _
    $region20: #{conv_block_pallas.4} parent=5 // pred_fallthru
      _
    %p140 = scmp.le.s32.totalorder 1, %s10
    %p141 = scmp.lt.s32.totalorder %s10, 3
    %p142 = pnand %p140, %p141
    %p143 = pneg %p142
    // Predicated region
    $region25: #{conv_block_pallas.4} parent=5 // pred_check
      _
    $region26: #{conv_block_pallas.4} parent=5 // pred_check_branch
      %145 = sbr.rel (%p142) target = $region28
    $region27: #{conv_block_pallas.4} parent=5 // pred_region
      %s146 = ssub.s32 %s10, 1
      %s147 = smul.u32 32, %s15
      %p148 = scmp.lt.s32.totalorder %s147, 63
      %s149 = scalar_select %p148, %s147, 63
      %s150 = smul.addr %s149, 4
      %s151 = scalar_lea.vmem %s0, %s150
      %p152 = pneg %p36
      %p153 = pneg %p33
      %p154 = pneg %p57
      %p155 = pneg %p54
      %p156 = pneg %p83
      %p157 = pneg %p80
      %s158 = smul.u32 32, %s15
      %p159 = scmp.lt.s32.totalorder %s158, 63
      %s160 = scalar_select %p159, %s158, 63
      %s161 = smul.addr %s160, 4
      %s162 = scalar_lea.vmem %s2, %s161
      %p163 = pneg %p109
      %p164 = pneg %p106
      %p165 = scmp.lt.s32.totalorder %s15, 1
      %s166 = scalar_select %p165, %s15, 1
      %s167 = smul.addr %s166, 2
      %s168 = scalar_lea.vmem %s3, %s167
      %s169 = smul.u32 32, %s15
      %p170 = scmp.lt.s32.totalorder %s169, 63
      %s171 = scalar_select %p170, %s169, 63
      %s172 = smul.addr %s171, 4
      %s173 = scalar_lea.vmem %s0, %s172
      %s174 = smul.u32 32, %s15
      %s175 = smul.u32 32, %s15
      %p176 = scmp.lt.s32.totalorder %s175, 63
      %s177 = scalar_select %p176, %s175, 63
      %s178 = smul.addr %s177, 4
      %s179 = scalar_lea.vmem %s2, %s178
      %s180 = smul.u32 32, %s15
      %p181 = scmp.lt.s32.totalorder %s15, 1
      %s182 = scalar_select %p181, %s15, 1
      %s183 = smul.addr %s182, 2
      %s184 = scalar_lea.vmem %s3, %s183
      %v186 = vld [vmem:[%s173] sm:$0xf]
      %v187 = vld [vmem:[%s173 + $0x4] sm:$0xf]
      %v188 = vld [vmem:[%s173 + $0x8] sm:$0xf]
      %v189 = vld [vmem:[%s173 + $0xc] sm:$0xf]
      %v190 = vld [vmem:[%s173 + $0x10] sm:$0xf]
      %v191 = vld [vmem:[%s173 + $0x14] sm:$0xf]
      %v192 = vld [vmem:[%s173 + $0x18] sm:$0xf]
      %v193 = vld [vmem:[%s173 + $0x1c] sm:$0xf]
      %v194 = vld [vmem:[%s173 + $0x20] sm:$0xf]
      %v195 = vld [vmem:[%s173 + $0x24] sm:$0xf]
      %v196 = vld [vmem:[%s173 + $0x28] sm:$0xf]
      %v197 = vld [vmem:[%s173 + $0x2c] sm:$0xf]
      %v198 = vld [vmem:[%s173 + $0x30] sm:$0xf]
      %v199 = vld [vmem:[%s173 + $0x34] sm:$0xf]
      %v200 = vld [vmem:[%s173 + $0x38] sm:$0xf]
      %v201 = vld [vmem:[%s173 + $0x3c] sm:$0xf]
      %v202 = vld [vmem:[%s173 + $0x40] sm:$0xf]
      %v203 = vld [vmem:[%s173 + $0x44] sm:$0xf]
      %v204 = vld [vmem:[%s173 + $0x48] sm:$0xf]
      %v205 = vld [vmem:[%s173 + $0x4c] sm:$0xf]
      %v206 = vld [vmem:[%s173 + $0x50] sm:$0xf]
      %v207 = vld [vmem:[%s173 + $0x54] sm:$0xf]
      %v208 = vld [vmem:[%s173 + $0x58] sm:$0xf]
      %v209 = vld [vmem:[%s173 + $0x5c] sm:$0xf]
      %v210 = vld [vmem:[%s173 + $0x60] sm:$0xf]
      %v211 = vld [vmem:[%s173 + $0x64] sm:$0xf]
      %v212 = vld [vmem:[%s173 + $0x68] sm:$0xf]
      %v213 = vld [vmem:[%s173 + $0x6c] sm:$0xf]
      %v214 = vld [vmem:[%s173 + $0x70] sm:$0xf]
      %v215 = vld [vmem:[%s173 + $0x74] sm:$0xf]
      %v216 = vld [vmem:[%s173 + $0x78] sm:$0xf]
      %v217 = vld [vmem:[%s173 + $0x7c] sm:$0xf]
      %v218 = vld [vmem:[%s1] sm:$0xf]
      %v251 = vunpack.c.l.b16 %v186
      %v252 = vunpack.c.l.b16 %v187
      %v253 = vunpack.c.l.b16 %v188
      %v254 = vunpack.c.l.b16 %v189
      %v255 = vunpack.c.l.b16 %v190
      %v256 = vunpack.c.l.b16 %v191
      %v257 = vunpack.c.l.b16 %v192
      %v258 = vunpack.c.l.b16 %v193
      %v259 = vunpack.c.l.b16 %v194
      %v260 = vunpack.c.l.b16 %v195
      %v261 = vunpack.c.l.b16 %v196
      %v262 = vunpack.c.l.b16 %v197
      %v263 = vunpack.c.l.b16 %v198
      %v264 = vunpack.c.l.b16 %v199
      %v265 = vunpack.c.l.b16 %v200
      %v266 = vunpack.c.l.b16 %v201
      %v267 = vunpack.c.l.b16 %v202
      %v268 = vunpack.c.l.b16 %v203
      %v269 = vunpack.c.l.b16 %v204
      %v270 = vunpack.c.l.b16 %v205
      %v271 = vunpack.c.l.b16 %v206
      %v272 = vunpack.c.l.b16 %v207
      %v273 = vunpack.c.l.b16 %v208
      %v274 = vunpack.c.l.b16 %v209
      %v275 = vunpack.c.l.b16 %v210
      %v276 = vunpack.c.l.b16 %v211
      %v277 = vunpack.c.l.b16 %v212
      %v278 = vunpack.c.l.b16 %v213
      %v279 = vunpack.c.l.b16 %v214
      %v280 = vunpack.c.l.b16 %v215
      %v281 = vunpack.c.l.b16 %v216
      %v282 = vunpack.c.l.b16 %v217
      %v283 = vpack.c.b16 %v252, %v251
      %v284 = vpack.c.b16 %v254, %v253
      %v285 = vpack.c.b16 %v256, %v255
      %v286 = vpack.c.b16 %v258, %v257
      %v287 = vpack.c.b16 %v260, %v259
      %v288 = vpack.c.b16 %v262, %v261
      %v289 = vpack.c.b16 %v264, %v263
      %v290 = vpack.c.b16 %v266, %v265
      %v291 = vpack.c.b16 %v268, %v267
      %v292 = vpack.c.b16 %v270, %v269
      %v293 = vpack.c.b16 %v272, %v271
      %v294 = vpack.c.b16 %v274, %v273
      %v295 = vpack.c.b16 %v276, %v275
      %v296 = vpack.c.b16 %v278, %v277
      %v297 = vpack.c.b16 %v280, %v279
      %v298 = vpack.c.b16 %v282, %v281
      %vm299 = vcmask 64512
      %v301 = vsel %vm299, %v283, 0
      %v304 = vsel %vm299, %v284, 0
      %v307 = vsel %vm299, %v285, 0
      %v310 = vsel %vm299, %v286, 0
      %v313 = vsel %vm299, %v287, 0
      %v316 = vsel %vm299, %v288, 0
      %v319 = vsel %vm299, %v289, 0
      %v322 = vsel %vm299, %v290, 0
      %v325 = vsel %vm299, %v291, 0
      %v328 = vsel %vm299, %v292, 0
      %v331 = vsel %vm299, %v293, 0
      %v334 = vsel %vm299, %v294, 0
      %v337 = vsel %vm299, %v295, 0
      %v340 = vsel %vm299, %v296, 0
      %v343 = vsel %vm299, %v297, 0
      %v346 = vsel %vm299, %v298, 0
      %vm348 = vcmask 1043456
      %v350 = vsel %vm348, %v218, 0
      %352 = vmatprep.subr.bf16.mxu0 0
      %353 = vmatpush1.bf16.msra.mxu0 0
      %354 = vmatprep.subr.bf16.mxu0 0
      %355 = vmatpush1.bf16.msra.mxu0 0
      %356 = vmatprep.subr.bf16.mxu0 0
      %357 = vmatpush1.bf16.msra.mxu0 0
      %358 = vmatprep.subr.bf16.mxu0 0
      %359 = vmatpush1.bf16.msra.mxu0 0
      %360 = vmatprep.subr.bf16.mxu0 0
      %361 = vmatpush1.bf16.msra.mxu0 0
      %362 = vmatprep.subr.bf16.mxu0 0
      %363 = vmatpush1.bf16.msra.mxu0 0
      %364 = vmatprep.subr.bf16.mxu0 0
      %365 = vmatpush1.bf16.msra.mxu0 0
      %366 = vmatprep.subr.bf16.mxu0 0
      %367 = vmatpush1.bf16.msra.mxu0 %v350
      %368 = vmatprep.subr.bf16.mxu0 0
      %369 = vmatpush2.bf16.msra.mxu0 0
      %370 = vmatprep.subr.bf16.mxu0 0
      %371 = vmatpush2.bf16.msra.mxu0 0
      %372 = vmatprep.subr.bf16.mxu0 0
      %373 = vmatpush2.bf16.msra.mxu0 0
      %374 = vmatprep.subr.bf16.mxu0 0
      %375 = vmatpush2.bf16.msra.mxu0 0
      %376 = vmatprep.subr.bf16.mxu0 0
      %377 = vmatpush2.bf16.msra.mxu0 0
      %378 = vmatprep.subr.bf16.mxu0 0
      %379 = vmatpush2.bf16.msra.mxu0 0
      %380 = vmatprep.subr.bf16.mxu0 0
      %381 = vmatpush2.bf16.msra.mxu0 0
      %382 = vmatprep.subr.bf16.mxu0 0
      %383 = vmatpush2.bf16.msra.mxu0 0
      %384 = vmatprep.mubr.bf16.mxu0 0
      %385 = vmatmul.mubr.bf16.gmra.mxu0 %v301
      %v386 = vpop.f32.mrf.mxu0
      %v387 = vadd.f32 0.0, %v386
      %v388 = vpop.f32.mrf.mxu0
      %v389 = vpop.f32.mrf.mxu0
      %v390 = vadd.f32 0.0, %v389
      %v391 = vpop.f32.mrf.mxu0
      %392 = vmatprep.mubr.bf16.mxu0 0
      %393 = vmatmul.mubr.bf16.gmra.mxu0 %v304
      %v394 = vpop.f32.mrf.mxu0
      %v395 = vadd.f32 0.0, %v394
      %v396 = vpop.f32.mrf.mxu0
      %v397 = vpop.f32.mrf.mxu0
      %v398 = vadd.f32 0.0, %v397
      %v399 = vpop.f32.mrf.mxu0
      %400 = vmatprep.mubr.bf16.mxu0 0
      %401 = vmatmul.mubr.bf16.gmra.mxu0 %v307
      %v402 = vpop.f32.mrf.mxu0
      %v403 = vadd.f32 0.0, %v402
      %v404 = vpop.f32.mrf.mxu0
      %v405 = vpop.f32.mrf.mxu0
      %v406 = vadd.f32 0.0, %v405
      %v407 = vpop.f32.mrf.mxu0
      %408 = vmatprep.mubr.bf16.mxu0 0
      %409 = vmatmul.mubr.bf16.gmra.mxu0 %v310
      %v410 = vpop.f32.mrf.mxu0
      %v411 = vadd.f32 0.0, %v410
      %v412 = vpop.f32.mrf.mxu0
      %v413 = vpop.f32.mrf.mxu0
      %v414 = vadd.f32 0.0, %v413
      %v415 = vpop.f32.mrf.mxu0
      %416 = vmatprep.mubr.bf16.mxu0 0
      %417 = vmatmul.mubr.bf16.gmra.mxu0 %v313
      %v418 = vpop.f32.mrf.mxu0
      %v419 = vadd.f32 0.0, %v418
      %v420 = vpop.f32.mrf.mxu0
      %v421 = vpop.f32.mrf.mxu0
      %v422 = vadd.f32 0.0, %v421
      %v423 = vpop.f32.mrf.mxu0
      %424 = vmatprep.mubr.bf16.mxu0 0
      %425 = vmatmul.mubr.bf16.gmra.mxu0 %v316
      %v426 = vpop.f32.mrf.mxu0
      %v427 = vadd.f32 0.0, %v426
      %v428 = vpop.f32.mrf.mxu0
      %v429 = vpop.f32.mrf.mxu0
      %v430 = vadd.f32 0.0, %v429
      %v431 = vpop.f32.mrf.mxu0
      %432 = vmatprep.mubr.bf16.mxu0 0
      %433 = vmatmul.mubr.bf16.gmra.mxu0 %v319
      %v434 = vpop.f32.mrf.mxu0
      %v435 = vadd.f32 0.0, %v434
      %v436 = vpop.f32.mrf.mxu0
      %v437 = vpop.f32.mrf.mxu0
      %v438 = vadd.f32 0.0, %v437
      %v439 = vpop.f32.mrf.mxu0
      %440 = vmatprep.mubr.bf16.mxu0 0
      %441 = vmatmul.mubr.bf16.gmra.mxu0 %v322
      %v442 = vpop.f32.mrf.mxu0
      %v443 = vadd.f32 0.0, %v442
      %v444 = vpop.f32.mrf.mxu0
      %v445 = vpop.f32.mrf.mxu0
      %v446 = vadd.f32 0.0, %v445
      %v447 = vpop.f32.mrf.mxu0
      %448 = vmatprep.mubr.bf16.mxu0 0
      %449 = vmatmul.mubr.bf16.gmra.mxu0 %v325
      %v450 = vpop.f32.mrf.mxu0
      %v451 = vadd.f32 0.0, %v450
      %v452 = vpop.f32.mrf.mxu0
      %v453 = vpop.f32.mrf.mxu0
      %v454 = vadd.f32 0.0, %v453
      %v455 = vpop.f32.mrf.mxu0
      %456 = vmatprep.mubr.bf16.mxu0 0
      %457 = vmatmul.mubr.bf16.gmra.mxu0 %v328
      %v458 = vpop.f32.mrf.mxu0
      %v459 = vadd.f32 0.0, %v458
      %v460 = vpop.f32.mrf.mxu0
      %v461 = vpop.f32.mrf.mxu0
      %v462 = vadd.f32 0.0, %v461
      %v463 = vpop.f32.mrf.mxu0
      %464 = vmatprep.mubr.bf16.mxu0 0
      %465 = vmatmul.mubr.bf16.gmra.mxu0 %v331
      %v466 = vpop.f32.mrf.mxu0
      %v467 = vadd.f32 0.0, %v466
      %v468 = vpop.f32.mrf.mxu0
      %v469 = vpop.f32.mrf.mxu0
      %v470 = vadd.f32 0.0, %v469
      %v471 = vpop.f32.mrf.mxu0
      %472 = vmatprep.mubr.bf16.mxu0 0
      %473 = vmatmul.mubr.bf16.gmra.mxu0 %v334
      %v474 = vpop.f32.mrf.mxu0
      %v475 = vadd.f32 0.0, %v474
      %v476 = vpop.f32.mrf.mxu0
      %v477 = vpop.f32.mrf.mxu0
      %v478 = vadd.f32 0.0, %v477
      %v479 = vpop.f32.mrf.mxu0
      %480 = vmatprep.mubr.bf16.mxu0 0
      %481 = vmatmul.mubr.bf16.gmra.mxu0 %v337
      %v482 = vpop.f32.mrf.mxu0
      %v483 = vadd.f32 0.0, %v482
      %v484 = vpop.f32.mrf.mxu0
      %v485 = vpop.f32.mrf.mxu0
      %v486 = vadd.f32 0.0, %v485
      %v487 = vpop.f32.mrf.mxu0
      %488 = vmatprep.mubr.bf16.mxu0 0
      %489 = vmatmul.mubr.bf16.gmra.mxu0 %v340
      %v490 = vpop.f32.mrf.mxu0
      %v491 = vadd.f32 0.0, %v490
      %v492 = vpop.f32.mrf.mxu0
      %v493 = vpop.f32.mrf.mxu0
      %v494 = vadd.f32 0.0, %v493
      %v495 = vpop.f32.mrf.mxu0
      %496 = vmatprep.mubr.bf16.mxu0 0
      %497 = vmatmul.mubr.bf16.gmra.mxu0 %v343
      %v498 = vpop.f32.mrf.mxu0
      %v499 = vadd.f32 0.0, %v498
      %v500 = vpop.f32.mrf.mxu0
      %v501 = vpop.f32.mrf.mxu0
      %v502 = vadd.f32 0.0, %v501
      %v503 = vpop.f32.mrf.mxu0
      %504 = vmatprep.mubr.bf16.mxu0 0
      %505 = vmatmul.mubr.bf16.gmra.mxu0 %v346
      %v506 = vpop.f32.mrf.mxu0
      %v507 = vadd.f32 0.0, %v506
      %v508 = vpop.f32.mrf.mxu0
      %v509 = vpop.f32.mrf.mxu0
      %v510 = vadd.f32 0.0, %v509
      %v511 = vpop.f32.mrf.mxu0
      %512 = vdwg.mxu0
      %v513 = vpack.c.bf16 %v390, %v387
      %v514 = vpack.c.bf16 %v398, %v395
      %v515 = vpack.c.bf16 %v406, %v403
      %v516 = vpack.c.bf16 %v414, %v411
      %v517 = vpack.c.bf16 %v422, %v419
      %v518 = vpack.c.bf16 %v430, %v427
      %v519 = vpack.c.bf16 %v438, %v435
      %v520 = vpack.c.bf16 %v446, %v443
      %v521 = vpack.c.bf16 %v454, %v451
      %v522 = vpack.c.bf16 %v462, %v459
      %v523 = vpack.c.bf16 %v470, %v467
      %v524 = vpack.c.bf16 %v478, %v475
      %v525 = vpack.c.bf16 %v486, %v483
      %v526 = vpack.c.bf16 %v494, %v491
      %v527 = vpack.c.bf16 %v502, %v499
      %v528 = vpack.c.bf16 %v510, %v507
      %v545 = vunpack.c.l.b16 %v513
      %v546 = vunpack.c.h.b16 %v513
      %v547 = vunpack.c.l.b16 %v514
      %v548 = vunpack.c.h.b16 %v514
      %v549 = vunpack.c.l.b16 %v515
      %v550 = vunpack.c.h.b16 %v515
      %v551 = vunpack.c.l.b16 %v516
      %v552 = vunpack.c.h.b16 %v516
      %v553 = vunpack.c.l.b16 %v517
      %v554 = vunpack.c.h.b16 %v517
      %v555 = vunpack.c.l.b16 %v518
      %v556 = vunpack.c.h.b16 %v518
      %v557 = vunpack.c.l.b16 %v519
      %v558 = vunpack.c.h.b16 %v519
      %v559 = vunpack.c.l.b16 %v520
      %v560 = vunpack.c.h.b16 %v520
      %v561 = vunpack.c.l.b16 %v521
      %v562 = vunpack.c.h.b16 %v521
      %v563 = vunpack.c.l.b16 %v522
      %v564 = vunpack.c.h.b16 %v522
      %v565 = vunpack.c.l.b16 %v523
      %v566 = vunpack.c.h.b16 %v523
      %v567 = vunpack.c.l.b16 %v524
      %v568 = vunpack.c.h.b16 %v524
      %v569 = vunpack.c.l.b16 %v525
      %v570 = vunpack.c.h.b16 %v525
      %v571 = vunpack.c.l.b16 %v526
      %v572 = vunpack.c.h.b16 %v526
      %v573 = vunpack.c.l.b16 %v527
      %v574 = vunpack.c.h.b16 %v527
      %v575 = vunpack.c.l.b16 %v528
      %v576 = vunpack.c.h.b16 %v528
      %v577 = vpack.c.b16 %v545, %v545
      %v578 = vpack.c.b16 %v546, %v546
      %v579 = vpack.c.b16 %v547, %v547
      %v580 = vpack.c.b16 %v548, %v548
      %v581 = vpack.c.b16 %v549, %v549
      %v582 = vpack.c.b16 %v550, %v550
      %v583 = vpack.c.b16 %v551, %v551
      %v584 = vpack.c.b16 %v552, %v552
      %v585 = vpack.c.b16 %v553, %v553
      %v586 = vpack.c.b16 %v554, %v554
      %v587 = vpack.c.b16 %v555, %v555
      %v588 = vpack.c.b16 %v556, %v556
      %v589 = vpack.c.b16 %v557, %v557
      %v590 = vpack.c.b16 %v558, %v558
      %v591 = vpack.c.b16 %v559, %v559
      %v592 = vpack.c.b16 %v560, %v560
      %v593 = vpack.c.b16 %v561, %v561
      %v594 = vpack.c.b16 %v562, %v562
      %v595 = vpack.c.b16 %v563, %v563
      %v596 = vpack.c.b16 %v564, %v564
      %v597 = vpack.c.b16 %v565, %v565
      %v598 = vpack.c.b16 %v566, %v566
      %v599 = vpack.c.b16 %v567, %v567
      %v600 = vpack.c.b16 %v568, %v568
      %v601 = vpack.c.b16 %v569, %v569
      %v602 = vpack.c.b16 %v570, %v570
      %v603 = vpack.c.b16 %v571, %v571
      %v604 = vpack.c.b16 %v572, %v572
      %v605 = vpack.c.b16 %v573, %v573
      %v606 = vpack.c.b16 %v574, %v574
      %v607 = vpack.c.b16 %v575, %v575
      %v608 = vpack.c.b16 %v576, %v576
      %vm641 = vcmask 60416
      %642 = vst.msk [vmem:[%s179] sm:$0xf] %vm641, %v577
      %643 = vst.msk [vmem:[%s179 + $0x4] sm:$0xf] %vm641, %v578
      %644 = vst.msk [vmem:[%s179 + $0x8] sm:$0xf] %vm641, %v579
      %645 = vst.msk [vmem:[%s179 + $0xc] sm:$0xf] %vm641, %v580
      %646 = vst.msk [vmem:[%s179 + $0x10] sm:$0xf] %vm641, %v581
      %647 = vst.msk [vmem:[%s179 + $0x14] sm:$0xf] %vm641, %v582
      %648 = vst.msk [vmem:[%s179 + $0x18] sm:$0xf] %vm641, %v583
      %649 = vst.msk [vmem:[%s179 + $0x1c] sm:$0xf] %vm641, %v584
      %650 = vst.msk [vmem:[%s179 + $0x20] sm:$0xf] %vm641, %v585
      %651 = vst.msk [vmem:[%s179 + $0x24] sm:$0xf] %vm641, %v586
      %652 = vst.msk [vmem:[%s179 + $0x28] sm:$0xf] %vm641, %v587
      %653 = vst.msk [vmem:[%s179 + $0x2c] sm:$0xf] %vm641, %v588
      %654 = vst.msk [vmem:[%s179 + $0x30] sm:$0xf] %vm641, %v589
      %655 = vst.msk [vmem:[%s179 + $0x34] sm:$0xf] %vm641, %v590
      %656 = vst.msk [vmem:[%s179 + $0x38] sm:$0xf] %vm641, %v591
      %657 = vst.msk [vmem:[%s179 + $0x3c] sm:$0xf] %vm641, %v592
      %658 = vst.msk [vmem:[%s179 + $0x40] sm:$0xf] %vm641, %v593
      %659 = vst.msk [vmem:[%s179 + $0x44] sm:$0xf] %vm641, %v594
      %660 = vst.msk [vmem:[%s179 + $0x48] sm:$0xf] %vm641, %v595
      %661 = vst.msk [vmem:[%s179 + $0x4c] sm:$0xf] %vm641, %v596
      %662 = vst.msk [vmem:[%s179 + $0x50] sm:$0xf] %vm641, %v597
      %663 = vst.msk [vmem:[%s179 + $0x54] sm:$0xf] %vm641, %v598
      %664 = vst.msk [vmem:[%s179 + $0x58] sm:$0xf] %vm641, %v599
      %665 = vst.msk [vmem:[%s179 + $0x5c] sm:$0xf] %vm641, %v600
      %666 = vst.msk [vmem:[%s179 + $0x60] sm:$0xf] %vm641, %v601
      %667 = vst.msk [vmem:[%s179 + $0x64] sm:$0xf] %vm641, %v602
      %668 = vst.msk [vmem:[%s179 + $0x68] sm:$0xf] %vm641, %v603
      %669 = vst.msk [vmem:[%s179 + $0x6c] sm:$0xf] %vm641, %v604
      %670 = vst.msk [vmem:[%s179 + $0x70] sm:$0xf] %vm641, %v605
      %671 = vst.msk [vmem:[%s179 + $0x74] sm:$0xf] %vm641, %v606
      %672 = vst.msk [vmem:[%s179 + $0x78] sm:$0xf] %vm641, %v607
      %673 = vst.msk [vmem:[%s179 + $0x7c] sm:$0xf] %vm641, %v608
      %v674 = vsel %vm299, %v387, 0.0
      %v675 = vsel %vm299, %v390, 0.0
      %v676 = vadd.f32 %v674, %v675
      %v677 = vsel %vm299, %v395, 0.0
      %v678 = vadd.f32 %v676, %v677
      %v679 = vsel %vm299, %v398, 0.0
      %v680 = vadd.f32 %v678, %v679
      %v681 = vsel %vm299, %v403, 0.0
      %v682 = vadd.f32 %v680, %v681
      %v683 = vsel %vm299, %v406, 0.0
      %v684 = vadd.f32 %v682, %v683
      %v685 = vsel %vm299, %v411, 0.0
      %v686 = vadd.f32 %v684, %v685
      %v687 = vsel %vm299, %v414, 0.0
      %v688 = vadd.f32 %v686, %v687
      %v689 = vsel %vm299, %v419, 0.0
      %v690 = vadd.f32 %v688, %v689
      %v691 = vsel %vm299, %v422, 0.0
      %v692 = vadd.f32 %v690, %v691
      %v693 = vsel %vm299, %v427, 0.0
      %v694 = vadd.f32 %v692, %v693
      %v695 = vsel %vm299, %v430, 0.0
      %v696 = vadd.f32 %v694, %v695
      %v697 = vsel %vm299, %v435, 0.0
      %v698 = vadd.f32 %v696, %v697
      %v699 = vsel %vm299, %v438, 0.0
      %v700 = vadd.f32 %v698, %v699
      %v701 = vsel %vm299, %v443, 0.0
      %v702 = vadd.f32 %v700, %v701
      %v703 = vsel %vm299, %v446, 0.0
      %v704 = vadd.f32 %v702, %v703
      %v705 = vsel %vm299, %v451, 0.0
      %v706 = vadd.f32 %v704, %v705
      %v707 = vsel %vm299, %v454, 0.0
      %v708 = vadd.f32 %v706, %v707
      %v709 = vsel %vm299, %v459, 0.0
      %v710 = vadd.f32 %v708, %v709
      %v711 = vsel %vm299, %v462, 0.0
      %v712 = vadd.f32 %v710, %v711
      %v713 = vsel %vm299, %v467, 0.0
      %v714 = vadd.f32 %v712, %v713
      %v715 = vsel %vm299, %v470, 0.0
      %v716 = vadd.f32 %v714, %v715
      %v717 = vsel %vm299, %v475, 0.0
      %v718 = vadd.f32 %v716, %v717
      %v719 = vsel %vm299, %v478, 0.0
      %v720 = vadd.f32 %v718, %v719
      %v721 = vsel %vm299, %v483, 0.0
      %v722 = vadd.f32 %v720, %v721
      %v723 = vsel %vm299, %v486, 0.0
      %v724 = vadd.f32 %v722, %v723
      %v725 = vsel %vm299, %v491, 0.0
      %v726 = vadd.f32 %v724, %v725
      %v727 = vsel %vm299, %v494, 0.0
      %v728 = vadd.f32 %v726, %v727
      %v729 = vsel %vm299, %v499, 0.0
      %v730 = vadd.f32 %v728, %v729
      %v731 = vsel %vm299, %v502, 0.0
      %v732 = vadd.f32 %v730, %v731
      %v733 = vsel %vm299, %v507, 0.0
      %v734 = vadd.f32 %v732, %v733
      %v735 = vsel %vm299, %v510, 0.0
      %v736 = vadd.f32 %v734, %v735
      %v737 = vrot.slane %v736, 4
      %v738 = vadd.f32 %v736, %v737
      %v739 = vrot.slane %v738, 2
      %v740 = vadd.f32 %v738, %v739
      %v741 = vrot.slane %v740, 1
      %v742 = vadd.f32 %v740, %v741
      %v743 = vmul.f32 %v387, %v387
      %v744 = vmul.f32 %v390, %v390
      %v745 = vmul.f32 %v395, %v395
      %v746 = vmul.f32 %v398, %v398
      %v747 = vmul.f32 %v403, %v403
      %v748 = vmul.f32 %v406, %v406
      %v749 = vmul.f32 %v411, %v411
      %v750 = vmul.f32 %v414, %v414
      %v751 = vmul.f32 %v419, %v419
      %v752 = vmul.f32 %v422, %v422
      %v753 = vmul.f32 %v427, %v427
      %v754 = vmul.f32 %v430, %v430
      %v755 = vmul.f32 %v435, %v435
      %v756 = vmul.f32 %v438, %v438
      %v757 = vmul.f32 %v443, %v443
      %v758 = vmul.f32 %v446, %v446
      %v759 = vmul.f32 %v451, %v451
      %v760 = vmul.f32 %v454, %v454
      %v761 = vmul.f32 %v459, %v459
      %v762 = vmul.f32 %v462, %v462
      %v763 = vmul.f32 %v467, %v467
      %v764 = vmul.f32 %v470, %v470
      %v765 = vmul.f32 %v475, %v475
      %v766 = vmul.f32 %v478, %v478
      %v767 = vmul.f32 %v483, %v483
      %v768 = vmul.f32 %v486, %v486
      %v769 = vmul.f32 %v491, %v491
      %v770 = vmul.f32 %v494, %v494
      %v771 = vmul.f32 %v499, %v499
      %v772 = vmul.f32 %v502, %v502
      %v773 = vmul.f32 %v507, %v507
      %v774 = vmul.f32 %v510, %v510
      %v775 = vsel %vm299, %v743, 0.0
      %v776 = vsel %vm299, %v744, 0.0
      %v777 = vadd.f32 %v775, %v776
      %v778 = vsel %vm299, %v745, 0.0
      %v779 = vadd.f32 %v777, %v778
      %v780 = vsel %vm299, %v746, 0.0
      %v781 = vadd.f32 %v779, %v780
      %v782 = vsel %vm299, %v747, 0.0
      %v783 = vadd.f32 %v781, %v782
      %v784 = vsel %vm299, %v748, 0.0
      %v785 = vadd.f32 %v783, %v784
      %v786 = vsel %vm299, %v749, 0.0
      %v787 = vadd.f32 %v785, %v786
      %v788 = vsel %vm299, %v750, 0.0
      %v789 = vadd.f32 %v787, %v788
      %v790 = vsel %vm299, %v751, 0.0
      %v791 = vadd.f32 %v789, %v790
      %v792 = vsel %vm299, %v752, 0.0
      %v793 = vadd.f32 %v791, %v792
      %v794 = vsel %vm299, %v753, 0.0
      %v795 = vadd.f32 %v793, %v794
      %v796 = vsel %vm299, %v754, 0.0
      %v797 = vadd.f32 %v795, %v796
      %v798 = vsel %vm299, %v755, 0.0
      %v799 = vadd.f32 %v797, %v798
      %v800 = vsel %vm299, %v756, 0.0
      %v801 = vadd.f32 %v799, %v800
      %v802 = vsel %vm299, %v757, 0.0
      %v803 = vadd.f32 %v801, %v802
      %v804 = vsel %vm299, %v758, 0.0
      %v805 = vadd.f32 %v803, %v804
      %v806 = vsel %vm299, %v759, 0.0
      %v807 = vadd.f32 %v805, %v806
      %v808 = vsel %vm299, %v760, 0.0
      %v809 = vadd.f32 %v807, %v808
      %v810 = vsel %vm299, %v761, 0.0
      %v811 = vadd.f32 %v809, %v810
      %v812 = vsel %vm299, %v762, 0.0
      %v813 = vadd.f32 %v811, %v812
      %v814 = vsel %vm299, %v763, 0.0
      %v815 = vadd.f32 %v813, %v814
      %v816 = vsel %vm299, %v764, 0.0
      %v817 = vadd.f32 %v815, %v816
      %v818 = vsel %vm299, %v765, 0.0
      %v819 = vadd.f32 %v817, %v818
      %v820 = vsel %vm299, %v766, 0.0
      %v821 = vadd.f32 %v819, %v820
      %v822 = vsel %vm299, %v767, 0.0
      %v823 = vadd.f32 %v821, %v822
      %v824 = vsel %vm299, %v768, 0.0
      %v825 = vadd.f32 %v823, %v824
      %v826 = vsel %vm299, %v769, 0.0
      %v827 = vadd.f32 %v825, %v826
      %v828 = vsel %vm299, %v770, 0.0
      %v829 = vadd.f32 %v827, %v828
      %v830 = vsel %vm299, %v771, 0.0
      %v831 = vadd.f32 %v829, %v830
      %v832 = vsel %vm299, %v772, 0.0
      %v833 = vadd.f32 %v831, %v832
      %v834 = vsel %vm299, %v773, 0.0
      %v835 = vadd.f32 %v833, %v834
      %v836 = vsel %vm299, %v774, 0.0
      %v837 = vadd.f32 %v835, %v836
      %v838 = vrot.slane %v837, 4
      %v839 = vadd.f32 %v837, %v838
      %v840 = vrot.slane %v839, 2
      %v841 = vadd.f32 %v839, %v840
      %v842 = vrot.slane %v841, 1
      %v843 = vadd.f32 %v841, %v842
      %vm844 = vcmask 1040384
      %v845 = vsel %vm844, %v742, %v843
      %vm846 = vcmask 58368
      %847 = vst.msk [vmem:[%s184] sm:$0x3] %vm846, %v845
      %s848 = smul.u32 32, %s15
      %p849 = scmp.lt.s32.totalorder %s848, 63
      %s850 = scalar_select %p849, %s848, 63
      %s851 = smul.addr %s850, 4
      %s852 = scalar_lea.vmem %s2, %s851
      %p853 = scmp.lt.s32.totalorder %s15, 1
      %s854 = scalar_select %p853, %s15, 1
      %s855 = smul.addr %s854, 2
      %s856 = scalar_lea.vmem %s3, %s855
      // Predicated region
      $region29: #{conv_block_pallas.4} parent=27 // pred_check
        %p857 = pneg %p80
      $region30: #{conv_block_pallas.4} parent=27 // pred_check_branch
        %859 = sbr.rel (%p857) target = $region32
      $region31: #{conv_block_pallas.4} parent=27 // pred_region
        %s860 = smul.u32 32, %s15
      $region32: #{conv_block_pallas.4} parent=27 // pred_fallthru
        _
      // Predicated region
      $region33: #{conv_block_pallas.4} parent=27 // pred_check
        %p861 = pneg %p106
      $region34: #{conv_block_pallas.4} parent=27 // pred_check_branch
        %863 = sbr.rel (%p861) target = $region36
      $region35: #{conv_block_pallas.4} parent=27 // pred_region
        _
      $region36: #{conv_block_pallas.4} parent=27 // pred_fallthru
        _
    $region28: #{conv_block_pallas.4} parent=5 // pred_fallthru
      _
    %p864 = scmp.le.s32.totalorder 2, %s10
    // Predicated region
    $region37: #{conv_block_pallas.4} parent=5 // pred_check
      %p865 = pneg %p864
    $region38: #{conv_block_pallas.4} parent=5 // pred_check_branch
      %867 = sbr.rel (%p865) target = $region40
    $region39: #{conv_block_pallas.4} parent=5 // pred_region
      %s868 = ssub.s32 %s10, 2
      // Predicated region
      $region41: #{conv_block_pallas.4} parent=39 // pred_check
        %p869 = pneg %p86
      $region42: #{conv_block_pallas.4} parent=39 // pred_check_branch
        %871 = sbr.rel (%p869) target = $region44
      $region43: #{conv_block_pallas.4} parent=39 // pred_region
        %s872 = smul.u32 32, %s16
        %p873 = scmp.lt.s32.totalorder %s872, 63
        %s874 = scalar_select %p873, %s872, 63
        %s875 = smul.addr %s874, 4
        %s876 = scalar_lea.vmem %s2, %s875
      $region44: #{conv_block_pallas.4} parent=39 // pred_fallthru
        _
      // Predicated region
      $region45: #{conv_block_pallas.4} parent=39 // pred_check
        %p877 = pneg %p112
      $region46: #{conv_block_pallas.4} parent=39 // pred_check_branch
        %879 = sbr.rel (%p877) target = $region48
      $region47: #{conv_block_pallas.4} parent=39 // pred_region
        %p880 = scmp.lt.s32.totalorder %s16, 1
        %s881 = scalar_select %p880, %s16, 1
        %s882 = smul.addr %s881, 2
        %s883 = scalar_lea.vmem %s3, %s882
      $region48: #{conv_block_pallas.4} parent=39 // pred_fallthru
        _
    $region40: #{conv_block_pallas.4} parent=5 // pred_fallthru
      _
  $region6: #{conv_block_pallas.4} parent=0 // loop_footer
    %s14 = sadd.s32 1, %s10
  $region7: #{conv_block_pallas.4} parent=0 // loop_footer_branch
    %9 = sbr.rel target = $region3
  $region8: #{conv_block_pallas.4} parent=0 // loop_exit
    _

// kernel: conv_block_pallas.7
$region0: #{conv_block_pallas.7}
  #allocation0 [shape = 'u32[]', space=smem, size = 0x4, offset = 0x4, fixed_abs, tag = 'smem constant byte address 0x4 - core index']
  #allocation1 [shape = 'u32[144,128]{1,0:T(1,128)}', space=vmem, size = 0x12000, scoped, tag = 'internal scratch']
  %s0 = inlined_call_operand.vmem [shape: bf16[512,8], index: 0, kind: input, shape index: {}]
  %s1 = inlined_call_operand.vmem [shape: f32[1,8], index: 1, kind: input, shape index: {}]
  %s2 = inlined_call_operand.vmem [shape: f32[1,8], index: 2, kind: input, shape index: {}]
  %s3 = inlined_call_operand.vmem [shape: bf16[8,8], index: 3, kind: input, shape index: {}]
  %s4 = inlined_call_operand.vmem [shape: f32[1,8], index: 4, kind: input, shape index: {}]
  %s5 = inlined_call_operand.vmem [shape: f32[512,8], index: 5, kind: output, shape index: {}]
  %s6 = sld [smem:[#allocation0]]
  $region53: #{conv_block_pallas.7} parent=0
    _
  %s8 = ssub.s32 1, %s6
  %s9 = scalar_select 0, %s8, %s6
  loop: start=0, step=1, limit=4
  $region2: #{conv_block_pallas.7} parent=0 // loop_pre_header
    _
  $region3: #{conv_block_pallas.7} parent=0 // loop_header
    %s11 = sphi 0, %s15
    %p12 = scmp.ge.s32.totalorder %s11, 4
    %s21 = sphi 0, %s23
    %s24 = sphi 0, %s21
    %s25 = sphi 0, %s24
    %s41 = sphi 0, %s25
    %s45 = sphi 0, %s45
    %s47 = sphi 0, %s45
    %s48 = sphi 0, %s47
    %s62 = sphi 0, %s48
    %s66 = sphi 0, %s66
    %s68 = sphi 0, %s66
    %s69 = sphi 0, %s68
    %s83 = sphi 0, %s69
    %s87 = sphi 0, %s87
    %s89 = sphi 0, %s87
    %s90 = sphi 0, %s89
    %s104 = sphi 0, %s90
    %s108 = sphi 0, %s108
    %s110 = sphi 0, %s108
    %s111 = sphi 0, %s110
    %s125 = sphi 0, %s111
    %s131 = sphi 0, %s133
    %s134 = sphi 0, %s131
    %s135 = sphi 0, %s134
    %s151 = sphi 0, %s135
  $region4: #{conv_block_pallas.7} parent=0 // loop_header_branch
    %14 = sbr.rel (%p12) target = $region8
  $region5: #{conv_block_pallas.7} parent=0 // loop_body
    %s16 = ssub.s32 %s11, 1
    %s17 = ssub.s32 %s11, 2
    %s18 = sadd.s32 %s11, 1
    %s19 = ssub.s32 %s11, %s18
    %p20 = scmp.eq.s32.totalorder %s19, 0
    %s22 = sadd.s32 %s21, 1
    %s23 = scalar_select %p20, %s21, %s22
    %p26 = pneg %p20
    %p27 = scmp.eq.s32.totalorder %s11, 1
    %p28 = por %p26, %p27
    %p29 = scmp.ne.s32.totalorder %s21, %s24
    %p30 = scmp.eq.s32.totalorder %s11, 0
    %p31 = por %p29, %p30
    %p32 = scmp.ne.s32.totalorder %s21, %s24
    %p33 = scmp.eq.s32.totalorder %s16, 1
    %p34 = por %p32, %p33
    %p35 = scmp.ne.s32.totalorder %s24, %s25
    %p36 = scmp.eq.s32.totalorder %s16, 0
    %p37 = por %p35, %p36
    %p38 = scmp.ne.s32.totalorder %s24, %s25
    %p39 = scmp.eq.s32.totalorder %s17, 1
    %p40 = por %p38, %p39
    %p42 = scmp.ne.s32.totalorder %s25, %s41
    %p43 = scmp.eq.s32.totalorder %s17, 0
    %p44 = por %p42, %p43
    %s46 = sadd.s32 %s45, 1
    %p49 = scmp.eq.s32.totalorder %s11, 1
    %p50 = scmp.ne.s32.totalorder %s45, %s47
    %p51 = scmp.eq.s32.totalorder %s11, 0
    %p52 = por %p50, %p51
    %p53 = scmp.ne.s32.totalorder %s45, %s47
    %p54 = scmp.eq.s32.totalorder %s16, 1
    %p55 = por %p53, %p54
    %p56 = scmp.ne.s32.totalorder %s47, %s48
    %p57 = scmp.eq.s32.totalorder %s16, 0
    %p58 = por %p56, %p57
    %p59 = scmp.ne.s32.totalorder %s47, %s48
    %p60 = scmp.eq.s32.totalorder %s17, 1
    %p61 = por %p59, %p60
    %p63 = scmp.ne.s32.totalorder %s48, %s62
    %p64 = scmp.eq.s32.totalorder %s17, 0
    %p65 = por %p63, %p64
    %s67 = sadd.s32 %s66, 1
    %p70 = scmp.eq.s32.totalorder %s11, 1
    %p71 = scmp.ne.s32.totalorder %s66, %s68
    %p72 = scmp.eq.s32.totalorder %s11, 0
    %p73 = por %p71, %p72
    %p74 = scmp.ne.s32.totalorder %s66, %s68
    %p75 = scmp.eq.s32.totalorder %s16, 1
    %p76 = por %p74, %p75
    %p77 = scmp.ne.s32.totalorder %s68, %s69
    %p78 = scmp.eq.s32.totalorder %s16, 0
    %p79 = por %p77, %p78
    %p80 = scmp.ne.s32.totalorder %s68, %s69
    %p81 = scmp.eq.s32.totalorder %s17, 1
    %p82 = por %p80, %p81
    %p84 = scmp.ne.s32.totalorder %s69, %s83
    %p85 = scmp.eq.s32.totalorder %s17, 0
    %p86 = por %p84, %p85
    %s88 = sadd.s32 %s87, 1
    %p91 = scmp.eq.s32.totalorder %s11, 1
    %p92 = scmp.ne.s32.totalorder %s87, %s89
    %p93 = scmp.eq.s32.totalorder %s11, 0
    %p94 = por %p92, %p93
    %p95 = scmp.ne.s32.totalorder %s87, %s89
    %p96 = scmp.eq.s32.totalorder %s16, 1
    %p97 = por %p95, %p96
    %p98 = scmp.ne.s32.totalorder %s89, %s90
    %p99 = scmp.eq.s32.totalorder %s16, 0
    %p100 = por %p98, %p99
    %p101 = scmp.ne.s32.totalorder %s89, %s90
    %p102 = scmp.eq.s32.totalorder %s17, 1
    %p103 = por %p101, %p102
    %p105 = scmp.ne.s32.totalorder %s90, %s104
    %p106 = scmp.eq.s32.totalorder %s17, 0
    %p107 = por %p105, %p106
    %s109 = sadd.s32 %s108, 1
    %p112 = scmp.eq.s32.totalorder %s11, 1
    %p113 = scmp.ne.s32.totalorder %s108, %s110
    %p114 = scmp.eq.s32.totalorder %s11, 0
    %p115 = por %p113, %p114
    %p116 = scmp.ne.s32.totalorder %s108, %s110
    %p117 = scmp.eq.s32.totalorder %s16, 1
    %p118 = por %p116, %p117
    %p119 = scmp.ne.s32.totalorder %s110, %s111
    %p120 = scmp.eq.s32.totalorder %s16, 0
    %p121 = por %p119, %p120
    %p122 = scmp.ne.s32.totalorder %s110, %s111
    %p123 = scmp.eq.s32.totalorder %s17, 1
    %p124 = por %p122, %p123
    %p126 = scmp.ne.s32.totalorder %s111, %s125
    %p127 = scmp.eq.s32.totalorder %s17, 0
    %p128 = por %p126, %p127
    %s129 = ssub.s32 %s11, %s18
    %p130 = scmp.eq.s32.totalorder %s129, 0
    %s132 = sadd.s32 %s131, 1
    %s133 = scalar_select %p130, %s131, %s132
    %p136 = pneg %p130
    %p137 = scmp.eq.s32.totalorder %s11, 1
    %p138 = por %p136, %p137
    %p139 = scmp.ne.s32.totalorder %s131, %s134
    %p140 = scmp.eq.s32.totalorder %s11, 0
    %p141 = por %p139, %p140
    %p142 = scmp.ne.s32.totalorder %s131, %s134
    %p143 = scmp.eq.s32.totalorder %s16, 1
    %p144 = por %p142, %p143
    %p145 = scmp.ne.s32.totalorder %s134, %s135
    %p146 = scmp.eq.s32.totalorder %s16, 0
    %p147 = por %p145, %p146
    %p148 = scmp.ne.s32.totalorder %s134, %s135
    %p149 = scmp.eq.s32.totalorder %s17, 1
    %p150 = por %p148, %p149
    %p152 = scmp.ne.s32.totalorder %s135, %s151
    %p153 = scmp.eq.s32.totalorder %s17, 0
    %p154 = por %p152, %p153
    %p155 = scmp.le.s32.totalorder 1, %s11
    %p156 = scmp.lt.s32.totalorder %s11, 3
    %p157 = pnand %p155, %p156
    %p158 = pneg %p157
    // Predicated region
    $region9: #{conv_block_pallas.7} parent=5 // pred_check
      _
    $region10: #{conv_block_pallas.7} parent=5 // pred_check_branch
      %160 = sbr.rel (%p157) target = $region12
    $region11: #{conv_block_pallas.7} parent=5 // pred_region
      %s161 = ssub.s32 %s11, 1
      // Predicated region
      $region13: #{conv_block_pallas.7} parent=11 // pred_check
        %p162 = pneg %p58
      $region14: #{conv_block_pallas.7} parent=11 // pred_check_branch
        %164 = sbr.rel (%p162) target = $region16
      $region15: #{conv_block_pallas.7} parent=11 // pred_region
        _
      $region16: #{conv_block_pallas.7} parent=11 // pred_fallthru
        _
      // Predicated region
      $region17: #{conv_block_pallas.7} parent=11 // pred_check
        %p165 = pneg %p79
      $region18: #{conv_block_pallas.7} parent=11 // pred_check_branch
        %167 = sbr.rel (%p165) target = $region20
      $region19: #{conv_block_pallas.7} parent=11 // pred_region
        _
      $region20: #{conv_block_pallas.7} parent=11 // pred_fallthru
        _
      // Predicated region
      $region21: #{conv_block_pallas.7} parent=11 // pred_check
        %p168 = pneg %p100
      $region22: #{conv_block_pallas.7} parent=11 // pred_check_branch
        %170 = sbr.rel (%p168) target = $region24
      $region23: #{conv_block_pallas.7} parent=11 // pred_region
        _
      $region24: #{conv_block_pallas.7} parent=11 // pred_fallthru
        _
      // Predicated region
      $region25: #{conv_block_pallas.7} parent=11 // pred_check
        %p171 = pneg %p121
      $region26: #{conv_block_pallas.7} parent=11 // pred_check_branch
        %173 = sbr.rel (%p171) target = $region28
      $region27: #{conv_block_pallas.7} parent=11 // pred_region
        _
      $region28: #{conv_block_pallas.7} parent=11 // pred_fallthru
        _
    $region12: #{conv_block_pallas.7} parent=5 // pred_fallthru
      _
    %p174 = scmp.lt.s32.totalorder %s11, 2
    // Predicated region
    $region29: #{conv_block_pallas.7} parent=5 // pred_check
      %p175 = pneg %p174
    $region30: #{conv_block_pallas.7} parent=5 // pred_check_branch
      %177 = sbr.rel (%p175) target = $region32
    $region31: #{conv_block_pallas.7} parent=5 // pred_region
      // Predicated region
      $region33: #{conv_block_pallas.7} parent=31 // pred_check
        %p178 = pneg %p31
      $region34: #{conv_block_pallas.7} parent=31 // pred_check_branch
        %180 = sbr.rel (%p178) target = $region36
      $region35: #{conv_block_pallas.7} parent=31 // pred_region
        %s181 = smul.u32 32, %s11
        %p182 = scmp.lt.s32.totalorder %s181, 63
        %s183 = scalar_select %p182, %s181, 63
        %s184 = smul.addr %s183, 4
        %s185 = scalar_lea.vmem %s0, %s184
        %s186 = smul.u32 32, %s11
      $region36: #{conv_block_pallas.7} parent=31 // pred_fallthru
        _
    $region32: #{conv_block_pallas.7} parent=5 // pred_fallthru
      _
    %p187 = scmp.le.s32.totalorder 1, %s11
    %p188 = scmp.lt.s32.totalorder %s11, 3
    %p189 = pnand %p187, %p188
    %p190 = pneg %p189
    // Predicated region
    $region37: #{conv_block_pallas.7} parent=5 // pred_check
      _
    $region38: #{conv_block_pallas.7} parent=5 // pred_check_branch
      %192 = sbr.rel (%p189) target = $region40
    $region39: #{conv_block_pallas.7} parent=5 // pred_region
      %s193 = ssub.s32 %s11, 1
      %s194 = smul.u32 32, %s16
      %p195 = scmp.lt.s32.totalorder %s194, 63
      %s196 = scalar_select %p195, %s194, 63
      %s197 = smul.addr %s196, 4
      %s198 = scalar_lea.vmem %s0, %s197
      %p199 = pneg %p37
      %p200 = pneg %p34
      %p201 = pneg %p58
      %p202 = pneg %p55
      %p203 = pneg %p79
      %p204 = pneg %p76
      %p205 = pneg %p100
      %p206 = pneg %p97
      %p207 = pneg %p121
      %p208 = pneg %p118
      %p209 = pneg %p147
      %p210 = pneg %p144
      %s211 = smul.u32 32, %s16
      %p212 = scmp.lt.s32.totalorder %s211, 63
      %s213 = scalar_select %p212, %s211, 63
      %s214 = smul.addr %s213, 8
      %s215 = scalar_lea.vmem %s5, %s214
      %s216 = smul.u32 32, %s16
      %p217 = scmp.lt.s32.totalorder %s216, 63
      %s218 = scalar_select %p217, %s216, 63
      %s219 = smul.addr %s218, 4
      %s220 = scalar_lea.vmem %s0, %s219
      %s221 = smul.u32 32, %s16
      %s222 = smul.u32 32, %s16
      %p223 = scmp.lt.s32.totalorder %s222, 63
      %s224 = scalar_select %p223, %s222, 63
      %s225 = smul.addr %s224, 8
      %s226 = scalar_lea.vmem %s5, %s225
      %s227 = smul.u32 32, %s16
      %v229 = vld [vmem:[%s220] sm:$0xf]
      %v230 = vld [vmem:[%s220 + $0x4] sm:$0xf]
      %v231 = vld [vmem:[%s220 + $0x8] sm:$0xf]
      %v232 = vld [vmem:[%s220 + $0xc] sm:$0xf]
      %v233 = vld [vmem:[%s220 + $0x10] sm:$0xf]
      %v234 = vld [vmem:[%s220 + $0x14] sm:$0xf]
      %v235 = vld [vmem:[%s220 + $0x18] sm:$0xf]
      %v236 = vld [vmem:[%s220 + $0x1c] sm:$0xf]
      %v237 = vld [vmem:[%s220 + $0x20] sm:$0xf]
      %v238 = vld [vmem:[%s220 + $0x24] sm:$0xf]
      %v239 = vld [vmem:[%s220 + $0x28] sm:$0xf]
      %v240 = vld [vmem:[%s220 + $0x2c] sm:$0xf]
      %v241 = vld [vmem:[%s220 + $0x30] sm:$0xf]
      %v242 = vld [vmem:[%s220 + $0x34] sm:$0xf]
      %v243 = vld [vmem:[%s220 + $0x38] sm:$0xf]
      %v244 = vld [vmem:[%s220 + $0x3c] sm:$0xf]
      %v245 = vld [vmem:[%s220 + $0x40] sm:$0xf]
      %v246 = vld [vmem:[%s220 + $0x44] sm:$0xf]
      %v247 = vld [vmem:[%s220 + $0x48] sm:$0xf]
      %v248 = vld [vmem:[%s220 + $0x4c] sm:$0xf]
      %v249 = vld [vmem:[%s220 + $0x50] sm:$0xf]
      %v250 = vld [vmem:[%s220 + $0x54] sm:$0xf]
      %v251 = vld [vmem:[%s220 + $0x58] sm:$0xf]
      %v252 = vld [vmem:[%s220 + $0x5c] sm:$0xf]
      %v253 = vld [vmem:[%s220 + $0x60] sm:$0xf]
      %v254 = vld [vmem:[%s220 + $0x64] sm:$0xf]
      %v255 = vld [vmem:[%s220 + $0x68] sm:$0xf]
      %v256 = vld [vmem:[%s220 + $0x6c] sm:$0xf]
      %v257 = vld [vmem:[%s220 + $0x70] sm:$0xf]
      %v258 = vld [vmem:[%s220 + $0x74] sm:$0xf]
      %v259 = vld [vmem:[%s220 + $0x78] sm:$0xf]
      %v260 = vld [vmem:[%s220 + $0x7c] sm:$0xf]
      %v261 = vunpack.c.l.bf16 %v229
      %v262 = vunpack.c.l.bf16 %v230
      %v263 = vunpack.c.l.bf16 %v231
      %v264 = vunpack.c.l.bf16 %v232
      %v265 = vunpack.c.l.bf16 %v233
      %v266 = vunpack.c.l.bf16 %v234
      %v267 = vunpack.c.l.bf16 %v235
      %v268 = vunpack.c.l.bf16 %v236
      %v269 = vunpack.c.l.bf16 %v237
      %v270 = vunpack.c.l.bf16 %v238
      %v271 = vunpack.c.l.bf16 %v239
      %v272 = vunpack.c.l.bf16 %v240
      %v273 = vunpack.c.l.bf16 %v241
      %v274 = vunpack.c.l.bf16 %v242
      %v275 = vunpack.c.l.bf16 %v243
      %v276 = vunpack.c.l.bf16 %v244
      %v277 = vunpack.c.l.bf16 %v245
      %v278 = vunpack.c.l.bf16 %v246
      %v279 = vunpack.c.l.bf16 %v247
      %v280 = vunpack.c.l.bf16 %v248
      %v281 = vunpack.c.l.bf16 %v249
      %v282 = vunpack.c.l.bf16 %v250
      %v283 = vunpack.c.l.bf16 %v251
      %v284 = vunpack.c.l.bf16 %v252
      %v285 = vunpack.c.l.bf16 %v253
      %v286 = vunpack.c.l.bf16 %v254
      %v287 = vunpack.c.l.bf16 %v255
      %v288 = vunpack.c.l.bf16 %v256
      %v289 = vunpack.c.l.bf16 %v257
      %v290 = vunpack.c.l.bf16 %v258
      %v291 = vunpack.c.l.bf16 %v259
      %v292 = vunpack.c.l.bf16 %v260
      %v293 = vld [vmem:[%s1] sm:$0x1]
      %v295 = vlaneseq
      %v296 = vshrl.u32 %v295, 7
      %v297 = vsub.s32 0, %v296
      %v298 = vrot.slane %v293, %v297
      %v300 = vmul.f32 %v261, %v298
      %v301 = vmul.f32 %v262, %v298
      %v302 = vmul.f32 %v263, %v298
      %v303 = vmul.f32 %v264, %v298
      %v304 = vmul.f32 %v265, %v298
      %v305 = vmul.f32 %v266, %v298
      %v306 = vmul.f32 %v267, %v298
      %v307 = vmul.f32 %v268, %v298
      %v308 = vmul.f32 %v269, %v298
      %v309 = vmul.f32 %v270, %v298
      %v310 = vmul.f32 %v271, %v298
      %v311 = vmul.f32 %v272, %v298
      %v312 = vmul.f32 %v273, %v298
      %v313 = vmul.f32 %v274, %v298
      %v314 = vmul.f32 %v275, %v298
      %v315 = vmul.f32 %v276, %v298
      %v316 = vmul.f32 %v277, %v298
      %v317 = vmul.f32 %v278, %v298
      %v318 = vmul.f32 %v279, %v298
      %v319 = vmul.f32 %v280, %v298
      %v320 = vmul.f32 %v281, %v298
      %v321 = vmul.f32 %v282, %v298
      %v322 = vmul.f32 %v283, %v298
      %v323 = vmul.f32 %v284, %v298
      %v324 = vmul.f32 %v285, %v298
      %v325 = vmul.f32 %v286, %v298
      %v326 = vmul.f32 %v287, %v298
      %v327 = vmul.f32 %v288, %v298
      %v328 = vmul.f32 %v289, %v298
      %v329 = vmul.f32 %v290, %v298
      %v330 = vmul.f32 %v291, %v298
      %v331 = vmul.f32 %v292, %v298
      %v332 = vld [vmem:[%s2] sm:$0x1]
      %v334 = vlaneseq
      %v335 = vshrl.u32 %v334, 7
      %v336 = vsub.s32 0, %v335
      %v337 = vrot.slane %v332, %v336
      %v339 = vadd.f32 %v300, %v337
      %v340 = vadd.f32 %v301, %v337
      %v341 = vadd.f32 %v302, %v337
      %v342 = vadd.f32 %v303, %v337
      %v343 = vadd.f32 %v304, %v337
      %v344 = vadd.f32 %v305, %v337
      %v345 = vadd.f32 %v306, %v337
      %v346 = vadd.f32 %v307, %v337
      %v347 = vadd.f32 %v308, %v337
      %v348 = vadd.f32 %v309, %v337
      %v349 = vadd.f32 %v310, %v337
      %v350 = vadd.f32 %v311, %v337
      %v351 = vadd.f32 %v312, %v337
      %v352 = vadd.f32 %v313, %v337
      %v353 = vadd.f32 %v314, %v337
      %v354 = vadd.f32 %v315, %v337
      %v355 = vadd.f32 %v316, %v337
      %v356 = vadd.f32 %v317, %v337
      %v357 = vadd.f32 %v318, %v337
      %v358 = vadd.f32 %v319, %v337
      %v359 = vadd.f32 %v320, %v337
      %v360 = vadd.f32 %v321, %v337
      %v361 = vadd.f32 %v322, %v337
      %v362 = vadd.f32 %v323, %v337
      %v363 = vadd.f32 %v324, %v337
      %v364 = vadd.f32 %v325, %v337
      %v365 = vadd.f32 %v326, %v337
      %v366 = vadd.f32 %v327, %v337
      %v367 = vadd.f32 %v328, %v337
      %v368 = vadd.f32 %v329, %v337
      %v369 = vadd.f32 %v330, %v337
      %v370 = vadd.f32 %v331, %v337
      %v371 = vmax.f32 %v339, 0.0
      %v372 = vmax.f32 %v340, 0.0
      %v373 = vmax.f32 %v341, 0.0
      %v374 = vmax.f32 %v342, 0.0
      %v375 = vmax.f32 %v343, 0.0
      %v376 = vmax.f32 %v344, 0.0
      %v377 = vmax.f32 %v345, 0.0
      %v378 = vmax.f32 %v346, 0.0
      %v379 = vmax.f32 %v347, 0.0
      %v380 = vmax.f32 %v348, 0.0
      %v381 = vmax.f32 %v349, 0.0
      %v382 = vmax.f32 %v350, 0.0
      %v383 = vmax.f32 %v351, 0.0
      %v384 = vmax.f32 %v352, 0.0
      %v385 = vmax.f32 %v353, 0.0
      %v386 = vmax.f32 %v354, 0.0
      %v387 = vmax.f32 %v355, 0.0
      %v388 = vmax.f32 %v356, 0.0
      %v389 = vmax.f32 %v357, 0.0
      %v390 = vmax.f32 %v358, 0.0
      %v391 = vmax.f32 %v359, 0.0
      %v392 = vmax.f32 %v360, 0.0
      %v393 = vmax.f32 %v361, 0.0
      %v394 = vmax.f32 %v362, 0.0
      %v395 = vmax.f32 %v363, 0.0
      %v396 = vmax.f32 %v364, 0.0
      %v397 = vmax.f32 %v365, 0.0
      %v398 = vmax.f32 %v366, 0.0
      %v399 = vmax.f32 %v367, 0.0
      %v400 = vmax.f32 %v368, 0.0
      %v401 = vmax.f32 %v369, 0.0
      %v402 = vmax.f32 %v370, 0.0
      %v403 = vpack.c.bf16 %v372, %v371
      %v404 = vpack.c.bf16 %v374, %v373
      %v405 = vpack.c.bf16 %v376, %v375
      %v406 = vpack.c.bf16 %v378, %v377
      %v407 = vpack.c.bf16 %v380, %v379
      %v408 = vpack.c.bf16 %v382, %v381
      %v409 = vpack.c.bf16 %v384, %v383
      %v410 = vpack.c.bf16 %v386, %v385
      %v411 = vpack.c.bf16 %v388, %v387
      %v412 = vpack.c.bf16 %v390, %v389
      %v413 = vpack.c.bf16 %v392, %v391
      %v414 = vpack.c.bf16 %v394, %v393
      %v415 = vpack.c.bf16 %v396, %v395
      %v416 = vpack.c.bf16 %v398, %v397
      %v417 = vpack.c.bf16 %v400, %v399
      %v418 = vpack.c.bf16 %v402, %v401
      %v419 = vld [vmem:[%s3] sm:$0xf]
      %v420 = vld [vmem:[%s4] sm:$0x1]
      %v422 = vlaneseq
      %v423 = vshrl.u32 %v422, 7
      %v424 = vsub.s32 0, %v423
      %v425 = vrot.slane %v420, %v424
      %vm427 = vcmask 64512
      %v429 = vsel %vm427, %v403, 0
      %v432 = vsel %vm427, %v404, 0
      %v435 = vsel %vm427, %v405, 0
      %v438 = vsel %vm427, %v406, 0
      %v441 = vsel %vm427, %v407, 0
      %v444 = vsel %vm427, %v408, 0
      %v447 = vsel %vm427, %v409, 0
      %v450 = vsel %vm427, %v410, 0
      %v453 = vsel %vm427, %v411, 0
      %v456 = vsel %vm427, %v412, 0
      %v459 = vsel %vm427, %v413, 0
      %v462 = vsel %vm427, %v414, 0
      %v465 = vsel %vm427, %v415, 0
      %v468 = vsel %vm427, %v416, 0
      %v471 = vsel %vm427, %v417, 0
      %v474 = vsel %vm427, %v418, 0
      %vm476 = vcmask 1043456
      %v478 = vsel %vm476, %v419, 0
      %480 = vmatprep.subr.bf16.mxu0 0
      %481 = vmatpush1.bf16.msra.mxu0 0
      %482 = vmatprep.subr.bf16.mxu0 0
      %483 = vmatpush1.bf16.msra.mxu0 0
      %484 = vmatprep.subr.bf16.mxu0 0
      %485 = vmatpush1.bf16.msra.mxu0 0
      %486 = vmatprep.subr.bf16.mxu0 0
      %487 = vmatpush1.bf16.msra.mxu0 0
      %488 = vmatprep.subr.bf16.mxu0 0
      %489 = vmatpush1.bf16.msra.mxu0 0
      %490 = vmatprep.subr.bf16.mxu0 0
      %491 = vmatpush1.bf16.msra.mxu0 0
      %492 = vmatprep.subr.bf16.mxu0 0
      %493 = vmatpush1.bf16.msra.mxu0 0
      %494 = vmatprep.subr.bf16.mxu0 0
      %495 = vmatpush1.bf16.msra.mxu0 %v478
      %496 = vmatprep.subr.bf16.mxu0 0
      %497 = vmatpush2.bf16.msra.mxu0 0
      %498 = vmatprep.subr.bf16.mxu0 0
      %499 = vmatpush2.bf16.msra.mxu0 0
      %500 = vmatprep.subr.bf16.mxu0 0
      %501 = vmatpush2.bf16.msra.mxu0 0
      %502 = vmatprep.subr.bf16.mxu0 0
      %503 = vmatpush2.bf16.msra.mxu0 0
      %504 = vmatprep.subr.bf16.mxu0 0
      %505 = vmatpush2.bf16.msra.mxu0 0
      %506 = vmatprep.subr.bf16.mxu0 0
      %507 = vmatpush2.bf16.msra.mxu0 0
      %508 = vmatprep.subr.bf16.mxu0 0
      %509 = vmatpush2.bf16.msra.mxu0 0
      %510 = vmatprep.subr.bf16.mxu0 0
      %511 = vmatpush2.bf16.msra.mxu0 0
      %512 = vmatprep.mubr.bf16.mxu0 0
      %513 = vmatmul.mubr.bf16.gmra.mxu0 %v429
      %v514 = vpop.f32.mrf.mxu0
      %v515 = vadd.f32 %v425, %v514
      %v516 = vpop.f32.mrf.mxu0
      %v517 = vpop.f32.mrf.mxu0
      %v518 = vadd.f32 %v425, %v517
      %v519 = vpop.f32.mrf.mxu0
      %520 = vmatprep.mubr.bf16.mxu0 0
      %521 = vmatmul.mubr.bf16.gmra.mxu0 %v432
      %v522 = vpop.f32.mrf.mxu0
      %v523 = vadd.f32 %v425, %v522
      %v524 = vpop.f32.mrf.mxu0
      %v525 = vpop.f32.mrf.mxu0
      %v526 = vadd.f32 %v425, %v525
      %v527 = vpop.f32.mrf.mxu0
      %528 = vmatprep.mubr.bf16.mxu0 0
      %529 = vmatmul.mubr.bf16.gmra.mxu0 %v435
      %v530 = vpop.f32.mrf.mxu0
      %v531 = vadd.f32 %v425, %v530
      %v532 = vpop.f32.mrf.mxu0
      %v533 = vpop.f32.mrf.mxu0
      %v534 = vadd.f32 %v425, %v533
      %v535 = vpop.f32.mrf.mxu0
      %536 = vmatprep.mubr.bf16.mxu0 0
      %537 = vmatmul.mubr.bf16.gmra.mxu0 %v438
      %v538 = vpop.f32.mrf.mxu0
      %v539 = vadd.f32 %v425, %v538
      %v540 = vpop.f32.mrf.mxu0
      %v541 = vpop.f32.mrf.mxu0
      %v542 = vadd.f32 %v425, %v541
      %v543 = vpop.f32.mrf.mxu0
      %544 = vmatprep.mubr.bf16.mxu0 0
      %545 = vmatmul.mubr.bf16.gmra.mxu0 %v441
      %v546 = vpop.f32.mrf.mxu0
      %v547 = vadd.f32 %v425, %v546
      %v548 = vpop.f32.mrf.mxu0
      %v549 = vpop.f32.mrf.mxu0
      %v550 = vadd.f32 %v425, %v549
      %v551 = vpop.f32.mrf.mxu0
      %552 = vmatprep.mubr.bf16.mxu0 0
      %553 = vmatmul.mubr.bf16.gmra.mxu0 %v444
      %v554 = vpop.f32.mrf.mxu0
      %v555 = vadd.f32 %v425, %v554
      %v556 = vpop.f32.mrf.mxu0
      %v557 = vpop.f32.mrf.mxu0
      %v558 = vadd.f32 %v425, %v557
      %v559 = vpop.f32.mrf.mxu0
      %560 = vmatprep.mubr.bf16.mxu0 0
      %561 = vmatmul.mubr.bf16.gmra.mxu0 %v447
      %v562 = vpop.f32.mrf.mxu0
      %v563 = vadd.f32 %v425, %v562
      %v564 = vpop.f32.mrf.mxu0
      %v565 = vpop.f32.mrf.mxu0
      %v566 = vadd.f32 %v425, %v565
      %v567 = vpop.f32.mrf.mxu0
      %568 = vmatprep.mubr.bf16.mxu0 0
      %569 = vmatmul.mubr.bf16.gmra.mxu0 %v450
      %v570 = vpop.f32.mrf.mxu0
      %v571 = vadd.f32 %v425, %v570
      %v572 = vpop.f32.mrf.mxu0
      %v573 = vpop.f32.mrf.mxu0
      %v574 = vadd.f32 %v425, %v573
      %v575 = vpop.f32.mrf.mxu0
      %576 = vmatprep.mubr.bf16.mxu0 0
      %577 = vmatmul.mubr.bf16.gmra.mxu0 %v453
      %v578 = vpop.f32.mrf.mxu0
      %v579 = vadd.f32 %v425, %v578
      %v580 = vpop.f32.mrf.mxu0
      %v581 = vpop.f32.mrf.mxu0
      %v582 = vadd.f32 %v425, %v581
      %v583 = vpop.f32.mrf.mxu0
      %584 = vmatprep.mubr.bf16.mxu0 0
      %585 = vmatmul.mubr.bf16.gmra.mxu0 %v456
      %v586 = vpop.f32.mrf.mxu0
      %v587 = vadd.f32 %v425, %v586
      %v588 = vpop.f32.mrf.mxu0
      %v589 = vpop.f32.mrf.mxu0
      %v590 = vadd.f32 %v425, %v589
      %v591 = vpop.f32.mrf.mxu0
      %592 = vmatprep.mubr.bf16.mxu0 0
      %593 = vmatmul.mubr.bf16.gmra.mxu0 %v459
      %v594 = vpop.f32.mrf.mxu0
      %v595 = vadd.f32 %v425, %v594
      %v596 = vpop.f32.mrf.mxu0
      %v597 = vpop.f32.mrf.mxu0
      %v598 = vadd.f32 %v425, %v597
      %v599 = vpop.f32.mrf.mxu0
      %600 = vmatprep.mubr.bf16.mxu0 0
      %601 = vmatmul.mubr.bf16.gmra.mxu0 %v462
      %v602 = vpop.f32.mrf.mxu0
      %v603 = vadd.f32 %v425, %v602
      %v604 = vpop.f32.mrf.mxu0
      %v605 = vpop.f32.mrf.mxu0
      %v606 = vadd.f32 %v425, %v605
      %v607 = vpop.f32.mrf.mxu0
      %608 = vmatprep.mubr.bf16.mxu0 0
      %609 = vmatmul.mubr.bf16.gmra.mxu0 %v465
      %v610 = vpop.f32.mrf.mxu0
      %v611 = vadd.f32 %v425, %v610
      %v612 = vpop.f32.mrf.mxu0
      %v613 = vpop.f32.mrf.mxu0
      %v614 = vadd.f32 %v425, %v613
      %v615 = vpop.f32.mrf.mxu0
      %616 = vmatprep.mubr.bf16.mxu0 0
      %617 = vmatmul.mubr.bf16.gmra.mxu0 %v468
      %v618 = vpop.f32.mrf.mxu0
      %v619 = vadd.f32 %v425, %v618
      %v620 = vpop.f32.mrf.mxu0
      %v621 = vpop.f32.mrf.mxu0
      %v622 = vadd.f32 %v425, %v621
      %v623 = vpop.f32.mrf.mxu0
      %624 = vmatprep.mubr.bf16.mxu0 0
      %625 = vmatmul.mubr.bf16.gmra.mxu0 %v471
      %v626 = vpop.f32.mrf.mxu0
      %v627 = vadd.f32 %v425, %v626
      %v628 = vpop.f32.mrf.mxu0
      %v629 = vpop.f32.mrf.mxu0
      %v630 = vadd.f32 %v425, %v629
      %v631 = vpop.f32.mrf.mxu0
      %632 = vmatprep.mubr.bf16.mxu0 0
      %633 = vmatmul.mubr.bf16.gmra.mxu0 %v474
      %v634 = vpop.f32.mrf.mxu0
      %v635 = vadd.f32 %v425, %v634
      %v636 = vpop.f32.mrf.mxu0
      %v637 = vpop.f32.mrf.mxu0
      %v638 = vadd.f32 %v425, %v637
      %v639 = vpop.f32.mrf.mxu0
      %640 = vdwg.mxu0
      %641 = vst.msk [vmem:[%s226] sm:$0xff] %vm427, %v515
      %642 = vst.msk [vmem:[%s226 + $0x8] sm:$0xff] %vm427, %v518
      %643 = vst.msk [vmem:[%s226 + $0x10] sm:$0xff] %vm427, %v523
      %644 = vst.msk [vmem:[%s226 + $0x18] sm:$0xff] %vm427, %v526
      %645 = vst.msk [vmem:[%s226 + $0x20] sm:$0xff] %vm427, %v531
      %646 = vst.msk [vmem:[%s226 + $0x28] sm:$0xff] %vm427, %v534
      %647 = vst.msk [vmem:[%s226 + $0x30] sm:$0xff] %vm427, %v539
      %648 = vst.msk [vmem:[%s226 + $0x38] sm:$0xff] %vm427, %v542
      %649 = vst.msk [vmem:[%s226 + $0x40] sm:$0xff] %vm427, %v547
      %650 = vst.msk [vmem:[%s226 + $0x48] sm:$0xff] %vm427, %v550
      %651 = vst.msk [vmem:[%s226 + $0x50] sm:$0xff] %vm427, %v555
      %652 = vst.msk [vmem:[%s226 + $0x58] sm:$0xff] %vm427, %v558
      %653 = vst.msk [vmem:[%s226 + $0x60] sm:$0xff] %vm427, %v563
      %654 = vst.msk [vmem:[%s226 + $0x68] sm:$0xff] %vm427, %v566
      %655 = vst.msk [vmem:[%s226 + $0x70] sm:$0xff] %vm427, %v571
      %656 = vst.msk [vmem:[%s226 + $0x78] sm:$0xff] %vm427, %v574
      %657 = vst.msk [vmem:[%s226 + $0x80] sm:$0xff] %vm427, %v579
      %658 = vst.msk [vmem:[%s226 + $0x88] sm:$0xff] %vm427, %v582
      %659 = vst.msk [vmem:[%s226 + $0x90] sm:$0xff] %vm427, %v587
      %660 = vst.msk [vmem:[%s226 + $0x98] sm:$0xff] %vm427, %v590
      %661 = vst.msk [vmem:[%s226 + $0xa0] sm:$0xff] %vm427, %v595
      %662 = vst.msk [vmem:[%s226 + $0xa8] sm:$0xff] %vm427, %v598
      %663 = vst.msk [vmem:[%s226 + $0xb0] sm:$0xff] %vm427, %v603
      %664 = vst.msk [vmem:[%s226 + $0xb8] sm:$0xff] %vm427, %v606
      %665 = vst.msk [vmem:[%s226 + $0xc0] sm:$0xff] %vm427, %v611
      %666 = vst.msk [vmem:[%s226 + $0xc8] sm:$0xff] %vm427, %v614
      %667 = vst.msk [vmem:[%s226 + $0xd0] sm:$0xff] %vm427, %v619
      %668 = vst.msk [vmem:[%s226 + $0xd8] sm:$0xff] %vm427, %v622
      %669 = vst.msk [vmem:[%s226 + $0xe0] sm:$0xff] %vm427, %v627
      %670 = vst.msk [vmem:[%s226 + $0xe8] sm:$0xff] %vm427, %v630
      %671 = vst.msk [vmem:[%s226 + $0xf0] sm:$0xff] %vm427, %v635
      %672 = vst.msk [vmem:[%s226 + $0xf8] sm:$0xff] %vm427, %v638
      %s673 = smul.u32 32, %s16
      %p674 = scmp.lt.s32.totalorder %s673, 63
      %s675 = scalar_select %p674, %s673, 63
      %s676 = smul.addr %s675, 8
      %s677 = scalar_lea.vmem %s5, %s676
      // Predicated region
      $region41: #{conv_block_pallas.7} parent=39 // pred_check
        %p678 = pneg %p144
      $region42: #{conv_block_pallas.7} parent=39 // pred_check_branch
        %680 = sbr.rel (%p678) target = $region44
      $region43: #{conv_block_pallas.7} parent=39 // pred_region
        %s681 = smul.u32 32, %s16
      $region44: #{conv_block_pallas.7} parent=39 // pred_fallthru
        _
    $region40: #{conv_block_pallas.7} parent=5 // pred_fallthru
      _
    %p682 = scmp.le.s32.totalorder 2, %s11
    // Predicated region
    $region45: #{conv_block_pallas.7} parent=5 // pred_check
      %p683 = pneg %p682
    $region46: #{conv_block_pallas.7} parent=5 // pred_check_branch
      %685 = sbr.rel (%p683) target = $region48
    $region47: #{conv_block_pallas.7} parent=5 // pred_region
      %s686 = ssub.s32 %s11, 2
      // Predicated region
      $region49: #{conv_block_pallas.7} parent=47 // pred_check
        %p687 = pneg %p150
      $region50: #{conv_block_pallas.7} parent=47 // pred_check_branch
        %689 = sbr.rel (%p687) target = $region52
      $region51: #{conv_block_pallas.7} parent=47 // pred_region
        %s690 = smul.u32 32, %s17
        %p691 = scmp.lt.s32.totalorder %s690, 63
        %s692 = scalar_select %p691, %s690, 63
        %s693 = smul.addr %s692, 8
        %s694 = scalar_lea.vmem %s5, %s693
      $region52: #{conv_block_pallas.7} parent=47 // pred_fallthru
        _
    $region48: #{conv_block_pallas.7} parent=5 // pred_fallthru
      _
  $region6: #{conv_block_pallas.7} parent=0 // loop_footer
    %s15 = sadd.s32 1, %s11
  $region7: #{conv_block_pallas.7} parent=0 // loop_footer_branch
    %10 = sbr.rel target = $region3
  $region8: #{conv_block_pallas.7} parent=0 // loop_exit
    _

// kernel: conv_block_pallas.6
$region0: #{conv_block_pallas.6}
  #allocation0 [shape = 'u32[]', space=smem, size = 0x4, offset = 0x4, fixed_abs, tag = 'smem constant byte address 0x4 - core index']
  #allocation1 [shape = 'u32[144,128]{1,0:T(1,128)}', space=vmem, size = 0x12000, scoped, tag = 'internal scratch']
  %s0 = inlined_call_operand.vmem [shape: f32[2,6,10,10,8], index: 0, kind: input, shape index: {}, may-alias: {0,1,2}]
  %s1 = inlined_call_operand.vmem [shape: f32[2,6,10,10,8], index: 1, kind: input, shape index: {}, may-alias: {0,1,2}]
  %s2 = inlined_call_operand.vmem [shape: f32[2,6,10,10,8], index: 2, kind: input, shape index: {}, may-alias: {0,1,2}]
  %s3 = inlined_call_operand.vmem [shape: bf16[216,8], index: 3, kind: input, shape index: {}]
  %s4 = inlined_call_operand.vmem [shape: bf16[2,4,64,8], index: 4, kind: output, shape index: {0}]
  %s5 = inlined_call_operand.vmem [shape: f32[2,4,2,8], index: 5, kind: output, shape index: {1}]
  %6 = xla_tuple %s4, %s5
  %s7 = sld [smem:[#allocation0]]
  $region57: #{conv_block_pallas.6} parent=0
    _
  %s9 = ssub.s32 1, %s7
  %s10 = scalar_select 0, %s9, %s7
  loop: start=0, step=1, limit=10
  $region2: #{conv_block_pallas.6} parent=0 // loop_pre_header
    _
  $region3: #{conv_block_pallas.6} parent=0 // loop_header
    %s12 = sphi 0, %s16
    %p13 = scmp.ge.s32.totalorder %s12, 10
    %s19 = sphi 0, %s31
    %s20 = sphi 0, %s27
    %s21 = sphi 0, %s19
    %s22 = sphi 0, %s20
    %s23 = sphi 0, %s21
    %s24 = sphi 0, %s22
    %s36 = sphi 0, %s38
    %s39 = sphi 0, %s36
    %s40 = sphi 0, %s39
    %s56 = sphi 0, %s40
    %s66 = sphi 0, %s68
    %s69 = sphi 0, %s66
    %s70 = sphi 0, %s69
    %s86 = sphi 0, %s70
    %s96 = sphi 0, %s98
    %s99 = sphi 0, %s96
    %s100 = sphi 0, %s99
    %s116 = sphi 0, %s100
    %s120 = sphi 0, %s120
    %s122 = sphi 0, %s120
    %s123 = sphi 0, %s122
    %s137 = sphi 0, %s123
    %s145 = sphi 0, %s147
    %s148 = sphi 0, %s145
    %s149 = sphi 0, %s148
    %s165 = sphi 0, %s149
    %s173 = sphi 0, %s175
    %s176 = sphi 0, %s173
    %s177 = sphi 0, %s176
    %s193 = sphi 0, %s177
  $region4: #{conv_block_pallas.6} parent=0 // loop_header_branch
    %15 = sbr.rel (%p13) target = $region8
  $region5: #{conv_block_pallas.6} parent=0 // loop_body
    %s17 = ssub.s32 %s12, 1
    %s18 = ssub.s32 %s12, 2
    %s25 = sadd.s32 1, %s20
    %p26 = scmp.ge.s32.totalorder %s25, 4
    %s27 = scalar_select %p26, 0, %s25
    %s28 = sadd.s32 1, %s19
    %s29 = scalar_select %p26, %s28, %s19
    %p30 = scmp.ge.s32.totalorder %s29, 2
    %s31 = scalar_select %p30, 0, %s29
    %s32 = ssub.s32 %s19, %s31
    %s33 = ssub.s32 %s20, %s27
    %s34 = sor.u32 %s32, %s33
    %p35 = scmp.eq.s32.totalorder %s34, 0
    %s37 = sadd.s32 %s36, 1
    %s38 = scalar_select %p35, %s36, %s37
    %p41 = pneg %p35
    %p42 = scmp.eq.s32.totalorder %s12, 7
    %p43 = por %p41, %p42
    %p44 = scmp.ne.s32.totalorder %s36, %s39
    %p45 = scmp.eq.s32.totalorder %s12, 0
    %p46 = por %p44, %p45
    %p47 = scmp.ne.s32.totalorder %s36, %s39
    %p48 = scmp.eq.s32.totalorder %s17, 7
    %p49 = por %p47, %p48
    %p50 = scmp.ne.s32.totalorder %s39, %s40
    %p51 = scmp.eq.s32.totalorder %s17, 0
    %p52 = por %p50, %p51
    %p53 = scmp.ne.s32.totalorder %s39, %s40
    %p54 = scmp.eq.s32.totalorder %s18, 7
    %p55 = por %p53, %p54
    %p57 = scmp.ne.s32.totalorder %s40, %s56
    %p58 = scmp.eq.s32.totalorder %s18, 0
    %p59 = por %p57, %p58
    %s60 = sadd.s32 %s20, 1
    %s61 = sadd.s32 %s27, 1
    %s62 = ssub.s32 %s19, %s31
    %s63 = ssub.s32 %s60, %s61
    %s64 = sor.u32 %s62, %s63
    %p65 = scmp.eq.s32.totalorder %s64, 0
    %s67 = sadd.s32 %s66, 1
    %s68 = scalar_select %p65, %s66, %s67
    %p71 = pneg %p65
    %p72 = scmp.eq.s32.totalorder %s12, 7
    %p73 = por %p71, %p72
    %p74 = scmp.ne.s32.totalorder %s66, %s69
    %p75 = scmp.eq.s32.totalorder %s12, 0
    %p76 = por %p74, %p75
    %p77 = scmp.ne.s32.totalorder %s66, %s69
    %p78 = scmp.eq.s32.totalorder %s17, 7
    %p79 = por %p77, %p78
    %p80 = scmp.ne.s32.totalorder %s69, %s70
    %p81 = scmp.eq.s32.totalorder %s17, 0
    %p82 = por %p80, %p81
    %p83 = scmp.ne.s32.totalorder %s69, %s70
    %p84 = scmp.eq.s32.totalorder %s18, 7
    %p85 = por %p83, %p84
    %p87 = scmp.ne.s32.totalorder %s70, %s86
    %p88 = scmp.eq.s32.totalorder %s18, 0
    %p89 = por %p87, %p88
    %s90 = sadd.s32 %s20, 2
    %s91 = sadd.s32 %s27, 2
    %s92 = ssub.s32 %s19, %s31
    %s93 = ssub.s32 %s90, %s91
    %s94 = sor.u32 %s92, %s93
    %p95 = scmp.eq.s32.totalorder %s94, 0
    %s97 = sadd.s32 %s96, 1
    %s98 = scalar_select %p95, %s96, %s97
    %p101 = pneg %p95
    %p102 = scmp.eq.s32.totalorder %s12, 7
    %p103 = por %p101, %p102
    %p104 = scmp.ne.s32.totalorder %s96, %s99
    %p105 = scmp.eq.s32.totalorder %s12, 0
    %p106 = por %p104, %p105
    %p107 = scmp.ne.s32.totalorder %s96, %s99
    %p108 = scmp.eq.s32.totalorder %s17, 7
    %p109 = por %p107, %p108
    %p110 = scmp.ne.s32.totalorder %s99, %s100
    %p111 = scmp.eq.s32.totalorder %s17, 0
    %p112 = por %p110, %p111
    %p113 = scmp.ne.s32.totalorder %s99, %s100
    %p114 = scmp.eq.s32.totalorder %s18, 7
    %p115 = por %p113, %p114
    %p117 = scmp.ne.s32.totalorder %s100, %s116
    %p118 = scmp.eq.s32.totalorder %s18, 0
    %p119 = por %p117, %p118
    %s121 = sadd.s32 %s120, 1
    %p124 = scmp.eq.s32.totalorder %s12, 7
    %p125 = scmp.ne.s32.totalorder %s120, %s122
    %p126 = scmp.eq.s32.totalorder %s12, 0
    %p127 = por %p125, %p126
    %p128 = scmp.ne.s32.totalorder %s120, %s122
    %p129 = scmp.eq.s32.totalorder %s17, 7
    %p130 = por %p128, %p129
    %p131 = scmp.ne.s32.totalorder %s122, %s123
    %p132 = scmp.eq.s32.totalorder %s17, 0
    %p133 = por %p131, %p132
    %p134 = scmp.ne.s32.totalorder %s122, %s123
    %p135 = scmp.eq.s32.totalorder %s18, 7
    %p136 = por %p134, %p135
    %p138 = scmp.ne.s32.totalorder %s123, %s137
    %p139 = scmp.eq.s32.totalorder %s18, 0
    %p140 = por %p138, %p139
    %s141 = ssub.s32 %s19, %s31
    %s142 = ssub.s32 %s20, %s27
    %s143 = sor.u32 %s141, %s142
    %p144 = scmp.eq.s32.totalorder %s143, 0
    %s146 = sadd.s32 %s145, 1
    %s147 = scalar_select %p144, %s145, %s146
    %p150 = pneg %p144
    %p151 = scmp.eq.s32.totalorder %s12, 7
    %p152 = por %p150, %p151
    %p153 = scmp.ne.s32.totalorder %s145, %s148
    %p154 = scmp.eq.s32.totalorder %s12, 0
    %p155 = por %p153, %p154
    %p156 = scmp.ne.s32.totalorder %s145, %s148
    %p157 = scmp.eq.s32.totalorder %s17, 7
    %p158 = por %p156, %p157
    %p159 = scmp.ne.s32.totalorder %s148, %s149
    %p160 = scmp.eq.s32.totalorder %s17, 0
    %p161 = por %p159, %p160
    %p162 = scmp.ne.s32.totalorder %s148, %s149
    %p163 = scmp.eq.s32.totalorder %s18, 7
    %p164 = por %p162, %p163
    %p166 = scmp.ne.s32.totalorder %s149, %s165
    %p167 = scmp.eq.s32.totalorder %s18, 0
    %p168 = por %p166, %p167
    %s169 = ssub.s32 %s19, %s31
    %s170 = ssub.s32 %s20, %s27
    %s171 = sor.u32 %s169, %s170
    %p172 = scmp.eq.s32.totalorder %s171, 0
    %s174 = sadd.s32 %s173, 1
    %s175 = scalar_select %p172, %s173, %s174
    %p178 = pneg %p172
    %p179 = scmp.eq.s32.totalorder %s12, 7
    %p180 = por %p178, %p179
    %p181 = scmp.ne.s32.totalorder %s173, %s176
    %p182 = scmp.eq.s32.totalorder %s12, 0
    %p183 = por %p181, %p182
    %p184 = scmp.ne.s32.totalorder %s173, %s176
    %p185 = scmp.eq.s32.totalorder %s17, 7
    %p186 = por %p184, %p185
    %p187 = scmp.ne.s32.totalorder %s176, %s177
    %p188 = scmp.eq.s32.totalorder %s17, 0
    %p189 = por %p187, %p188
    %p190 = scmp.ne.s32.totalorder %s176, %s177
    %p191 = scmp.eq.s32.totalorder %s18, 7
    %p192 = por %p190, %p191
    %p194 = scmp.ne.s32.totalorder %s177, %s193
    %p195 = scmp.eq.s32.totalorder %s18, 0
    %p196 = por %p194, %p195
    %p197 = scmp.le.s32.totalorder 1, %s12
    %p198 = scmp.lt.s32.totalorder %s12, 9
    %p199 = pnand %p197, %p198
    %p200 = pneg %p199
    // Predicated region
    $region9: #{conv_block_pallas.6} parent=5 // pred_check
      _
    $region10: #{conv_block_pallas.6} parent=5 // pred_check_branch
      %202 = sbr.rel (%p199) target = $region12
    $region11: #{conv_block_pallas.6} parent=5 // pred_region
      %s203 = ssub.s32 %s12, 1
      // Predicated region
      $region13: #{conv_block_pallas.6} parent=11 // pred_check
        %p204 = pneg %p133
      $region14: #{conv_block_pallas.6} parent=11 // pred_check_branch
        %206 = sbr.rel (%p204) target = $region16
      $region15: #{conv_block_pallas.6} parent=11 // pred_region
        _
      $region16: #{conv_block_pallas.6} parent=11 // pred_fallthru
        _
    $region12: #{conv_block_pallas.6} parent=5 // pred_fallthru
      _
    %p207 = scmp.lt.s32.totalorder %s12, 8
    // Predicated region
    $region17: #{conv_block_pallas.6} parent=5 // pred_check
      %p208 = pneg %p207
    $region18: #{conv_block_pallas.6} parent=5 // pred_check_branch
      %210 = sbr.rel (%p208) target = $region20
    $region19: #{conv_block_pallas.6} parent=5 // pred_region
      // Predicated region
      $region21: #{conv_block_pallas.6} parent=19 // pred_check
        %p211 = pneg %p46
      $region22: #{conv_block_pallas.6} parent=19 // pred_check_branch
        %213 = sbr.rel (%p211) target = $region24
      $region23: #{conv_block_pallas.6} parent=19 // pred_region
        %p214 = scmp.lt.s32.totalorder %s19, 1
        %s215 = scalar_select %p214, %s19, 1
        %p216 = scmp.lt.s32.totalorder %s20, 5
        %s217 = scalar_select %p216, %s20, 5
        %s218 = smul.addr %s217, 20
        %s219 = smul.addr %s215, 120
        %s220 = sadd.s32 %s218, %s219
        %s221 = smul.addr %s220, 8
        %s222 = scalar_lea.vmem %s0, %s221
      $region24: #{conv_block_pallas.6} parent=19 // pred_fallthru
        _
      // Predicated region
      $region25: #{conv_block_pallas.6} parent=19 // pred_check
        %p223 = pneg %p76
      $region26: #{conv_block_pallas.6} parent=19 // pred_check_branch
        %225 = sbr.rel (%p223) target = $region28
      $region27: #{conv_block_pallas.6} parent=19 // pred_region
        %s226 = sadd.s32 %s20, 1
        %p227 = scmp.lt.s32.totalorder %s19, 1
        %s228 = scalar_select %p227, %s19, 1
        %p229 = scmp.lt.s32.totalorder %s226, 5
        %s230 = scalar_select %p229, %s226, 5
        %s231 = smul.addr %s230, 20
        %s232 = smul.addr %s228, 120
        %s233 = sadd.s32 %s231, %s232
        %s234 = smul.addr %s233, 8
        %s235 = scalar_lea.vmem %s1, %s234
        %s236 = sadd.s32 %s20, 1
      $region28: #{conv_block_pallas.6} parent=19 // pred_fallthru
        _
      // Predicated region
      $region29: #{conv_block_pallas.6} parent=19 // pred_check
        %p237 = pneg %p106
      $region30: #{conv_block_pallas.6} parent=19 // pred_check_branch
        %239 = sbr.rel (%p237) target = $region32
      $region31: #{conv_block_pallas.6} parent=19 // pred_region
        %s240 = sadd.s32 %s20, 2
        %p241 = scmp.lt.s32.totalorder %s19, 1
        %s242 = scalar_select %p241, %s19, 1
        %p243 = scmp.lt.s32.totalorder %s240, 5
        %s244 = scalar_select %p243, %s240, 5
        %s245 = smul.addr %s244, 20
        %s246 = smul.addr %s242, 120
        %s247 = sadd.s32 %s245, %s246
        %s248 = smul.addr %s247, 8
        %s249 = scalar_lea.vmem %s2, %s248
        %s250 = sadd.s32 %s20, 2
      $region32: #{conv_block_pallas.6} parent=19 // pred_fallthru
        _
    $region20: #{conv_block_pallas.6} parent=5 // pred_fallthru
      _
    %p251 = scmp.le.s32.totalorder 1, %s12
    %p252 = scmp.lt.s32.totalorder %s12, 9
    %p253 = pnand %p251, %p252
    %p254 = pneg %p253
    // Predicated region
    $region33: #{conv_block_pallas.6} parent=5 // pred_check
      _
    $region34: #{conv_block_pallas.6} parent=5 // pred_check_branch
      %256 = sbr.rel (%p253) target = $region36
    $region35: #{conv_block_pallas.6} parent=5 // pred_region
      %s257 = ssub.s32 %s12, 1
      %p258 = scmp.lt.s32.totalorder %s21, 1
      %s259 = scalar_select %p258, %s21, 1
      %p260 = scmp.lt.s32.totalorder %s22, 5
      %s261 = scalar_select %p260, %s22, 5
      %s262 = smul.addr %s261, 20
      %s263 = smul.addr %s259, 120
      %s264 = sadd.s32 %s262, %s263
      %s265 = smul.addr %s264, 8
      %s266 = scalar_lea.vmem %s0, %s265
      %p267 = pneg %p52
      %p268 = pneg %p49
      %s269 = sadd.s32 %s22, 1
      %p270 = scmp.lt.s32.totalorder %s21, 1
      %s271 = scalar_select %p270, %s21, 1
      %p272 = scmp.lt.s32.totalorder %s269, 5
      %s273 = scalar_select %p272, %s269, 5
      %s274 = smul.addr %s273, 20
      %s275 = smul.addr %s271, 120
      %s276 = sadd.s32 %s274, %s275
      %s277 = smul.addr %s276, 8
      %s278 = scalar_lea.vmem %s1, %s277
      %p279 = pneg %p82
      %p280 = pneg %p79
      %s281 = sadd.s32 %s22, 2
      %p282 = scmp.lt.s32.totalorder %s21, 1
      %s283 = scalar_select %p282, %s21, 1
      %p284 = scmp.lt.s32.totalorder %s281, 5
      %s285 = scalar_select %p284, %s281, 5
      %s286 = smul.addr %s285, 20
      %s287 = smul.addr %s283, 120
      %s288 = sadd.s32 %s286, %s287
      %s289 = smul.addr %s288, 8
      %s290 = scalar_lea.vmem %s2, %s289
      %p291 = pneg %p112
      %p292 = pneg %p109
      %p293 = pneg %p133
      %p294 = pneg %p130
      %p295 = pneg %p161
      %p296 = pneg %p158
      %p297 = scmp.lt.s32.totalorder %s21, 1
      %s298 = scalar_select %p297, %s21, 1
      %p299 = scmp.lt.s32.totalorder %s22, 3
      %s300 = scalar_select %p299, %s22, 3
      %s301 = smul.addr %s300, 8
      %s302 = smul.addr %s298, 32
      %s303 = sadd.s32 %s301, %s302
      %s304 = smul.addr %s303, 4
      %s305 = scalar_lea.vmem %s4, %s304
      %p306 = pneg %p189
      %p307 = pneg %p186
      %p308 = scmp.lt.s32.totalorder %s21, 1
      %s309 = scalar_select %p308, %s21, 1
      %p310 = scmp.lt.s32.totalorder %s22, 3
      %s311 = scalar_select %p310, %s22, 3
      %s312 = smul.addr %s309, 4
      %s313 = sadd.s32 %s311, %s312
      %s314 = smul.addr %s313, 2
      %s315 = scalar_lea.vmem %s5, %s314
      %p316 = scmp.lt.s32.totalorder %s21, 1
      %s317 = scalar_select %p316, %s21, 1
      %p318 = scmp.lt.s32.totalorder %s22, 5
      %s319 = scalar_select %p318, %s22, 5
      %s320 = smul.addr %s319, 20
      %s321 = smul.addr %s317, 120
      %s322 = sadd.s32 %s320, %s321
      %s323 = smul.addr %s322, 8
      %s324 = scalar_lea.vmem %s0, %s323
      %s325 = sadd.s32 %s22, 1
      %p326 = scmp.lt.s32.totalorder %s21, 1
      %s327 = scalar_select %p326, %s21, 1
      %p328 = scmp.lt.s32.totalorder %s325, 5
      %s329 = scalar_select %p328, %s325, 5
      %s330 = smul.addr %s329, 20
      %s331 = smul.addr %s327, 120
      %s332 = sadd.s32 %s330, %s331
      %s333 = smul.addr %s332, 8
      %s334 = scalar_lea.vmem %s1, %s333
      %s335 = sadd.s32 %s22, 1
      %s336 = sadd.s32 %s22, 2
      %p337 = scmp.lt.s32.totalorder %s21, 1
      %s338 = scalar_select %p337, %s21, 1
      %p339 = scmp.lt.s32.totalorder %s336, 5
      %s340 = scalar_select %p339, %s336, 5
      %s341 = smul.addr %s340, 20
      %s342 = smul.addr %s338, 120
      %s343 = sadd.s32 %s341, %s342
      %s344 = smul.addr %s343, 8
      %s345 = scalar_lea.vmem %s2, %s344
      %s346 = sadd.s32 %s22, 2
      %p347 = scmp.lt.s32.totalorder %s21, 1
      %s348 = scalar_select %p347, %s21, 1
      %p349 = scmp.lt.s32.totalorder %s22, 3
      %s350 = scalar_select %p349, %s22, 3
      %s351 = smul.addr %s350, 8
      %s352 = smul.addr %s348, 32
      %s353 = sadd.s32 %s351, %s352
      %s354 = smul.addr %s353, 4
      %s355 = scalar_lea.vmem %s4, %s354
      %p356 = scmp.lt.s32.totalorder %s21, 1
      %s357 = scalar_select %p356, %s21, 1
      %p358 = scmp.lt.s32.totalorder %s22, 3
      %s359 = scalar_select %p358, %s22, 3
      %s360 = smul.addr %s357, 4
      %s361 = sadd.s32 %s359, %s360
      %s362 = smul.addr %s361, 2
      %s363 = scalar_lea.vmem %s5, %s362
      %v365 = vld [vmem:[%s324] sm:$0xff]
      %v366 = vld [vmem:[%s324 + $0x8] sm:$0x3]
      %v367 = vld [vmem:[%s324 + $0x10] sm:$0xff]
      %v368 = vld [vmem:[%s324 + $0x18] sm:$0x3]
      %v369 = vld [vmem:[%s324 + $0x20] sm:$0xff]
      %v370 = vld [vmem:[%s324 + $0x28] sm:$0x3]
      %v371 = vld [vmem:[%s324 + $0x30] sm:$0xff]
      %v372 = vld [vmem:[%s324 + $0x38] sm:$0x3]
      %v373 = vld [vmem:[%s324 + $0x40] sm:$0xff]
      %v374 = vld [vmem:[%s324 + $0x48] sm:$0x3]
      %v375 = vld [vmem:[%s324 + $0x50] sm:$0xff]
      %v376 = vld [vmem:[%s324 + $0x58] sm:$0x3]
      %v377 = vld [vmem:[%s324 + $0x60] sm:$0xff]
      %v378 = vld [vmem:[%s324 + $0x68] sm:$0x3]
      %v379 = vld [vmem:[%s324 + $0x70] sm:$0xff]
      %v380 = vld [vmem:[%s324 + $0x78] sm:$0x3]
      %v381 = vld [vmem:[%s324 + $0x80] sm:$0xff]
      %v382 = vld [vmem:[%s324 + $0x88] sm:$0x3]
      %v383 = vld [vmem:[%s324 + $0x90] sm:$0xff]
      %v384 = vld [vmem:[%s324 + $0x98] sm:$0x3]
      %v385 = vld [vmem:[%s334] sm:$0xff]
      %v386 = vld [vmem:[%s334 + $0x8] sm:$0x3]
      %v387 = vld [vmem:[%s334 + $0x10] sm:$0xff]
      %v388 = vld [vmem:[%s334 + $0x18] sm:$0x3]
      %v389 = vld [vmem:[%s334 + $0x20] sm:$0xff]
      %v390 = vld [vmem:[%s334 + $0x28] sm:$0x3]
      %v391 = vld [vmem:[%s334 + $0x30] sm:$0xff]
      %v392 = vld [vmem:[%s334 + $0x38] sm:$0x3]
      %v393 = vld [vmem:[%s334 + $0x40] sm:$0xff]
      %v394 = vld [vmem:[%s334 + $0x48] sm:$0x3]
      %v395 = vld [vmem:[%s334 + $0x50] sm:$0xff]
      %v396 = vld [vmem:[%s334 + $0x58] sm:$0x3]
      %v397 = vld [vmem:[%s334 + $0x60] sm:$0xff]
      %v398 = vld [vmem:[%s334 + $0x68] sm:$0x3]
      %v399 = vld [vmem:[%s334 + $0x70] sm:$0xff]
      %v400 = vld [vmem:[%s334 + $0x78] sm:$0x3]
      %v401 = vld [vmem:[%s334 + $0x80] sm:$0xff]
      %v402 = vld [vmem:[%s334 + $0x88] sm:$0x3]
      %v403 = vld [vmem:[%s334 + $0x90] sm:$0xff]
      %v404 = vld [vmem:[%s334 + $0x98] sm:$0x3]
      %v405 = vld [vmem:[%s345] sm:$0xff]
      %v406 = vld [vmem:[%s345 + $0x8] sm:$0x3]
      %v407 = vld [vmem:[%s345 + $0x10] sm:$0xff]
      %v408 = vld [vmem:[%s345 + $0x18] sm:$0x3]
      %v409 = vld [vmem:[%s345 + $0x20] sm:$0xff]
      %v410 = vld [vmem:[%s345 + $0x28] sm:$0x3]
      %v411 = vld [vmem:[%s345 + $0x30] sm:$0xff]
      %v412 = vld [vmem:[%s345 + $0x38] sm:$0x3]
      %v413 = vld [vmem:[%s345 + $0x40] sm:$0xff]
      %v414 = vld [vmem:[%s345 + $0x48] sm:$0x3]
      %v415 = vld [vmem:[%s345 + $0x50] sm:$0xff]
      %v416 = vld [vmem:[%s345 + $0x58] sm:$0x3]
      %v417 = vld [vmem:[%s345 + $0x60] sm:$0xff]
      %v418 = vld [vmem:[%s345 + $0x68] sm:$0x3]
      %v419 = vld [vmem:[%s345 + $0x70] sm:$0xff]
      %v420 = vld [vmem:[%s345 + $0x78] sm:$0x3]
      %v421 = vld [vmem:[%s345 + $0x80] sm:$0xff]
      %v422 = vld [vmem:[%s345 + $0x88] sm:$0x3]
      %v423 = vld [vmem:[%s345 + $0x90] sm:$0xff]
      %v424 = vld [vmem:[%s345 + $0x98] sm:$0x3]
      %vm441 = vcmask 1046528
      %v442 = vrot.slane %v365, 1
      %v443 = vrot.slane %v366, 1
      %v444 = vsel %vm441, %v442, %v443
      %v445 = vrot.slane %v367, 1
      %v446 = vrot.slane %v368, 1
      %v447 = vsel %vm441, %v445, %v446
      %v448 = vrot.slane %v369, 1
      %v449 = vrot.slane %v370, 1
      %v450 = vsel %vm441, %v448, %v449
      %v451 = vrot.slane %v371, 1
      %v452 = vrot.slane %v372, 1
      %v453 = vsel %vm441, %v451, %v452
      %v454 = vrot.slane %v373, 1
      %v455 = vrot.slane %v374, 1
      %v456 = vsel %vm441, %v454, %v455
      %v457 = vrot.slane %v375, 1
      %v458 = vrot.slane %v376, 1
      %v459 = vsel %vm441, %v457, %v458
      %v460 = vrot.slane %v377, 1
      %v461 = vrot.slane %v378, 1
      %v462 = vsel %vm441, %v460, %v461
      %v463 = vrot.slane %v379, 1
      %v464 = vrot.slane %v380, 1
      %v465 = vsel %vm441, %v463, %v464
      %466 = vrot.lane.b32.xlu0 %v444, 8
      %v467 = vpop.permute.xlu0 %466
      %468 = vrot.lane.b32.xlu0 %v447, 8
      %v469 = vpop.permute.xlu0 %468
      %470 = vrot.lane.b32.xlu0 %v450, 8
      %v471 = vpop.permute.xlu0 %470
      %472 = vrot.lane.b32.xlu0 %v453, 8
      %v473 = vpop.permute.xlu0 %472
      %474 = vrot.lane.b32.xlu0 %v456, 8
      %v475 = vpop.permute.xlu0 %474
      %476 = vrot.lane.b32.xlu0 %v459, 8
      %v477 = vpop.permute.xlu0 %476
      %478 = vrot.lane.b32.xlu0 %v462, 8
      %v479 = vpop.permute.xlu0 %478
      %480 = vrot.lane.b32.xlu0 %v465, 8
      %v481 = vpop.permute.xlu0 %480
      %vm490 = vcmask 1045504
      %v491 = vrot.slane %v365, 2
      %v492 = vrot.slane %v366, 2
      %v493 = vsel %vm490, %v491, %v492
      %v494 = vrot.slane %v367, 2
      %v495 = vrot.slane %v368, 2
      %v496 = vsel %vm490, %v494, %v495
      %v497 = vrot.slane %v369, 2
      %v498 = vrot.slane %v370, 2
      %v499 = vsel %vm490, %v497, %v498
      %v500 = vrot.slane %v371, 2
      %v501 = vrot.slane %v372, 2
      %v502 = vsel %vm490, %v500, %v501
      %v503 = vrot.slane %v373, 2
      %v504 = vrot.slane %v374, 2
      %v505 = vsel %vm490, %v503, %v504
      %v506 = vrot.slane %v375, 2
      %v507 = vrot.slane %v376, 2
      %v508 = vsel %vm490, %v506, %v507
      %v509 = vrot.slane %v377, 2
      %v510 = vrot.slane %v378, 2
      %v511 = vsel %vm490, %v509, %v510
      %v512 = vrot.slane %v379, 2
      %v513 = vrot.slane %v380, 2
      %v514 = vsel %vm490, %v512, %v513
      %515 = vrot.lane.b32.xlu0 %v493, 16
      %v516 = vpop.permute.xlu0 %515
      %517 = vrot.lane.b32.xlu0 %v496, 16
      %v518 = vpop.permute.xlu0 %517
      %519 = vrot.lane.b32.xlu0 %v499, 16
      %v520 = vpop.permute.xlu0 %519
      %521 = vrot.lane.b32.xlu0 %v502, 16
      %v522 = vpop.permute.xlu0 %521
      %523 = vrot.lane.b32.xlu0 %v505, 16
      %v524 = vpop.permute.xlu0 %523
      %525 = vrot.lane.b32.xlu0 %v508, 16
      %v526 = vpop.permute.xlu0 %525
      %527 = vrot.lane.b32.xlu0 %v511, 16
      %v528 = vpop.permute.xlu0 %527
      %529 = vrot.lane.b32.xlu0 %v514, 16
      %v530 = vpop.permute.xlu0 %529
      %540 = vrot.lane.b32.xlu0 %v367, 24
      %v541 = vpop.permute.xlu0 %540
      %542 = vrot.lane.b32.xlu0 %v369, 24
      %v543 = vpop.permute.xlu0 %542
      %544 = vrot.lane.b32.xlu0 %v371, 24
      %v545 = vpop.permute.xlu0 %544
      %546 = vrot.lane.b32.xlu0 %v373, 24
      %v547 = vpop.permute.xlu0 %546
      %548 = vrot.lane.b32.xlu0 %v375, 24
      %v549 = vpop.permute.xlu0 %548
      %550 = vrot.lane.b32.xlu0 %v377, 24
      %v551 = vpop.permute.xlu0 %550
      %552 = vrot.lane.b32.xlu0 %v379, 24
      %v553 = vpop.permute.xlu0 %552
      %554 = vrot.lane.b32.xlu0 %v381, 24
      %v555 = vpop.permute.xlu0 %554
      %v565 = vrot.slane %v381, 1
      %v566 = vrot.slane %v382, 1
      %v567 = vsel %vm441, %v565, %v566
      %568 = vrot.lane.b32.xlu0 %v447, 32
      %v569 = vpop.permute.xlu0 %568
      %570 = vrot.lane.b32.xlu0 %v450, 32
      %v571 = vpop.permute.xlu0 %570
      %572 = vrot.lane.b32.xlu0 %v453, 32
      %v573 = vpop.permute.xlu0 %572
      %574 = vrot.lane.b32.xlu0 %v456, 32
      %v575 = vpop.permute.xlu0 %574
      %576 = vrot.lane.b32.xlu0 %v459, 32
      %v577 = vpop.permute.xlu0 %576
      %578 = vrot.lane.b32.xlu0 %v462, 32
      %v579 = vpop.permute.xlu0 %578
      %580 = vrot.lane.b32.xlu0 %v465, 32
      %v581 = vpop.permute.xlu0 %580
      %582 = vrot.lane.b32.xlu0 %v567, 32
      %v583 = vpop.permute.xlu0 %582
      %v592 = vrot.slane %v381, 2
      %v593 = vrot.slane %v382, 2
      %v594 = vsel %vm490, %v592, %v593
      %595 = vrot.lane.b32.xlu0 %v496, 40
      %v596 = vpop.permute.xlu0 %595
      %597 = vrot.lane.b32.xlu0 %v499, 40
      %v598 = vpop.permute.xlu0 %597
      %599 = vrot.lane.b32.xlu0 %v502, 40
      %v600 = vpop.permute.xlu0 %599
      %601 = vrot.lane.b32.xlu0 %v505, 40
      %v602 = vpop.permute.xlu0 %601
      %603 = vrot.lane.b32.xlu0 %v508, 40
      %v604 = vpop.permute.xlu0 %603
      %605 = vrot.lane.b32.xlu0 %v511, 40
      %v606 = vpop.permute.xlu0 %605
      %607 = vrot.lane.b32.xlu0 %v514, 40
      %v608 = vpop.permute.xlu0 %607
      %609 = vrot.lane.b32.xlu0 %v594, 40
      %v610 = vpop.permute.xlu0 %609
      %620 = vrot.lane.b32.xlu0 %v369, 48
      %v621 = vpop.permute.xlu0 %620
      %622 = vrot.lane.b32.xlu0 %v371, 48
      %v623 = vpop.permute.xlu0 %622
      %624 = vrot.lane.b32.xlu0 %v373, 48
      %v625 = vpop.permute.xlu0 %624
      %626 = vrot.lane.b32.xlu0 %v375, 48
      %v627 = vpop.permute.xlu0 %626
      %628 = vrot.lane.b32.xlu0 %v377, 48
      %v629 = vpop.permute.xlu0 %628
      %630 = vrot.lane.b32.xlu0 %v379, 48
      %v631 = vpop.permute.xlu0 %630
      %632 = vrot.lane.b32.xlu0 %v381, 48
      %v633 = vpop.permute.xlu0 %632
      %634 = vrot.lane.b32.xlu0 %v383, 48
      %v635 = vpop.permute.xlu0 %634
      %v645 = vrot.slane %v383, 1
      %v646 = vrot.slane %v384, 1
      %v647 = vsel %vm441, %v645, %v646
      %648 = vrot.lane.b32.xlu0 %v450, 56
      %v649 = vpop.permute.xlu0 %648
      %650 = vrot.lane.b32.xlu0 %v453, 56
      %v651 = vpop.permute.xlu0 %650
      %652 = vrot.lane.b32.xlu0 %v456, 56
      %v653 = vpop.permute.xlu0 %652
      %654 = vrot.lane.b32.xlu0 %v459, 56
      %v655 = vpop.permute.xlu0 %654
      %656 = vrot.lane.b32.xlu0 %v462, 56
      %v657 = vpop.permute.xlu0 %656
      %658 = vrot.lane.b32.xlu0 %v465, 56
      %v659 = vpop.permute.xlu0 %658
      %660 = vrot.lane.b32.xlu0 %v567, 56
      %v661 = vpop.permute.xlu0 %660
      %662 = vrot.lane.b32.xlu0 %v647, 56
      %v663 = vpop.permute.xlu0 %662
      %v672 = vrot.slane %v383, 2
      %v673 = vrot.slane %v384, 2
      %v674 = vsel %vm490, %v672, %v673
      %675 = vrot.lane.b32.xlu0 %v499, 64
      %v676 = vpop.permute.xlu0 %675
      %677 = vrot.lane.b32.xlu0 %v502, 64
      %v678 = vpop.permute.xlu0 %677
      %679 = vrot.lane.b32.xlu0 %v505, 64
      %v680 = vpop.permute.xlu0 %679
      %681 = vrot.lane.b32.xlu0 %v508, 64
      %v682 = vpop.permute.xlu0 %681
      %683 = vrot.lane.b32.xlu0 %v511, 64
      %v684 = vpop.permute.xlu0 %683
      %685 = vrot.lane.b32.xlu0 %v514, 64
      %v686 = vpop.permute.xlu0 %685
      %687 = vrot.lane.b32.xlu0 %v594, 64
      %v688 = vpop.permute.xlu0 %687
      %689 = vrot.lane.b32.xlu0 %v674, 64
      %v690 = vpop.permute.xlu0 %689
      %707 = vrot.lane.b32.xlu0 %v385, 72
      %v708 = vpop.permute.xlu0 %707
      %709 = vrot.lane.b32.xlu0 %v387, 72
      %v710 = vpop.permute.xlu0 %709
      %711 = vrot.lane.b32.xlu0 %v389, 72
      %v712 = vpop.permute.xlu0 %711
      %713 = vrot.lane.b32.xlu0 %v391, 72
      %v714 = vpop.permute.xlu0 %713
      %715 = vrot.lane.b32.xlu0 %v393, 72
      %v716 = vpop.permute.xlu0 %715
      %717 = vrot.lane.b32.xlu0 %v395, 72
      %v718 = vpop.permute.xlu0 %717
      %719 = vrot.lane.b32.xlu0 %v397, 72
      %v720 = vpop.permute.xlu0 %719
      %721 = vrot.lane.b32.xlu0 %v399, 72
      %v722 = vpop.permute.xlu0 %721
      %v739 = vrot.slane %v385, 1
      %v740 = vrot.slane %v386, 1
      %v741 = vsel %vm441, %v739, %v740
      %v742 = vrot.slane %v387, 1
      %v743 = vrot.slane %v388, 1
      %v744 = vsel %vm441, %v742, %v743
      %v745 = vrot.slane %v389, 1
      %v746 = vrot.slane %v390, 1
      %v747 = vsel %vm441, %v745, %v746
      %v748 = vrot.slane %v391, 1
      %v749 = vrot.slane %v392, 1
      %v750 = vsel %vm441, %v748, %v749
      %v751 = vrot.slane %v393, 1
      %v752 = vrot.slane %v394, 1
      %v753 = vsel %vm441, %v751, %v752
      %v754 = vrot.slane %v395, 1
      %v755 = vrot.slane %v396, 1
      %v756 = vsel %vm441, %v754, %v755
      %v757 = vrot.slane %v397, 1
      %v758 = vrot.slane %v398, 1
      %v759 = vsel %vm441, %v757, %v758
      %v760 = vrot.slane %v399, 1
      %v761 = vrot.slane %v400, 1
      %v762 = vsel %vm441, %v760, %v761
      %763 = vrot.lane.b32.xlu0 %v741, 80
      %v764 = vpop.permute.xlu0 %763
      %765 = vrot.lane.b32.xlu0 %v744, 80
      %v766 = vpop.permute.xlu0 %765
      %767 = vrot.lane.b32.xlu0 %v747, 80
      %v768 = vpop.permute.xlu0 %767
      %769 = vrot.lane.b32.xlu0 %v750, 80
      %v770 = vpop.permute.xlu0 %769
      %771 = vrot.lane.b32.xlu0 %v753, 80
      %v772 = vpop.permute.xlu0 %771
      %773 = vrot.lane.b32.xlu0 %v756, 80
      %v774 = vpop.permute.xlu0 %773
      %775 = vrot.lane.b32.xlu0 %v759, 80
      %v776 = vpop.permute.xlu0 %775
      %777 = vrot.lane.b32.xlu0 %v762, 80
      %v778 = vpop.permute.xlu0 %777
      %v787 = vrot.slane %v385, 2
      %v788 = vrot.slane %v386, 2
      %v789 = vsel %vm490, %v787, %v788
      %v790 = vrot.slane %v387, 2
      %v791 = vrot.slane %v388, 2
      %v792 = vsel %vm490, %v790, %v791
      %v793 = vrot.slane %v389, 2
      %v794 = vrot.slane %v390, 2
      %v795 = vsel %vm490, %v793, %v794
      %v796 = vrot.slane %v391, 2
      %v797 = vrot.slane %v392, 2
      %v798 = vsel %vm490, %v796, %v797
      %v799 = vrot.slane %v393, 2
      %v800 = vrot.slane %v394, 2
      %v801 = vsel %vm490, %v799, %v800
      %v802 = vrot.slane %v395, 2
      %v803 = vrot.slane %v396, 2
      %v804 = vsel %vm490, %v802, %v803
      %v805 = vrot.slane %v397, 2
      %v806 = vrot.slane %v398, 2
      %v807 = vsel %vm490, %v805, %v806
      %v808 = vrot.slane %v399, 2
      %v809 = vrot.slane %v400, 2
      %v810 = vsel %vm490, %v808, %v809
      %811 = vrot.lane.b32.xlu0 %v789, 88
      %v812 = vpop.permute.xlu0 %811
      %813 = vrot.lane.b32.xlu0 %v792, 88
      %v814 = vpop.permute.xlu0 %813
      %815 = vrot.lane.b32.xlu0 %v795, 88
      %v816 = vpop.permute.xlu0 %815
      %817 = vrot.lane.b32.xlu0 %v798, 88
      %v818 = vpop.permute.xlu0 %817
      %819 = vrot.lane.b32.xlu0 %v801, 88
      %v820 = vpop.permute.xlu0 %819
      %821 = vrot.lane.b32.xlu0 %v804, 88
      %v822 = vpop.permute.xlu0 %821
      %823 = vrot.lane.b32.xlu0 %v807, 88
      %v824 = vpop.permute.xlu0 %823
      %825 = vrot.lane.b32.xlu0 %v810, 88
      %v826 = vpop.permute.xlu0 %825
      %836 = vrot.lane.b32.xlu0 %v387, 96
      %v837 = vpop.permute.xlu0 %836
      %838 = vrot.lane.b32.xlu0 %v389, 96
      %v839 = vpop.permute.xlu0 %838
      %840 = vrot.lane.b32.xlu0 %v391, 96
      %v841 = vpop.permute.xlu0 %840
      %842 = vrot.lane.b32.xlu0 %v393, 96
      %v843 = vpop.permute.xlu0 %842
      %844 = vrot.lane.b32.xlu0 %v395, 96
      %v845 = vpop.permute.xlu0 %844
      %846 = vrot.lane.b32.xlu0 %v397, 96
      %v847 = vpop.permute.xlu0 %846
      %848 = vrot.lane.b32.xlu0 %v399, 96
      %v849 = vpop.permute.xlu0 %848
      %850 = vrot.lane.b32.xlu0 %v401, 96
      %v851 = vpop.permute.xlu0 %850
      %v861 = vrot.slane %v401, 1
      %v862 = vrot.slane %v402, 1
      %v863 = vsel %vm441, %v861, %v862
      %864 = vrot.lane.b32.xlu0 %v744, 104
      %v865 = vpop.permute.xlu0 %864
      %866 = vrot.lane.b32.xlu0 %v747, 104
      %v867 = vpop.permute.xlu0 %866
      %868 = vrot.lane.b32.xlu0 %v750, 104
      %v869 = vpop.permute.xlu0 %868
      %870 = vrot.lane.b32.xlu0 %v753, 104
      %v871 = vpop.permute.xlu0 %870
      %872 = vrot.lane.b32.xlu0 %v756, 104
      %v873 = vpop.permute.xlu0 %872
      %874 = vrot.lane.b32.xlu0 %v759, 104
      %v875 = vpop.permute.xlu0 %874
      %876 = vrot.lane.b32.xlu0 %v762, 104
      %v877 = vpop.permute.xlu0 %876
      %878 = vrot.lane.b32.xlu0 %v863, 104
      %v879 = vpop.permute.xlu0 %878
      %v888 = vrot.slane %v401, 2
      %v889 = vrot.slane %v402, 2
      %v890 = vsel %vm490, %v888, %v889
      %891 = vrot.lane.b32.xlu0 %v792, 112
      %v892 = vpop.permute.xlu0 %891
      %893 = vrot.lane.b32.xlu0 %v795, 112
      %v894 = vpop.permute.xlu0 %893
      %895 = vrot.lane.b32.xlu0 %v798, 112
      %v896 = vpop.permute.xlu0 %895
      %897 = vrot.lane.b32.xlu0 %v801, 112
      %v898 = vpop.permute.xlu0 %897
      %899 = vrot.lane.b32.xlu0 %v804, 112
      %v900 = vpop.permute.xlu0 %899
      %901 = vrot.lane.b32.xlu0 %v807, 112
      %v902 = vpop.permute.xlu0 %901
      %903 = vrot.lane.b32.xlu0 %v810, 112
      %v904 = vpop.permute.xlu0 %903
      %905 = vrot.lane.b32.xlu0 %v890, 112
      %v906 = vpop.permute.xlu0 %905
      %916 = vrot.lane.b32.xlu0 %v389, 120
      %v917 = vpop.permute.xlu0 %916
      %918 = vrot.lane.b32.xlu0 %v391, 120
      %v919 = vpop.permute.xlu0 %918
      %920 = vrot.lane.b32.xlu0 %v393, 120
      %v921 = vpop.permute.xlu0 %920
      %922 = vrot.lane.b32.xlu0 %v395, 120
      %v923 = vpop.permute.xlu0 %922
      %924 = vrot.lane.b32.xlu0 %v397, 120
      %v925 = vpop.permute.xlu0 %924
      %926 = vrot.lane.b32.xlu0 %v399, 120
      %v927 = vpop.permute.xlu0 %926
      %928 = vrot.lane.b32.xlu0 %v401, 120
      %v929 = vpop.permute.xlu0 %928
      %930 = vrot.lane.b32.xlu0 %v403, 120
      %v931 = vpop.permute.xlu0 %930
      %vm940 = vcmask 64512
      %v941 = vsel %vm940, %v365, %v467
      %v942 = vsel %vm940, %v367, %v469
      %v943 = vsel %vm940, %v369, %v471
      %v944 = vsel %vm940, %v371, %v473
      %v945 = vsel %vm940, %v373, %v475
      %v946 = vsel %vm940, %v375, %v477
      %v947 = vsel %vm940, %v377, %v479
      %v948 = vsel %vm940, %v379, %v481
      %vm949 = vcmask 130048
      %v950 = vsel %vm949, %v941, %v516
      %v951 = vsel %vm949, %v942, %v518
      %v952 = vsel %vm949, %v943, %v520
      %v953 = vsel %vm949, %v944, %v522
      %v954 = vsel %vm949, %v945, %v524
      %v955 = vsel %vm949, %v946, %v526
      %v956 = vsel %vm949, %v947, %v528
      %v957 = vsel %vm949, %v948, %v530
      %vm958 = vcmask 195584
      %v959 = vsel %vm958, %v950, %v541
      %v960 = vsel %vm958, %v951, %v543
      %v961 = vsel %vm958, %v952, %v545
      %v962 = vsel %vm958, %v953, %v547
      %v963 = vsel %vm958, %v954, %v549
      %v964 = vsel %vm958, %v955, %v551
      %v965 = vsel %vm958, %v956, %v553
      %v966 = vsel %vm958, %v957, %v555
      %vm967 = vcmask 261120
      %v968 = vsel %vm967, %v959, %v569
      %v969 = vsel %vm967, %v960, %v571
      %v970 = vsel %vm967, %v961, %v573
      %v971 = vsel %vm967, %v962, %v575
      %v972 = vsel %vm967, %v963, %v577
      %v973 = vsel %vm967, %v964, %v579
      %v974 = vsel %vm967, %v965, %v581
      %v975 = vsel %vm967, %v966, %v583
      %vm976 = vcmask 326656
      %v977 = vsel %vm976, %v968, %v596
      %v978 = vsel %vm976, %v969, %v598
      %v979 = vsel %vm976, %v970, %v600
      %v980 = vsel %vm976, %v971, %v602
      %v981 = vsel %vm976, %v972, %v604
      %v982 = vsel %vm976, %v973, %v606
      %v983 = vsel %vm976, %v974, %v608
      %v984 = vsel %vm976, %v975, %v610
      %vm985 = vcmask 392192
      %v986 = vsel %vm985, %v977, %v621
      %v987 = vsel %vm985, %v978, %v623
      %v988 = vsel %vm985, %v979, %v625
      %v989 = vsel %vm985, %v980, %v627
      %v990 = vsel %vm985, %v981, %v629
      %v991 = vsel %vm985, %v982, %v631
      %v992 = vsel %vm985, %v983, %v633
      %v993 = vsel %vm985, %v984, %v635
      %vm994 = vcmask 457728
      %v995 = vsel %vm994, %v986, %v649
      %v996 = vsel %vm994, %v987, %v651
      %v997 = vsel %vm994, %v988, %v653
      %v998 = vsel %vm994, %v989, %v655
      %v999 = vsel %vm994, %v990, %v657
      %v1000 = vsel %vm994, %v991, %v659
      %v1001 = vsel %vm994, %v992, %v661
      %v1002 = vsel %vm994, %v993, %v663
      %vm1003 = vcmask 523264
      %v1004 = vsel %vm1003, %v995, %v676
      %v1005 = vsel %vm1003, %v996, %v678
      %v1006 = vsel %vm1003, %v997, %v680
      %v1007 = vsel %vm1003, %v998, %v682
      %v1008 = vsel %vm1003, %v999, %v684
      %v1009 = vsel %vm1003, %v1000, %v686
      %v1010 = vsel %vm1003, %v1001, %v688
      %v1011 = vsel %vm1003, %v1002, %v690
      %vm1012 = vcmask 588800
      %v1013 = vsel %vm1012, %v1004, %v708
      %v1014 = vsel %vm1012, %v1005, %v710
      %v1015 = vsel %vm1012, %v1006, %v712
      %v1016 = vsel %vm1012, %v1007, %v714
      %v1017 = vsel %vm1012, %v1008, %v716
      %v1018 = vsel %vm1012, %v1009, %v718
      %v1019 = vsel %vm1012, %v1010, %v720
      %v1020 = vsel %vm1012, %v1011, %v722
      %vm1021 = vcmask 654336
      %v1022 = vsel %vm1021, %v1013, %v764
      %v1023 = vsel %vm1021, %v1014, %v766
      %v1024 = vsel %vm1021, %v1015, %v768
      %v1025 = vsel %vm1021, %v1016, %v770
      %v1026 = vsel %vm1021, %v1017, %v772
      %v1027 = vsel %vm1021, %v1018, %v774
      %v1028 = vsel %vm1021, %v1019, %v776
      %v1029 = vsel %vm1021, %v1020, %v778
      %vm1030 = vcmask 719872
      %v1031 = vsel %vm1030, %v1022, %v812
      %v1032 = vsel %vm1030, %v1023, %v814
      %v1033 = vsel %vm1030, %v1024, %v816
      %v1034 = vsel %vm1030, %v1025, %v818
      %v1035 = vsel %vm1030, %v1026, %v820
      %v1036 = vsel %vm1030, %v1027, %v822
      %v1037 = vsel %vm1030, %v1028, %v824
      %v1038 = vsel %vm1030, %v1029, %v826
      %vm1039 = vcmask 785408
      %v1040 = vsel %vm1039, %v1031, %v837
      %v1041 = vsel %vm1039, %v1032, %v839
      %v1042 = vsel %vm1039, %v1033, %v841
      %v1043 = vsel %vm1039, %v1034, %v843
      %v1044 = vsel %vm1039, %v1035, %v845
      %v1045 = vsel %vm1039, %v1036, %v847
      %v1046 = vsel %vm1039, %v1037, %v849
      %v1047 = vsel %vm1039, %v1038, %v851
      %vm1048 = vcmask 850944
      %v1049 = vsel %vm1048, %v1040, %v865
      %v1050 = vsel %vm1048, %v1041, %v867
      %v1051 = vsel %vm1048, %v1042, %v869
      %v1052 = vsel %vm1048, %v1043, %v871
      %v1053 = vsel %vm1048, %v1044, %v873
      %v1054 = vsel %vm1048, %v1045, %v875
      %v1055 = vsel %vm1048, %v1046, %v877
      %v1056 = vsel %vm1048, %v1047, %v879
      %vm1057 = vcmask 916480
      %v1058 = vsel %vm1057, %v1049, %v892
      %v1059 = vsel %vm1057, %v1050, %v894
      %v1060 = vsel %vm1057, %v1051, %v896
      %v1061 = vsel %vm1057, %v1052, %v898
      %v1062 = vsel %vm1057, %v1053, %v900
      %v1063 = vsel %vm1057, %v1054, %v902
      %v1064 = vsel %vm1057, %v1055, %v904
      %v1065 = vsel %vm1057, %v1056, %v906
      %vm1066 = vcmask 982016
      %v1067 = vsel %vm1066, %v1058, %v917
      %v1068 = vsel %vm1066, %v1059, %v919
      %v1069 = vsel %vm1066, %v1060, %v921
      %v1070 = vsel %vm1066, %v1061, %v923
      %v1071 = vsel %vm1066, %v1062, %v925
      %v1072 = vsel %vm1066, %v1063, %v927
      %v1073 = vsel %vm1066, %v1064, %v929
      %v1074 = vsel %vm1066, %v1065, %v931
      %v1076 = vrot.slane %v403, 1
      %v1077 = vrot.slane %v404, 1
      %v1078 = vsel %vm441, %v1076, %v1077
      %1079 = vrot.lane.b32.xlu0 %v747, 8
      %v1080 = vpop.permute.xlu0 %1079
      %1081 = vrot.lane.b32.xlu0 %v746, 8
      %v1082 = vpop.permute.xlu0 %1081
      %1083 = vrot.lane.b32.xlu0 %v750, 8
      %v1084 = vpop.permute.xlu0 %1083
      %1085 = vrot.lane.b32.xlu0 %v749, 8
      %v1086 = vpop.permute.xlu0 %1085
      %1087 = vrot.lane.b32.xlu0 %v753, 8
      %v1088 = vpop.permute.xlu0 %1087
      %1089 = vrot.lane.b32.xlu0 %v752, 8
      %v1090 = vpop.permute.xlu0 %1089
      %1091 = vrot.lane.b32.xlu0 %v756, 8
      %v1092 = vpop.permute.xlu0 %1091
      %1093 = vrot.lane.b32.xlu0 %v755, 8
      %v1094 = vpop.permute.xlu0 %1093
      %1095 = vrot.lane.b32.xlu0 %v759, 8
      %v1096 = vpop.permute.xlu0 %1095
      %1097 = vrot.lane.b32.xlu0 %v758, 8
      %v1098 = vpop.permute.xlu0 %1097
      %1099 = vrot.lane.b32.xlu0 %v762, 8
      %v1100 = vpop.permute.xlu0 %1099
      %1101 = vrot.lane.b32.xlu0 %v761, 8
      %v1102 = vpop.permute.xlu0 %1101
      %1103 = vrot.lane.b32.xlu0 %v863, 8
      %v1104 = vpop.permute.xlu0 %1103
      %1105 = vrot.lane.b32.xlu0 %v862, 8
      %v1106 = vpop.permute.xlu0 %1105
      %1107 = vrot.lane.b32.xlu0 %v1078, 8
      %v1108 = vpop.permute.xlu0 %1107
      %1109 = vrot.lane.b32.xlu0 %v1077, 8
      %v1110 = vpop.permute.xlu0 %1109
      %v1135 = vrot.slane %v405, 7
      %v1136 = vrot.slane %v407, 7
      %v1137 = vrot.slane %v409, 7
      %v1138 = vrot.slane %v411, 7
      %v1139 = vrot.slane %v413, 7
      %v1140 = vrot.slane %v415, 7
      %v1141 = vrot.slane %v417, 7
      %v1142 = vrot.slane %v419, 7
      %1143 = vrot.lane.b32.xlu0 %v1135, 16
      %v1144 = vpop.permute.xlu0 %1143
      %1145 = vrot.lane.b32.xlu0 %v1136, 16
      %v1146 = vpop.permute.xlu0 %1145
      %1147 = vrot.lane.b32.xlu0 %v1137, 16
      %v1148 = vpop.permute.xlu0 %1147
      %1149 = vrot.lane.b32.xlu0 %v1138, 16
      %v1150 = vpop.permute.xlu0 %1149
      %1151 = vrot.lane.b32.xlu0 %v1139, 16
      %v1152 = vpop.permute.xlu0 %1151
      %1153 = vrot.lane.b32.xlu0 %v1140, 16
      %v1154 = vpop.permute.xlu0 %1153
      %1155 = vrot.lane.b32.xlu0 %v1141, 16
      %v1156 = vpop.permute.xlu0 %1155
      %1157 = vrot.lane.b32.xlu0 %v1142, 16
      %v1158 = vpop.permute.xlu0 %1157
      %1175 = vrot.lane.b32.xlu0 %v405, 24
      %v1176 = vpop.permute.xlu0 %1175
      %1177 = vrot.lane.b32.xlu0 %v406, 24
      %v1178 = vpop.permute.xlu0 %1177
      %1179 = vrot.lane.b32.xlu0 %v407, 24
      %v1180 = vpop.permute.xlu0 %1179
      %1181 = vrot.lane.b32.xlu0 %v408, 24
      %v1182 = vpop.permute.xlu0 %1181
      %1183 = vrot.lane.b32.xlu0 %v409, 24
      %v1184 = vpop.permute.xlu0 %1183
      %1185 = vrot.lane.b32.xlu0 %v410, 24
      %v1186 = vpop.permute.xlu0 %1185
      %1187 = vrot.lane.b32.xlu0 %v411, 24
      %v1188 = vpop.permute.xlu0 %1187
      %1189 = vrot.lane.b32.xlu0 %v412, 24
      %v1190 = vpop.permute.xlu0 %1189
      %1191 = vrot.lane.b32.xlu0 %v413, 24
      %v1192 = vpop.permute.xlu0 %1191
      %1193 = vrot.lane.b32.xlu0 %v414, 24
      %v1194 = vpop.permute.xlu0 %1193
      %1195 = vrot.lane.b32.xlu0 %v415, 24
      %v1196 = vpop.permute.xlu0 %1195
      %1197 = vrot.lane.b32.xlu0 %v416, 24
      %v1198 = vpop.permute.xlu0 %1197
      %1199 = vrot.lane.b32.xlu0 %v417, 24
      %v1200 = vpop.permute.xlu0 %1199
      %1201 = vrot.lane.b32.xlu0 %v418, 24
      %v1202 = vpop.permute.xlu0 %1201
      %1203 = vrot.lane.b32.xlu0 %v419, 24
      %v1204 = vpop.permute.xlu0 %1203
      %1205 = vrot.lane.b32.xlu0 %v420, 24
      %v1206 = vpop.permute.xlu0 %1205
      %v1223 = vrot.slane %v405, 1
      %v1224 = vrot.slane %v406, 1
      %v1225 = vsel %vm441, %v1223, %v1224
      %v1226 = vrot.slane %v407, 1
      %v1227 = vrot.slane %v408, 1
      %v1228 = vsel %vm441, %v1226, %v1227
      %v1229 = vrot.slane %v409, 1
      %v1230 = vrot.slane %v410, 1
      %v1231 = vsel %vm441, %v1229, %v1230
      %v1232 = vrot.slane %v411, 1
      %v1233 = vrot.slane %v412, 1
      %v1234 = vsel %vm441, %v1232, %v1233
      %v1235 = vrot.slane %v413, 1
      %v1236 = vrot.slane %v414, 1
      %v1237 = vsel %vm441, %v1235, %v1236
      %v1238 = vrot.slane %v415, 1
      %v1239 = vrot.slane %v416, 1
      %v1240 = vsel %vm441, %v1238, %v1239
      %v1241 = vrot.slane %v417, 1
      %v1242 = vrot.slane %v418, 1
      %v1243 = vsel %vm441, %v1241, %v1242
      %v1244 = vrot.slane %v419, 1
      %v1245 = vrot.slane %v420, 1
      %v1246 = vsel %vm441, %v1244, %v1245
      %1247 = vrot.lane.b32.xlu0 %v1225, 32
      %v1248 = vpop.permute.xlu0 %1247
      %1249 = vrot.lane.b32.xlu0 %v1224, 32
      %v1250 = vpop.permute.xlu0 %1249
      %1251 = vrot.lane.b32.xlu0 %v1228, 32
      %v1252 = vpop.permute.xlu0 %1251
      %1253 = vrot.lane.b32.xlu0 %v1227, 32
      %v1254 = vpop.permute.xlu0 %1253
      %1255 = vrot.lane.b32.xlu0 %v1231, 32
      %v1256 = vpop.permute.xlu0 %1255
      %1257 = vrot.lane.b32.xlu0 %v1230, 32
      %v1258 = vpop.permute.xlu0 %1257
      %1259 = vrot.lane.b32.xlu0 %v1234, 32
      %v1260 = vpop.permute.xlu0 %1259
      %1261 = vrot.lane.b32.xlu0 %v1233, 32
      %v1262 = vpop.permute.xlu0 %1261
      %1263 = vrot.lane.b32.xlu0 %v1237, 32
      %v1264 = vpop.permute.xlu0 %1263
      %1265 = vrot.lane.b32.xlu0 %v1236, 32
      %v1266 = vpop.permute.xlu0 %1265
      %1267 = vrot.lane.b32.xlu0 %v1240, 32
      %v1268 = vpop.permute.xlu0 %1267
      %1269 = vrot.lane.b32.xlu0 %v1239, 32
      %v1270 = vpop.permute.xlu0 %1269
      %1271 = vrot.lane.b32.xlu0 %v1243, 32
      %v1272 = vpop.permute.xlu0 %1271
      %1273 = vrot.lane.b32.xlu0 %v1242, 32
      %v1274 = vpop.permute.xlu0 %1273
      %1275 = vrot.lane.b32.xlu0 %v1246, 32
      %v1276 = vpop.permute.xlu0 %1275
      %1277 = vrot.lane.b32.xlu0 %v1245, 32
      %v1278 = vpop.permute.xlu0 %1277
      %v1296 = vrot.slane %v421, 7
      %1297 = vrot.lane.b32.xlu0 %v1136, 40
      %v1298 = vpop.permute.xlu0 %1297
      %1299 = vrot.lane.b32.xlu0 %v1137, 40
      %v1300 = vpop.permute.xlu0 %1299
      %1301 = vrot.lane.b32.xlu0 %v1138, 40
      %v1302 = vpop.permute.xlu0 %1301
      %1303 = vrot.lane.b32.xlu0 %v1139, 40
      %v1304 = vpop.permute.xlu0 %1303
      %1305 = vrot.lane.b32.xlu0 %v1140, 40
      %v1306 = vpop.permute.xlu0 %1305
      %1307 = vrot.lane.b32.xlu0 %v1141, 40
      %v1308 = vpop.permute.xlu0 %1307
      %1309 = vrot.lane.b32.xlu0 %v1142, 40
      %v1310 = vpop.permute.xlu0 %1309
      %1311 = vrot.lane.b32.xlu0 %v1296, 40
      %v1312 = vpop.permute.xlu0 %1311
      %1322 = vrot.lane.b32.xlu0 %v407, 48
      %v1323 = vpop.permute.xlu0 %1322
      %1324 = vrot.lane.b32.xlu0 %v408, 48
      %v1325 = vpop.permute.xlu0 %1324
      %1326 = vrot.lane.b32.xlu0 %v409, 48
      %v1327 = vpop.permute.xlu0 %1326
      %1328 = vrot.lane.b32.xlu0 %v410, 48
      %v1329 = vpop.permute.xlu0 %1328
      %1330 = vrot.lane.b32.xlu0 %v411, 48
      %v1331 = vpop.permute.xlu0 %1330
      %1332 = vrot.lane.b32.xlu0 %v412, 48
      %v1333 = vpop.permute.xlu0 %1332
      %1334 = vrot.lane.b32.xlu0 %v413, 48
      %v1335 = vpop.permute.xlu0 %1334
      %1336 = vrot.lane.b32.xlu0 %v414, 48
      %v1337 = vpop.permute.xlu0 %1336
      %1338 = vrot.lane.b32.xlu0 %v415, 48
      %v1339 = vpop.permute.xlu0 %1338
      %1340 = vrot.lane.b32.xlu0 %v416, 48
      %v1341 = vpop.permute.xlu0 %1340
      %1342 = vrot.lane.b32.xlu0 %v417, 48
      %v1343 = vpop.permute.xlu0 %1342
      %1344 = vrot.lane.b32.xlu0 %v418, 48
      %v1345 = vpop.permute.xlu0 %1344
      %1346 = vrot.lane.b32.xlu0 %v419, 48
      %v1347 = vpop.permute.xlu0 %1346
      %1348 = vrot.lane.b32.xlu0 %v420, 48
      %v1349 = vpop.permute.xlu0 %1348
      %1350 = vrot.lane.b32.xlu0 %v421, 48
      %v1351 = vpop.permute.xlu0 %1350
      %1352 = vrot.lane.b32.xlu0 %v422, 48
      %v1353 = vpop.permute.xlu0 %1352
      %v1370 = vrot.slane %v421, 1
      %v1371 = vrot.slane %v422, 1
      %v1372 = vsel %vm441, %v1370, %v1371
      %1373 = vrot.lane.b32.xlu0 %v1228, 56
      %v1374 = vpop.permute.xlu0 %1373
      %1375 = vrot.lane.b32.xlu0 %v1227, 56
      %v1376 = vpop.permute.xlu0 %1375
      %1377 = vrot.lane.b32.xlu0 %v1231, 56
      %v1378 = vpop.permute.xlu0 %1377
      %1379 = vrot.lane.b32.xlu0 %v1230, 56
      %v1380 = vpop.permute.xlu0 %1379
      %1381 = vrot.lane.b32.xlu0 %v1234, 56
      %v1382 = vpop.permute.xlu0 %1381
      %1383 = vrot.lane.b32.xlu0 %v1233, 56
      %v1384 = vpop.permute.xlu0 %1383
      %1385 = vrot.lane.b32.xlu0 %v1237, 56
      %v1386 = vpop.permute.xlu0 %1385
      %1387 = vrot.lane.b32.xlu0 %v1236, 56
      %v1388 = vpop.permute.xlu0 %1387
      %1389 = vrot.lane.b32.xlu0 %v1240, 56
      %v1390 = vpop.permute.xlu0 %1389
      %1391 = vrot.lane.b32.xlu0 %v1239, 56
      %v1392 = vpop.permute.xlu0 %1391
      %1393 = vrot.lane.b32.xlu0 %v1243, 56
      %v1394 = vpop.permute.xlu0 %1393
      %1395 = vrot.lane.b32.xlu0 %v1242, 56
      %v1396 = vpop.permute.xlu0 %1395
      %1397 = vrot.lane.b32.xlu0 %v1246, 56
      %v1398 = vpop.permute.xlu0 %1397
      %1399 = vrot.lane.b32.xlu0 %v1245, 56
      %v1400 = vpop.permute.xlu0 %1399
      %1401 = vrot.lane.b32.xlu0 %v1372, 56
      %v1402 = vpop.permute.xlu0 %1401
      %1403 = vrot.lane.b32.xlu0 %v1371, 56
      %v1404 = vpop.permute.xlu0 %1403
      %v1422 = vrot.slane %v423, 7
      %1423 = vrot.lane.b32.xlu0 %v1137, 64
      %v1424 = vpop.permute.xlu0 %1423
      %1425 = vrot.lane.b32.xlu0 %v1138, 64
      %v1426 = vpop.permute.xlu0 %1425
      %1427 = vrot.lane.b32.xlu0 %v1139, 64
      %v1428 = vpop.permute.xlu0 %1427
      %1429 = vrot.lane.b32.xlu0 %v1140, 64
      %v1430 = vpop.permute.xlu0 %1429
      %1431 = vrot.lane.b32.xlu0 %v1141, 64
      %v1432 = vpop.permute.xlu0 %1431
      %1433 = vrot.lane.b32.xlu0 %v1142, 64
      %v1434 = vpop.permute.xlu0 %1433
      %1435 = vrot.lane.b32.xlu0 %v1296, 64
      %v1436 = vpop.permute.xlu0 %1435
      %1437 = vrot.lane.b32.xlu0 %v1422, 64
      %v1438 = vpop.permute.xlu0 %1437
      %1448 = vrot.lane.b32.xlu0 %v409, 72
      %v1449 = vpop.permute.xlu0 %1448
      %1450 = vrot.lane.b32.xlu0 %v410, 72
      %v1451 = vpop.permute.xlu0 %1450
      %1452 = vrot.lane.b32.xlu0 %v411, 72
      %v1453 = vpop.permute.xlu0 %1452
      %1454 = vrot.lane.b32.xlu0 %v412, 72
      %v1455 = vpop.permute.xlu0 %1454
      %1456 = vrot.lane.b32.xlu0 %v413, 72
      %v1457 = vpop.permute.xlu0 %1456
      %1458 = vrot.lane.b32.xlu0 %v414, 72
      %v1459 = vpop.permute.xlu0 %1458
      %1460 = vrot.lane.b32.xlu0 %v415, 72
      %v1461 = vpop.permute.xlu0 %1460
      %1462 = vrot.lane.b32.xlu0 %v416, 72
      %v1463 = vpop.permute.xlu0 %1462
      %1464 = vrot.lane.b32.xlu0 %v417, 72
      %v1465 = vpop.permute.xlu0 %1464
      %1466 = vrot.lane.b32.xlu0 %v418, 72
      %v1467 = vpop.permute.xlu0 %1466
      %1468 = vrot.lane.b32.xlu0 %v419, 72
      %v1469 = vpop.permute.xlu0 %1468
      %1470 = vrot.lane.b32.xlu0 %v420, 72
      %v1471 = vpop.permute.xlu0 %1470
      %1472 = vrot.lane.b32.xlu0 %v421, 72
      %v1473 = vpop.permute.xlu0 %1472
      %1474 = vrot.lane.b32.xlu0 %v422, 72
      %v1475 = vpop.permute.xlu0 %1474
      %1476 = vrot.lane.b32.xlu0 %v423, 72
      %v1477 = vpop.permute.xlu0 %1476
      %1478 = vrot.lane.b32.xlu0 %v424, 72
      %v1479 = vpop.permute.xlu0 %1478
      %v1496 = vrot.slane %v423, 1
      %v1497 = vrot.slane %v424, 1
      %v1498 = vsel %vm441, %v1496, %v1497
      %1499 = vrot.lane.b32.xlu0 %v1231, 80
      %v1500 = vpop.permute.xlu0 %1499
      %1501 = vrot.lane.b32.xlu0 %v1230, 80
      %v1502 = vpop.permute.xlu0 %1501
      %1503 = vrot.lane.b32.xlu0 %v1234, 80
      %v1504 = vpop.permute.xlu0 %1503
      %1505 = vrot.lane.b32.xlu0 %v1233, 80
      %v1506 = vpop.permute.xlu0 %1505
      %1507 = vrot.lane.b32.xlu0 %v1237, 80
      %v1508 = vpop.permute.xlu0 %1507
      %1509 = vrot.lane.b32.xlu0 %v1236, 80
      %v1510 = vpop.permute.xlu0 %1509
      %1511 = vrot.lane.b32.xlu0 %v1240, 80
      %v1512 = vpop.permute.xlu0 %1511
      %1513 = vrot.lane.b32.xlu0 %v1239, 80
      %v1514 = vpop.permute.xlu0 %1513
      %1515 = vrot.lane.b32.xlu0 %v1243, 80
      %v1516 = vpop.permute.xlu0 %1515
      %1517 = vrot.lane.b32.xlu0 %v1242, 80
      %v1518 = vpop.permute.xlu0 %1517
      %1519 = vrot.lane.b32.xlu0 %v1246, 80
      %v1520 = vpop.permute.xlu0 %1519
      %1521 = vrot.lane.b32.xlu0 %v1245, 80
      %v1522 = vpop.permute.xlu0 %1521
      %1523 = vrot.lane.b32.xlu0 %v1372, 80
      %v1524 = vpop.permute.xlu0 %1523
      %1525 = vrot.lane.b32.xlu0 %v1371, 80
      %v1526 = vpop.permute.xlu0 %1525
      %1527 = vrot.lane.b32.xlu0 %v1498, 80
      %v1528 = vpop.permute.xlu0 %1527
      %1529 = vrot.lane.b32.xlu0 %v1497, 80
      %v1530 = vpop.permute.xlu0 %1529
      %v1547 = vsel %vm940, %v389, %v1080
      %v1548 = vsel %vm940, %v390, %v1082
      %v1549 = vsel %vm940, %v391, %v1084
      %v1550 = vsel %vm940, %v392, %v1086
      %v1551 = vsel %vm940, %v393, %v1088
      %v1552 = vsel %vm940, %v394, %v1090
      %v1553 = vsel %vm940, %v395, %v1092
      %v1554 = vsel %vm940, %v396, %v1094
      %v1555 = vsel %vm940, %v397, %v1096
      %v1556 = vsel %vm940, %v398, %v1098
      %v1557 = vsel %vm940, %v399, %v1100
      %v1558 = vsel %vm940, %v400, %v1102
      %v1559 = vsel %vm940, %v401, %v1104
      %v1560 = vsel %vm940, %v402, %v1106
      %v1561 = vsel %vm940, %v403, %v1108
      %v1562 = vsel %vm940, %v404, %v1110
      %v1563 = vsel %vm949, %v1547, %v1144
      %v1564 = vsel %vm949, %v1548, %v1144
      %v1565 = vsel %vm949, %v1549, %v1146
      %v1566 = vsel %vm949, %v1550, %v1146
      %v1567 = vsel %vm949, %v1551, %v1148
      %v1568 = vsel %vm949, %v1552, %v1148
      %v1569 = vsel %vm949, %v1553, %v1150
      %v1570 = vsel %vm949, %v1554, %v1150
      %v1571 = vsel %vm949, %v1555, %v1152
      %v1572 = vsel %vm949, %v1556, %v1152
      %v1573 = vsel %vm949, %v1557, %v1154
      %v1574 = vsel %vm949, %v1558, %v1154
      %v1575 = vsel %vm949, %v1559, %v1156
      %v1576 = vsel %vm949, %v1560, %v1156
      %v1577 = vsel %vm949, %v1561, %v1158
      %v1578 = vsel %vm949, %v1562, %v1158
      %v1579 = vsel %vm958, %v1563, %v1176
      %v1580 = vsel %vm958, %v1564, %v1178
      %v1581 = vsel %vm958, %v1565, %v1180
      %v1582 = vsel %vm958, %v1566, %v1182
      %v1583 = vsel %vm958, %v1567, %v1184
      %v1584 = vsel %vm958, %v1568, %v1186
      %v1585 = vsel %vm958, %v1569, %v1188
      %v1586 = vsel %vm958, %v1570, %v1190
      %v1587 = vsel %vm958, %v1571, %v1192
      %v1588 = vsel %vm958, %v1572, %v1194
      %v1589 = vsel %vm958, %v1573, %v1196
      %v1590 = vsel %vm958, %v1574, %v1198
      %v1591 = vsel %vm958, %v1575, %v1200
      %v1592 = vsel %vm958, %v1576, %v1202
      %v1593 = vsel %vm958, %v1577, %v1204
      %v1594 = vsel %vm958, %v1578, %v1206
      %v1595 = vsel %vm967, %v1579, %v1248
      %v1596 = vsel %vm967, %v1580, %v1250
      %v1597 = vsel %vm967, %v1581, %v1252
      %v1598 = vsel %vm967, %v1582, %v1254
      %v1599 = vsel %vm967, %v1583, %v1256
      %v1600 = vsel %vm967, %v1584, %v1258
      %v1601 = vsel %vm967, %v1585, %v1260
      %v1602 = vsel %vm967, %v1586, %v1262
      %v1603 = vsel %vm967, %v1587, %v1264
      %v1604 = vsel %vm967, %v1588, %v1266
      %v1605 = vsel %vm967, %v1589, %v1268
      %v1606 = vsel %vm967, %v1590, %v1270
      %v1607 = vsel %vm967, %v1591, %v1272
      %v1608 = vsel %vm967, %v1592, %v1274
      %v1609 = vsel %vm967, %v1593, %v1276
      %v1610 = vsel %vm967, %v1594, %v1278
      %v1611 = vsel %vm976, %v1595, %v1298
      %v1612 = vsel %vm976, %v1596, %v1298
      %v1613 = vsel %vm976, %v1597, %v1300
      %v1614 = vsel %vm976, %v1598, %v1300
      %v1615 = vsel %vm976, %v1599, %v1302
      %v1616 = vsel %vm976, %v1600, %v1302
      %v1617 = vsel %vm976, %v1601, %v1304
      %v1618 = vsel %vm976, %v1602, %v1304
      %v1619 = vsel %vm976, %v1603, %v1306
      %v1620 = vsel %vm976, %v1604, %v1306
      %v1621 = vsel %vm976, %v1605, %v1308
      %v1622 = vsel %vm976, %v1606, %v1308
      %v1623 = vsel %vm976, %v1607, %v1310
      %v1624 = vsel %vm976, %v1608, %v1310
      %v1625 = vsel %vm976, %v1609, %v1312
      %v1626 = vsel %vm976, %v1610, %v1312
      %v1627 = vsel %vm985, %v1611, %v1323
      %v1628 = vsel %vm985, %v1612, %v1325
      %v1629 = vsel %vm985, %v1613, %v1327
      %v1630 = vsel %vm985, %v1614, %v1329
      %v1631 = vsel %vm985, %v1615, %v1331
      %v1632 = vsel %vm985, %v1616, %v1333
      %v1633 = vsel %vm985, %v1617, %v1335
      %v1634 = vsel %vm985, %v1618, %v1337
      %v1635 = vsel %vm985, %v1619, %v1339
      %v1636 = vsel %vm985, %v1620, %v1341
      %v1637 = vsel %vm985, %v1621, %v1343
      %v1638 = vsel %vm985, %v1622, %v1345
      %v1639 = vsel %vm985, %v1623, %v1347
      %v1640 = vsel %vm985, %v1624, %v1349
      %v1641 = vsel %vm985, %v1625, %v1351
      %v1642 = vsel %vm985, %v1626, %v1353
      %v1643 = vsel %vm994, %v1627, %v1374
      %v1644 = vsel %vm994, %v1628, %v1376
      %v1645 = vsel %vm994, %v1629, %v1378
      %v1646 = vsel %vm994, %v1630, %v1380
      %v1647 = vsel %vm994, %v1631, %v1382
      %v1648 = vsel %vm994, %v1632, %v1384
      %v1649 = vsel %vm994, %v1633, %v1386
      %v1650 = vsel %vm994, %v1634, %v1388
      %v1651 = vsel %vm994, %v1635, %v1390
      %v1652 = vsel %vm994, %v1636, %v1392
      %v1653 = vsel %vm994, %v1637, %v1394
      %v1654 = vsel %vm994, %v1638, %v1396
      %v1655 = vsel %vm994, %v1639, %v1398
      %v1656 = vsel %vm994, %v1640, %v1400
      %v1657 = vsel %vm994, %v1641, %v1402
      %v1658 = vsel %vm994, %v1642, %v1404
      %v1659 = vsel %vm1003, %v1643, %v1424
      %v1660 = vsel %vm1003, %v1644, %v1424
      %v1661 = vsel %vm1003, %v1645, %v1426
      %v1662 = vsel %vm1003, %v1646, %v1426
      %v1663 = vsel %vm1003, %v1647, %v1428
      %v1664 = vsel %vm1003, %v1648, %v1428
      %v1665 = vsel %vm1003, %v1649, %v1430
      %v1666 = vsel %vm1003, %v1650, %v1430
      %v1667 = vsel %vm1003, %v1651, %v1432
      %v1668 = vsel %vm1003, %v1652, %v1432
      %v1669 = vsel %vm1003, %v1653, %v1434
      %v1670 = vsel %vm1003, %v1654, %v1434
      %v1671 = vsel %vm1003, %v1655, %v1436
      %v1672 = vsel %vm1003, %v1656, %v1436
      %v1673 = vsel %vm1003, %v1657, %v1438
      %v1674 = vsel %vm1003, %v1658, %v1438
      %v1675 = vsel %vm1012, %v1659, %v1449
      %v1676 = vsel %vm1012, %v1660, %v1451
      %v1677 = vsel %vm1012, %v1661, %v1453
      %v1678 = vsel %vm1012, %v1662, %v1455
      %v1679 = vsel %vm1012, %v1663, %v1457
      %v1680 = vsel %vm1012, %v1664, %v1459
      %v1681 = vsel %vm1012, %v1665, %v1461
      %v1682 = vsel %vm1012, %v1666, %v1463
      %v1683 = vsel %vm1012, %v1667, %v1465
      %v1684 = vsel %vm1012, %v1668, %v1467
      %v1685 = vsel %vm1012, %v1669, %v1469
      %v1686 = vsel %vm1012, %v1670, %v1471
      %v1687 = vsel %vm1012, %v1671, %v1473
      %v1688 = vsel %vm1012, %v1672, %v1475
      %v1689 = vsel %vm1012, %v1673, %v1477
      %v1690 = vsel %vm1012, %v1674, %v1479
      %v1691 = vsel %vm1021, %v1675, %v1500
      %v1692 = vsel %vm1021, %v1676, %v1502
      %v1693 = vsel %vm1021, %v1677, %v1504
      %v1694 = vsel %vm1021, %v1678, %v1506
      %v1695 = vsel %vm1021, %v1679, %v1508
      %v1696 = vsel %vm1021, %v1680, %v1510
      %v1697 = vsel %vm1021, %v1681, %v1512
      %v1698 = vsel %vm1021, %v1682, %v1514
      %v1699 = vsel %vm1021, %v1683, %v1516
      %v1700 = vsel %vm1021, %v1684, %v1518
      %v1701 = vsel %vm1021, %v1685, %v1520
      %v1702 = vsel %vm1021, %v1686, %v1522
      %v1703 = vsel %vm1021, %v1687, %v1524
      %v1704 = vsel %vm1021, %v1688, %v1526
      %v1705 = vsel %vm1021, %v1689, %v1528
      %v1706 = vsel %vm1021, %v1690, %v1530
      %v1723 = vrot.slane %v1691, 1
      %v1724 = vrot.slane %v1692, 1
      %v1725 = vsel %vm441, %v1723, %v1724
      %v1726 = vrot.slane %v1693, 1
      %v1727 = vrot.slane %v1694, 1
      %v1728 = vsel %vm441, %v1726, %v1727
      %v1729 = vrot.slane %v1695, 1
      %v1730 = vrot.slane %v1696, 1
      %v1731 = vsel %vm441, %v1729, %v1730
      %v1732 = vrot.slane %v1697, 1
      %v1733 = vrot.slane %v1698, 1
      %v1734 = vsel %vm441, %v1732, %v1733
      %v1735 = vrot.slane %v1699, 1
      %v1736 = vrot.slane %v1700, 1
      %v1737 = vsel %vm441, %v1735, %v1736
      %v1738 = vrot.slane %v1701, 1
      %v1739 = vrot.slane %v1702, 1
      %v1740 = vsel %vm441, %v1738, %v1739
      %v1741 = vrot.slane %v1703, 1
      %v1742 = vrot.slane %v1704, 1
      %v1743 = vsel %vm441, %v1741, %v1742
      %v1744 = vrot.slane %v1705, 1
      %v1745 = vrot.slane %v1706, 1
      %v1746 = vsel %vm441, %v1744, %v1745
      %v1755 = vpack.c.bf16 %v1068, %v1067
      %v1756 = vpack.c.bf16 %v1728, %v1725
      %v1757 = vpack.c.bf16 %v1070, %v1069
      %v1758 = vpack.c.bf16 %v1734, %v1731
      %v1759 = vpack.c.bf16 %v1072, %v1071
      %v1760 = vpack.c.bf16 %v1740, %v1737
      %v1761 = vpack.c.bf16 %v1074, %v1073
      %v1762 = vpack.c.bf16 %v1746, %v1743
      %v1763 = vld [vmem:[%s3] sm:$0xf]
      %v1764 = vld [vmem:[%s3 + $0x4] sm:$0xf]
      %v1765 = vld [vmem:[%s3 + $0x8] sm:$0xf]
      %v1766 = vld [vmem:[%s3 + $0xc] sm:$0xf]
      %v1767 = vld [vmem:[%s3 + $0x10] sm:$0xf]
      %v1768 = vld [vmem:[%s3 + $0x14] sm:$0xf]
      %v1769 = vld [vmem:[%s3 + $0x18] sm:$0xf]
      %v1770 = vld [vmem:[%s3 + $0x1c] sm:$0xf]
      %v1771 = vld [vmem:[%s3 + $0x20] sm:$0xf]
      %v1772 = vld [vmem:[%s3 + $0x24] sm:$0xf]
      %v1773 = vld [vmem:[%s3 + $0x28] sm:$0xf]
      %v1774 = vld [vmem:[%s3 + $0x2c] sm:$0xf]
      %v1775 = vld [vmem:[%s3 + $0x30] sm:$0xf]
      %v1776 = vld [vmem:[%s3 + $0x34] sm:$0xf]
      %v1777 = vld [vmem:[%s3 + $0x38] sm:$0xf]
      %v1778 = vld [vmem:[%s3 + $0x3c] sm:$0xf]
      %v1779 = vld [vmem:[%s3 + $0x40] sm:$0xf]
      %v1780 = vld [vmem:[%s3 + $0x44] sm:$0xf]
      %v1781 = vld [vmem:[%s3 + $0x48] sm:$0xf]
      %v1782 = vld [vmem:[%s3 + $0x4c] sm:$0xf]
      %v1783 = vld [vmem:[%s3 + $0x50] sm:$0xf]
      %v1784 = vld [vmem:[%s3 + $0x54] sm:$0xf]
      %v1785 = vld [vmem:[%s3 + $0x58] sm:$0xf]
      %v1786 = vld [vmem:[%s3 + $0x5c] sm:$0xf]
      %v1787 = vld [vmem:[%s3 + $0x60] sm:$0xf]
      %v1788 = vld [vmem:[%s3 + $0x64] sm:$0xf]
      %v1789 = vld [vmem:[%s3 + $0x68] sm:$0xf]
      %v1817 = vunpack.c.l.b16 %v1763
      %v1818 = vunpack.c.l.b16 %v1764
      %v1819 = vunpack.c.l.b16 %v1765
      %v1820 = vunpack.c.l.b16 %v1766
      %v1821 = vunpack.c.l.b16 %v1767
      %v1822 = vunpack.c.l.b16 %v1768
      %v1823 = vunpack.c.l.b16 %v1769
      %v1824 = vunpack.c.l.b16 %v1770
      %v1825 = vunpack.c.l.b16 %v1771
      %v1826 = vunpack.c.l.b16 %v1772
      %v1827 = vunpack.c.l.b16 %v1773
      %v1828 = vunpack.c.l.b16 %v1774
      %v1829 = vunpack.c.l.b16 %v1775
      %v1830 = vunpack.c.l.b16 %v1776
      %v1831 = vunpack.c.l.b16 %v1777
      %v1832 = vunpack.c.l.b16 %v1778
      %v1833 = vunpack.c.l.b16 %v1779
      %v1834 = vunpack.c.l.b16 %v1780
      %v1835 = vunpack.c.l.b16 %v1781
      %v1836 = vunpack.c.l.b16 %v1782
      %v1837 = vunpack.c.l.b16 %v1783
      %v1838 = vunpack.c.l.b16 %v1784
      %v1839 = vunpack.c.l.b16 %v1785
      %v1840 = vunpack.c.l.b16 %v1786
      %v1841 = vunpack.c.l.b16 %v1787
      %v1842 = vunpack.c.l.b16 %v1788
      %v1843 = vunpack.c.l.b16 %v1789
      %v1844 = vpack.c.b16 %v1818, %v1817
      %v1845 = vpack.c.b16 %v1820, %v1819
      %v1846 = vpack.c.b16 %v1822, %v1821
      %v1847 = vpack.c.b16 %v1824, %v1823
      %v1848 = vpack.c.b16 %v1826, %v1825
      %v1849 = vpack.c.b16 %v1828, %v1827
      %v1850 = vpack.c.b16 %v1830, %v1829
      %v1851 = vpack.c.b16 %v1832, %v1831
      %v1852 = vpack.c.b16 %v1834, %v1833
      %v1853 = vpack.c.b16 %v1836, %v1835
      %v1854 = vpack.c.b16 %v1838, %v1837
      %v1855 = vpack.c.b16 %v1840, %v1839
      %v1856 = vpack.c.b16 %v1842, %v1841
      %v1857 = vpack.c.b16 %v1843, %v1843
      %v1872 = vsel %vm1030, %v1756, 0
      %v1875 = vsel %vm1030, %v1758, 0
      %v1878 = vsel %vm1030, %v1760, 0
      %v1881 = vsel %vm1030, %v1762, 0
      %vm1883 = vcmask 1043456
      %v1885 = vsel %vm1883, %v1857, 0
      %1887 = vmatprep.subr.bf16.mxu0 0
      %1888 = vmatpush1.bf16.msra.mxu0 %v1851
      %1889 = vmatprep.subr.bf16.mxu0 0
      %1890 = vmatpush1.bf16.msra.mxu0 %v1850
      %1891 = vmatprep.subr.bf16.mxu0 0
      %1892 = vmatpush1.bf16.msra.mxu0 %v1849
      %1893 = vmatprep.subr.bf16.mxu0 0
      %1894 = vmatpush1.bf16.msra.mxu0 %v1848
      %1895 = vmatprep.subr.bf16.mxu0 0
      %1896 = vmatpush1.bf16.msra.mxu0 %v1847
      %1897 = vmatprep.subr.bf16.mxu0 0
      %1898 = vmatpush1.bf16.msra.mxu0 %v1846
      %1899 = vmatprep.subr.bf16.mxu0 0
      %1900 = vmatpush1.bf16.msra.mxu0 %v1845
      %1901 = vmatprep.subr.bf16.mxu0 0
      %1902 = vmatpush1.bf16.msra.mxu0 %v1844
      %1903 = vmatprep.subr.bf16.mxu0 0
      %1904 = vmatpush2.bf16.msra.mxu0 0
      %1905 = vmatprep.subr.bf16.mxu0 0
      %1906 = vmatpush2.bf16.msra.mxu0 0
      %1907 = vmatprep.subr.bf16.mxu0 0
      %1908 = vmatpush2.bf16.msra.mxu0 %v1885
      %1909 = vmatprep.subr.bf16.mxu0 0
      %1910 = vmatpush2.bf16.msra.mxu0 %v1856
      %1911 = vmatprep.subr.bf16.mxu0 0
      %1912 = vmatpush2.bf16.msra.mxu0 %v1855
      %1913 = vmatprep.subr.bf16.mxu0 0
      %1914 = vmatpush2.bf16.msra.mxu0 %v1854
      %1915 = vmatprep.subr.bf16.mxu0 0
      %1916 = vmatpush2.bf16.msra.mxu0 %v1853
      %1917 = vmatprep.subr.bf16.mxu0 0
      %1918 = vmatpush2.bf16.msra.mxu0 %v1852
      %1919 = vmatprep.mubr.bf16.mxu0 %v1872
      %1920 = vmatmul.mubr.bf16.gmra.mxu0 %v1755
      %v1921 = vpop.f32.mrf.mxu0
      %v1922 = vadd.f32 0.0, %v1921
      %v1923 = vpop.f32.mrf.mxu0
      %v1924 = vpop.f32.mrf.mxu0
      %v1925 = vadd.f32 0.0, %v1924
      %v1926 = vpop.f32.mrf.mxu0
      %1927 = vmatprep.mubr.bf16.mxu0 %v1875
      %1928 = vmatmul.mubr.bf16.gmra.mxu0 %v1757
      %v1929 = vpop.f32.mrf.mxu0
      %v1930 = vadd.f32 0.0, %v1929
      %v1931 = vpop.f32.mrf.mxu0
      %v1932 = vpop.f32.mrf.mxu0
      %v1933 = vadd.f32 0.0, %v1932
      %v1934 = vpop.f32.mrf.mxu0
      %1935 = vmatprep.mubr.bf16.mxu0 %v1878
      %1936 = vmatmul.mubr.bf16.gmra.mxu0 %v1759
      %v1937 = vpop.f32.mrf.mxu0
      %v1938 = vadd.f32 0.0, %v1937
      %v1939 = vpop.f32.mrf.mxu0
      %v1940 = vpop.f32.mrf.mxu0
      %v1941 = vadd.f32 0.0, %v1940
      %v1942 = vpop.f32.mrf.mxu0
      %1943 = vmatprep.mubr.bf16.mxu0 %v1881
      %1944 = vmatmul.mubr.bf16.gmra.mxu0 %v1761
      %v1945 = vpop.f32.mrf.mxu0
      %v1946 = vadd.f32 0.0, %v1945
      %v1947 = vpop.f32.mrf.mxu0
      %v1948 = vpop.f32.mrf.mxu0
      %v1949 = vadd.f32 0.0, %v1948
      %v1950 = vpop.f32.mrf.mxu0
      %1951 = vdwg.mxu0
      %v1952 = vpack.c.bf16 %v1925, %v1922
      %v1953 = vpack.c.bf16 %v1933, %v1930
      %v1954 = vpack.c.bf16 %v1941, %v1938
      %v1955 = vpack.c.bf16 %v1949, %v1946
      %v1960 = vunpack.c.l.b16 %v1952
      %v1961 = vunpack.c.h.b16 %v1952
      %v1962 = vunpack.c.l.b16 %v1953
      %v1963 = vunpack.c.h.b16 %v1953
      %v1964 = vunpack.c.l.b16 %v1954
      %v1965 = vunpack.c.h.b16 %v1954
      %v1966 = vunpack.c.l.b16 %v1955
      %v1967 = vunpack.c.h.b16 %v1955
      %v1968 = vpack.c.b16 %v1960, %v1960
      %v1969 = vpack.c.b16 %v1961, %v1961
      %v1970 = vpack.c.b16 %v1962, %v1962
      %v1971 = vpack.c.b16 %v1963, %v1963
      %v1972 = vpack.c.b16 %v1964, %v1964
      %v1973 = vpack.c.b16 %v1965, %v1965
      %v1974 = vpack.c.b16 %v1966, %v1966
      %v1975 = vpack.c.b16 %v1967, %v1967
      %vm1984 = vcmask 60416
      %1985 = vst.msk [vmem:[%s355] sm:$0xf] %vm1984, %v1968
      %1986 = vst.msk [vmem:[%s355 + $0x4] sm:$0xf] %vm1984, %v1969
      %1987 = vst.msk [vmem:[%s355 + $0x8] sm:$0xf] %vm1984, %v1970
      %1988 = vst.msk [vmem:[%s355 + $0xc] sm:$0xf] %vm1984, %v1971
      %1989 = vst.msk [vmem:[%s355 + $0x10] sm:$0xf] %vm1984, %v1972
      %1990 = vst.msk [vmem:[%s355 + $0x14] sm:$0xf] %vm1984, %v1973
      %1991 = vst.msk [vmem:[%s355 + $0x18] sm:$0xf] %vm1984, %v1974
      %1992 = vst.msk [vmem:[%s355 + $0x1c] sm:$0xf] %vm1984, %v1975
      %v1993 = vsel %vm940, %v1922, 0.0
      %v1994 = vsel %vm940, %v1925, 0.0
      %v1995 = vadd.f32 %v1993, %v1994
      %v1996 = vsel %vm940, %v1930, 0.0
      %v1997 = vadd.f32 %v1995, %v1996
      %v1998 = vsel %vm940, %v1933, 0.0
      %v1999 = vadd.f32 %v1997, %v1998
      %v2000 = vsel %vm940, %v1938, 0.0
      %v2001 = vadd.f32 %v1999, %v2000
      %v2002 = vsel %vm940, %v1941, 0.0
      %v2003 = vadd.f32 %v2001, %v2002
      %v2004 = vsel %vm940, %v1946, 0.0
      %v2005 = vadd.f32 %v2003, %v2004
      %v2006 = vsel %vm940, %v1949, 0.0
      %v2007 = vadd.f32 %v2005, %v2006
      %v2008 = vrot.slane %v2007, 4
      %v2009 = vadd.f32 %v2007, %v2008
      %v2010 = vrot.slane %v2009, 2
      %v2011 = vadd.f32 %v2009, %v2010
      %v2012 = vrot.slane %v2011, 1
      %v2013 = vadd.f32 %v2011, %v2012
      %v2014 = vmul.f32 %v1922, %v1922
      %v2015 = vmul.f32 %v1925, %v1925
      %v2016 = vmul.f32 %v1930, %v1930
      %v2017 = vmul.f32 %v1933, %v1933
      %v2018 = vmul.f32 %v1938, %v1938
      %v2019 = vmul.f32 %v1941, %v1941
      %v2020 = vmul.f32 %v1946, %v1946
      %v2021 = vmul.f32 %v1949, %v1949
      %v2022 = vsel %vm940, %v2014, 0.0
      %v2023 = vsel %vm940, %v2015, 0.0
      %v2024 = vadd.f32 %v2022, %v2023
      %v2025 = vsel %vm940, %v2016, 0.0
      %v2026 = vadd.f32 %v2024, %v2025
      %v2027 = vsel %vm940, %v2017, 0.0
      %v2028 = vadd.f32 %v2026, %v2027
      %v2029 = vsel %vm940, %v2018, 0.0
      %v2030 = vadd.f32 %v2028, %v2029
      %v2031 = vsel %vm940, %v2019, 0.0
      %v2032 = vadd.f32 %v2030, %v2031
      %v2033 = vsel %vm940, %v2020, 0.0
      %v2034 = vadd.f32 %v2032, %v2033
      %v2035 = vsel %vm940, %v2021, 0.0
      %v2036 = vadd.f32 %v2034, %v2035
      %v2037 = vrot.slane %v2036, 4
      %v2038 = vadd.f32 %v2036, %v2037
      %v2039 = vrot.slane %v2038, 2
      %v2040 = vadd.f32 %v2038, %v2039
      %v2041 = vrot.slane %v2040, 1
      %v2042 = vadd.f32 %v2040, %v2041
      %vm2043 = vcmask 1040384
      %v2044 = vsel %vm2043, %v2013, %v2042
      %vm2045 = vcmask 58368
      %2046 = vst.msk [vmem:[%s363] sm:$0x3] %vm2045, %v2044
      %p2047 = scmp.lt.s32.totalorder %s21, 1
      %s2048 = scalar_select %p2047, %s21, 1
      %p2049 = scmp.lt.s32.totalorder %s22, 3
      %s2050 = scalar_select %p2049, %s22, 3
      %s2051 = smul.addr %s2050, 8
      %s2052 = smul.addr %s2048, 32
      %s2053 = sadd.s32 %s2051, %s2052
      %s2054 = smul.addr %s2053, 4
      %s2055 = scalar_lea.vmem %s4, %s2054
      %p2056 = scmp.lt.s32.totalorder %s21, 1
      %s2057 = scalar_select %p2056, %s21, 1
      %p2058 = scmp.lt.s32.totalorder %s22, 3
      %s2059 = scalar_select %p2058, %s22, 3
      %s2060 = smul.addr %s2057, 4
      %s2061 = sadd.s32 %s2059, %s2060
      %s2062 = smul.addr %s2061, 2
      %s2063 = scalar_lea.vmem %s5, %s2062
      // Predicated region
      $region37: #{conv_block_pallas.6} parent=35 // pred_check
        %p2064 = pneg %p158
      $region38: #{conv_block_pallas.6} parent=35 // pred_check_branch
        %2066 = sbr.rel (%p2064) target = $region40
      $region39: #{conv_block_pallas.6} parent=35 // pred_region
        _
      $region40: #{conv_block_pallas.6} parent=35 // pred_fallthru
        _
      // Predicated region
      $region41: #{conv_block_pallas.6} parent=35 // pred_check
        %p2067 = pneg %p186
      $region42: #{conv_block_pallas.6} parent=35 // pred_check_branch
        %2069 = sbr.rel (%p2067) target = $region44
      $region43: #{conv_block_pallas.6} parent=35 // pred_region
        _
      $region44: #{conv_block_pallas.6} parent=35 // pred_fallthru
        _
    $region36: #{conv_block_pallas.6} parent=5 // pred_fallthru
      _
    %p2070 = scmp.le.s32.totalorder 2, %s12
    // Predicated region
    $region45: #{conv_block_pallas.6} parent=5 // pred_check
      %p2071 = pneg %p2070
    $region46: #{conv_block_pallas.6} parent=5 // pred_check_branch
      %2073 = sbr.rel (%p2071) target = $region48
    $region47: #{conv_block_pallas.6} parent=5 // pred_region
      %s2074 = ssub.s32 %s12, 2
      // Predicated region
      $region49: #{conv_block_pallas.6} parent=47 // pred_check
        %p2075 = pneg %p164
      $region50: #{conv_block_pallas.6} parent=47 // pred_check_branch
        %2077 = sbr.rel (%p2075) target = $region52
      $region51: #{conv_block_pallas.6} parent=47 // pred_region
        %p2078 = scmp.lt.s32.totalorder %s23, 1
        %s2079 = scalar_select %p2078, %s23, 1
        %p2080 = scmp.lt.s32.totalorder %s24, 3
        %s2081 = scalar_select %p2080, %s24, 3
        %s2082 = smul.addr %s2081, 8
        %s2083 = smul.addr %s2079, 32
        %s2084 = sadd.s32 %s2082, %s2083
        %s2085 = smul.addr %s2084, 4
        %s2086 = scalar_lea.vmem %s4, %s2085
      $region52: #{conv_block_pallas.6} parent=47 // pred_fallthru
        _
      // Predicated region
      $region53: #{conv_block_pallas.6} parent=47 // pred_check
        %p2087 = pneg %p192
      $region54: #{conv_block_pallas.6} parent=47 // pred_check_branch
        %2089 = sbr.rel (%p2087) target = $region56
      $region55: #{conv_block_pallas.6} parent=47 // pred_region
        %p2090 = scmp.lt.s32.totalorder %s23, 1
        %s2091 = scalar_select %p2090, %s23, 1
        %p2092 = scmp.lt.s32.totalorder %s24, 3
        %s2093 = scalar_select %p2092, %s24, 3
        %s2094 = smul.addr %s2091, 4
        %s2095 = sadd.s32 %s2093, %s2094
        %s2096 = smul.addr %s2095, 2
        %s2097 = scalar_lea.vmem %s5, %s2096
      $region56: #{conv_block_pallas.6} parent=47 // pred_fallthru
        _
    $region48: #{conv_block_pallas.6} parent=5 // pred_fallthru
      _
  $region6: #{conv_block_pallas.6} parent=0 // loop_footer
    %s16 = sadd.s32 1, %s12
  $region7: #{conv_block_pallas.6} parent=0 // loop_footer_branch
    %11 = sbr.rel target = $region3
  $region8: #{conv_block_pallas.6} parent=0 // loop_exit
    _

</llo_original>
